<compile_context>
chip_gen: v7x
topology: tpu7x:2x2x1
jax: 0.10.0
libtpu: 0.0.40
codegen_flags: <defaults>
</compile_context>

<pallas_src>
import functools

import jax
import jax.numpy as jnp
from jax import lax
from jax.experimental import pallas as pl
from jax.experimental.pallas import tpu as pltpu


def calculate_same_padding(kernel_size, dilation, stride):
    return (stride - 1 + dilation * (kernel_size - 1)) // 2


def _dsconv_kernel(x_ref, wd_ref, s1_ref, t1_ref, w1_ref, b1_ref, w2_ref,
                   b2_ref, wp_ref, s2_ref, t2_ref, o_ref, pad_ref, acc_ref,
                   *, k, pad, has_residual, hb):
    H, W, C = x_ref.shape
    Co = o_ref.shape[-1]
    Hp, Wp, _ = pad_ref.shape

    # ---- stage input into a zero-padded VMEM halo buffer (VMEM<->VMEM only) -----
    if pad > 0:
        zrow = jnp.zeros((pad, Wp, C), dtype=pad_ref.dtype)
        pad_ref[pl.ds(0, pad), :, :] = zrow
        pad_ref[pl.ds(pad + H, pad), :, :] = zrow
        zcol = jnp.zeros((H, pad, C), dtype=pad_ref.dtype)
        pad_ref[pl.ds(pad, H), pl.ds(0, pad), :] = zcol
        pad_ref[pl.ds(pad, H), pl.ds(pad + W, pad), :] = zcol
    pad_ref[pl.ds(pad, H), pl.ds(pad, W), :] = x_ref[...]

    # ---- depthwise k x k conv (stride 1), f32 accumulation in VMEM scratch ------
    # Channels are on the lane axis; each tap is a streaming VPU FMA over the tile.
    first = True
    for kh in range(k):
        for kw in range(k):
            w_tap = wd_ref[pl.ds(kh, 1), pl.ds(kw, 1), :].astype(jnp.float32)  # (1,1,C)
            tap = pad_ref[pl.ds(kh, H), pl.ds(kw, W), :].astype(jnp.float32) * w_tap
            if first:
                acc_ref[...] = tap
                first = False
            else:
                acc_ref[...] += tap
    # TODO(synk): stride > 1 depthwise conv would need sublane-strided tap reads.

    # ---- BN1 (folded scale/shift) + ReLU, in place -------------------------------
    acc_ref[...] = jnp.maximum(acc_ref[...] * s1_ref[...] + t1_ref[...], 0.0)

    # ---- SqueezeExcite gate -------------------------------------------------------
    row_sum = jnp.sum(acc_ref[...], axis=0)                              # (W, C)
    pooled = jnp.sum(row_sum, axis=0, keepdims=True) * (1.0 / (H * W))   # (1, C)
    # Two tiny 1-row FC layers; MXU utilization is irrelevant at this size.
    h = jnp.dot(pooled, w1_ref[...], preferred_element_type=jnp.float32) + b1_ref[...]
    h = jnp.maximum(h, 0.0)
    g = jnp.dot(h, w2_ref[...], preferred_element_type=jnp.float32) + b2_ref[...]
    gate = jax.nn.sigmoid(g)                                             # (1, C)

    # ---- SE scale -> pointwise 1x1 conv -> BN2 -> ReLU -> (+residual) -> store ---
    n_chunks = H // hb

    def pw_body(i, carry):
        hs = pl.multiple_of(i * hb, hb)
        a = acc_ref[pl.ds(hs, hb)] * gate                                # (hb, W, C)
        y = jnp.dot(a.reshape(hb * W, C), wp_ref[...],
                    preferred_element_type=jnp.float32)                  # (hb*W, Co)
        y = jnp.maximum(y * s2_ref[...] + t2_ref[...], 0.0)
        if has_residual:
            y = y + x_ref[pl.ds(hs, hb)].astype(jnp.float32).reshape(hb * W, C)
        o_ref[pl.ds(hs, hb)] = y.reshape(hb, W, Co).astype(o_ref.dtype)
        return carry

    lax.fori_loop(0, n_chunks, pw_body, 0, unroll=n_chunks <= 8)


def depthwise_separable_conv_pallas(
        x_nhwc,                                   # (N, H, W, Cin), channels-last
        w_dw,                                     # (Cin, 1, k, k)  depthwise Conv2d weight
        bn1_gamma, bn1_beta, bn1_mean, bn1_var,   # (Cin,) each (eval running stats)
        w_se_reduce, b_se_reduce,                 # (L, Cin, 1, 1), (L,)
        w_se_expand, b_se_expand,                 # (Cin, L, 1, 1), (Cin,)
        w_pw,                                     # (Cout, Cin, 1, 1)
        bn2_gamma, bn2_beta, bn2_mean, bn2_var,   # (Cout,) each
        *, stride=1, eps=1e-5):
    """Forward pass of composer's DepthwiseSeparableConv (inference semantics).
    Keep activations NHWC end-to-end; convert PyTorch weights once at load time."""
    N, H, W, Cin = x_nhwc.shape
    k = w_dw.shape[-1]
    Cout = w_pw.shape[0]
    L = w_se_reduce.shape[0]
    pad = calculate_same_padding(k, dilation=1, stride=stride)
    has_residual = (Cin == Cout) and (stride == 1)

    # TODO(synk): support stride > 1 (no residual path in that case).
    assert stride == 1, "only stride=1 is implemented in the Pallas kernel"

    f32 = jnp.float32
    # One-time parameter re-layout / BN folding (tiny; not in the activation hot path).
    wd = jnp.transpose(w_dw.reshape(Cin, k, k), (1, 2, 0)).astype(f32)   # (k, k, Cin)
    inv1 = 1.0 / jnp.sqrt(bn1_var.astype(f32) + eps)
    s1 = (bn1_gamma.astype(f32) * inv1).reshape(1, Cin)
    t1 = (bn1_beta.astype(f32)
          - bn1_mean.astype(f32) * bn1_gamma.astype(f32) * inv1).reshape(1, Cin)
    w1 = w_se_reduce.reshape(L, Cin).T.astype(f32)                       # (Cin, L)
    b1 = b_se_reduce.reshape(1, L).astype(f32)
    w2 = w_se_expand.reshape(Cin, L).T.astype(f32)                       # (L, Cin)
    b2 = b_se_expand.reshape(1, Cin).astype(f32)
    wp = w_pw.reshape(Cout, Cin).T.astype(f32)                           # (Cin, Cout)
    inv2 = 1.0 / jnp.sqrt(bn2_var.astype(f32) + eps)
    s2 = (bn2_gamma.astype(f32) * inv2).reshape(1, Cout)
    t2 = (bn2_beta.astype(f32)
          - bn2_mean.astype(f32) * bn2_gamma.astype(f32) * inv2).reshape(1, Cout)

    hb = 8 if H % 8 == 0 else 1   # row-chunk size for the pointwise/store loop

    # VMEM budget: pipelined in/out blocks are double-buffered + scratch + weights.
    bpe = x_nhwc.dtype.itemsize
    block_bytes = (2 * H * W * Cin * bpe
                   + 2 * H * W * Cout * bpe
                   + (H + 2 * pad) * (W + 2 * pad) * Cin * bpe
                   + H * W * Cin * 4)
    weight_bytes = 4 * 2 * (k * k * Cin + 4 * Cin + Cin * L + 2 * L
                            + L * Cin + Cin * Cout + 4 * Cout)
    vmem_limit = int(min(max(2 * (block_bytes + weight_bytes), 8 * 2 ** 20),
                         64 * 2 ** 20))   # stay within v7x's 64 MiB physical VMEM

    kernel = functools.partial(_dsconv_kernel, k=k, pad=pad,
                               has_residual=has_residual, hb=hb)

    return pl.pallas_call(
        kernel,
        out_shape=jax.ShapeDtypeStruct((N, H, W, Cout), x_nhwc.dtype),
        grid_spec=pltpu.PrefetchScalarGridSpec(
            num_scalar_prefetch=0,
            grid=(N,),
            in_specs=[
                pl.BlockSpec((None, H, W, Cin), lambda n: (n, 0, 0, 0)),  # x
                pl.BlockSpec((k, k, Cin), lambda n: (0, 0, 0)),           # depthwise w
                pl.BlockSpec((1, Cin), lambda n: (0, 0)),                 # bn1 scale
                pl.BlockSpec((1, Cin), lambda n: (0, 0)),                 # bn1 shift
                pl.BlockSpec((Cin, L), lambda n: (0, 0)),                 # SE reduce w
                pl.BlockSpec((1, L), lambda n: (0, 0)),                   # SE reduce b
                pl.BlockSpec((L, Cin), lambda n: (0, 0)),                 # SE expand w
                pl.BlockSpec((1, Cin), lambda n: (0, 0)),                 # SE expand b
                pl.BlockSpec((Cin, Cout), lambda n: (0, 0)),              # pointwise w
                pl.BlockSpec((1, Cout), lambda n: (0, 0)),                # bn2 scale
                pl.BlockSpec((1, Cout), lambda n: (0, 0)),                # bn2 shift
            ],
            out_specs=pl.BlockSpec((None, H, W, Cout), lambda n: (n, 0, 0, 0)),
            scratch_shapes=[
                pltpu.VMEM((H + 2 * pad, W + 2 * pad, Cin), x_nhwc.dtype),  # halo
                pltpu.VMEM((H, W, Cin), jnp.float32),                       # dw acc
            ]),
        compiler_params=pltpu.CompilerParams(
            dimension_semantics=("parallel",),
            vmem_limit_bytes=vmem_limit),
    )(x_nhwc, wd, s1, t1, w1, b1, w2, b2, wp, s2, t2)


def depthwise_separable_conv_ref_nchw(
        x_nchw, w_dw, bn1_gamma, bn1_beta, bn1_mean, bn1_var,
        w_se_reduce, b_se_reduce, w_se_expand, b_se_expand,
        w_pw, bn2_gamma, bn2_beta, bn2_mean, bn2_var, *, stride=1, eps=1e-5):
    """Pure-JAX NCHW reference mirroring the PyTorch module in eval mode."""
    N, C, H, W = x_nchw.shape
    k = w_dw.shape[-1]
    Co = w_pw.shape[0]
    L = w_se_reduce.shape[0]
    pad = calculate_same_padding(k, dilation=1, stride=stride)

    out = lax.conv_general_dilated(
        x_nchw, w_dw, window_strides=(stride, stride),
        padding=[(pad, pad), (pad, pad)],
        dimension_numbers=("NCHW", "OIHW", "NCHW"),
        feature_group_count=C, precision=lax.Precision.HIGHEST)

    def bn(v, gamma, beta, mean, var):
        inv = 1.0 / jnp.sqrt(var + eps)
        return ((v - mean[None, :, None, None]) * (gamma * inv)[None, :, None, None]
                + beta[None, :, None, None])

    out = jnp.maximum(bn(out, bn1_gamma, bn1_beta, bn1_mean, bn1_var), 0.0)

    pooled = jnp.mean(out, axis=(2, 3))                                   # (N, C)
    h = jnp.maximum(pooled @ w_se_reduce.reshape(L, C).T + b_se_reduce, 0.0)
    gate = jax.nn.sigmoid(h @ w_se_expand.reshape(C, L).T + b_se_expand)  # (N, C)
    out = out * gate[:, :, None, None]

    out = jnp.einsum("nchw,oc->nohw", out, w_pw.reshape(Co, C),
                     precision=lax.Precision.HIGHEST)
    out = jnp.maximum(bn(out, bn2_gamma, bn2_beta, bn2_mean, bn2_var), 0.0)

    if C == Co and stride == 1:
        out = out + x_nchw   # drop_connect is the identity at inference
    return out


if __name__ == "__main__":
    key = jax.random.PRNGKey(0)
    ks = jax.random.split(key, 16)

    N, Cin, Cout, H, W = 2, 4, 4, 16, 16
    kernel_size, stride, se_ratio = 3, 1, 0.5
    L = max(1, int(Cin * se_ratio))
    eps = 1e-5
    f32 = jnp.float32

    x_nchw = jax.random.normal(ks[0], (N, Cin, H, W), f32)
    w_dw = jax.random.normal(ks[1], (Cin, 1, kernel_size, kernel_size), f32) * 0.3
    bn1_gamma = 1.0 + 0.1 * jax.random.normal(ks[2], (Cin,), f32)
    bn1_beta = 0.1 * jax.random.normal(ks[3], (Cin,), f32)
    bn1_mean = 0.1 * jax.random.normal(ks[4], (Cin,), f32)
    bn1_var = jnp.abs(jax.random.normal(ks[5], (Cin,), f32)) + 0.5
    w_se_reduce = jax.random.normal(ks[6], (L, Cin, 1, 1), f32) * 0.3
    b_se_reduce = 0.1 * jax.random.normal(ks[7], (L,), f32)
    w_se_expand = jax.random.normal(ks[8], (Cin, L, 1, 1), f32) * 0.3
    b_se_expand = 0.1 * jax.random.normal(ks[9], (Cin,), f32)
    w_pw = jax.random.normal(ks[10], (Cout, Cin, 1, 1), f32) * 0.3
    bn2_gamma = 1.0 + 0.1 * jax.random.normal(ks[11], (Cout,), f32)
    bn2_beta = 0.1 * jax.random.normal(ks[12], (Cout,), f32)
    bn2_mean = 0.1 * jax.random.normal(ks[13], (Cout,), f32)
    bn2_var = jnp.abs(jax.random.normal(ks[14], (Cout,), f32)) + 0.5

    # Channels-last activations are the kernel's native layout; this transpose is
    # test-harness-only (a real pipeline keeps NHWC end-to-end).
    x_nhwc = jnp.transpose(x_nchw, (0, 2, 3, 1))

    out = depthwise_separable_conv_pallas(
        x_nhwc, w_dw,
        bn1_gamma, bn1_beta, bn1_mean, bn1_var,
        w_se_reduce, b_se_reduce, w_se_expand, b_se_expand,
        w_pw, bn2_gamma, bn2_beta, bn2_mean, bn2_var,
        stride=stride, eps=eps)
    out = jax.block_until_ready(out)

    ref_nchw = depthwise_separable_conv_ref_nchw(
        x_nchw, w_dw,
        bn1_gamma, bn1_beta, bn1_mean, bn1_var,
        w_se_reduce, b_se_reduce, w_se_expand, b_se_expand,
        w_pw, bn2_gamma, bn2_beta, bn2_mean, bn2_var,
        stride=stride, eps=eps)
    ref = jnp.transpose(ref_nchw, (0, 2, 3, 1))

    assert out.shape == (N, H, W, Cout), out.shape
    max_err = float(jnp.max(jnp.abs(out - ref)))
    assert jnp.allclose(out, ref, atol=1e-4, rtol=1e-4), f"mismatch, max_err={max_err}"
    print("KERNEL_OK")
</pallas_src>

<mosaic_0001>
module attributes {stable_mosaic.version = 11 : i64} {
  func.func @_dsconv_kernel(%arg0: i32, %arg1: memref<1x16x16x4xf32, #tpu.memory_space<vmem>>, %arg2: memref<3x3x4xf32, #tpu.memory_space<vmem>>, %arg3: memref<1x4xf32, #tpu.memory_space<vmem>>, %arg4: memref<1x4xf32, #tpu.memory_space<vmem>>, %arg5: memref<4x2xf32, #tpu.memory_space<vmem>>, %arg6: memref<1x2xf32, #tpu.memory_space<vmem>>, %arg7: memref<2x4xf32, #tpu.memory_space<vmem>>, %arg8: memref<1x4xf32, #tpu.memory_space<vmem>>, %arg9: memref<4x4xf32, #tpu.memory_space<vmem>>, %arg10: memref<1x4xf32, #tpu.memory_space<vmem>>, %arg11: memref<1x4xf32, #tpu.memory_space<vmem>>, %arg12: memref<1x16x16x4xf32, #tpu.memory_space<vmem>>, %arg13: memref<18x18x4xf32, #tpu.memory_space<vmem>>, %arg14: memref<16x16x4xf32, #tpu.memory_space<vmem>>) attributes {dimension_semantics = [#tpu.dimension_semantics<parallel>], iteration_bounds = array<i64: 2>, scalar_prefetch = 0 : i64, scratch_operands = 2 : i64, tpu.core_type = #tpu.core_type<tc>, window_params = [{transform_indices = @transform_0, window_bounds = array<i64: 1, 16, 16, 4>}, {pipeline_mode = #tpu.pipeline_mode<synchronous>, transform_indices = @transform_1, window_bounds = array<i64: 3, 3, 4>}, {pipeline_mode = #tpu.pipeline_mode<synchronous>, transform_indices = @transform_2, window_bounds = array<i64: 1, 4>}, {pipeline_mode = #tpu.pipeline_mode<synchronous>, transform_indices = @transform_3, window_bounds = array<i64: 1, 4>}, {pipeline_mode = #tpu.pipeline_mode<synchronous>, transform_indices = @transform_4, window_bounds = array<i64: 4, 2>}, {pipeline_mode = #tpu.pipeline_mode<synchronous>, transform_indices = @transform_5, window_bounds = array<i64: 1, 2>}, {pipeline_mode = #tpu.pipeline_mode<synchronous>, transform_indices = @transform_6, window_bounds = array<i64: 2, 4>}, {pipeline_mode = #tpu.pipeline_mode<synchronous>, transform_indices = @transform_7, window_bounds = array<i64: 1, 4>}, {pipeline_mode = #tpu.pipeline_mode<synchronous>, transform_indices = @transform_8, window_bounds = array<i64: 4, 4>}, {pipeline_mode = #tpu.pipeline_mode<synchronous>, transform_indices = @transform_9, window_bounds = array<i64: 1, 4>}, {pipeline_mode = #tpu.pipeline_mode<synchronous>, transform_indices = @transform_10, window_bounds = array<i64: 1, 4>}, {transform_indices = @transform_11, window_bounds = array<i64: 1, 16, 16, 4>}]} {
    %cst = arith.constant 0.000000e+00 : f32
    %0 = vector.broadcast %cst : f32 to vector<1x18x4xf32>
    %c0 = arith.constant 0 : index
    %c0_0 = arith.constant 0 : index
    %c0_1 = arith.constant 0 : index
    %1 = vector.load %arg13[%c0, %c0_0, %c0_1] : memref<18x18x4xf32, #tpu.memory_space<vmem>>, vector<1x18x4xf32>
    tpu.vector_store %arg13[%c0, %c0_0, %c0_1], %0 {strides = array<i32>} : memref<18x18x4xf32, #tpu.memory_space<vmem>>, vector<1x18x4xf32>,
    %c17 = arith.constant 17 : index
    %c0_2 = arith.constant 0 : index
    %c0_3 = arith.constant 0 : index
    %2 = vector.load %arg13[%c17, %c0_2, %c0_3] : memref<18x18x4xf32, #tpu.memory_space<vmem>>, vector<1x18x4xf32>
    tpu.vector_store %arg13[%c17, %c0_2, %c0_3], %0 {strides = array<i32>} : memref<18x18x4xf32, #tpu.memory_space<vmem>>, vector<1x18x4xf32>,
    %cst_4 = arith.constant 0.000000e+00 : f32
    %3 = vector.broadcast %cst_4 : f32 to vector<16x1x4xf32>
    %c1 = arith.constant 1 : index
    %c0_5 = arith.constant 0 : index
    %c0_6 = arith.constant 0 : index
    %4 = vector.load %arg13[%c1, %c0_5, %c0_6] : memref<18x18x4xf32, #tpu.memory_space<vmem>>, vector<16x1x4xf32>
    tpu.vector_store %arg13[%c1, %c0_5, %c0_6], %3 {strides = array<i32>} : memref<18x18x4xf32, #tpu.memory_space<vmem>>, vector<16x1x4xf32>,
    %c1_7 = arith.constant 1 : index
    %c17_8 = arith.constant 17 : index
    %c0_9 = arith.constant 0 : index
    %5 = vector.load %arg13[%c1_7, %c17_8, %c0_9] : memref<18x18x4xf32, #tpu.memory_space<vmem>>, vector<16x1x4xf32>
    tpu.vector_store %arg13[%c1_7, %c17_8, %c0_9], %3 {strides = array<i32>} : memref<18x18x4xf32, #tpu.memory_space<vmem>>, vector<16x1x4xf32>,
    %c0_10 = arith.constant 0 : index
    %c0_11 = arith.constant 0 : index
    %c0_12 = arith.constant 0 : index
    %c0_13 = arith.constant 0 : index
    %6 = vector.load %arg1[%c0_10, %c0_11, %c0_12, %c0_13] : memref<1x16x16x4xf32, #tpu.memory_space<vmem>>, vector<1x16x16x4xf32>
    %7 = vector.shape_cast %6 : vector<1x16x16x4xf32> to vector<16x16x4xf32>
    %c1_14 = arith.constant 1 : index
    %c1_15 = arith.constant 1 : index
    %c0_16 = arith.constant 0 : index
    %8 = vector.load %arg13[%c1_14, %c1_15, %c0_16] : memref<18x18x4xf32, #tpu.memory_space<vmem>>, vector<16x16x4xf32>
    tpu.vector_store %arg13[%c1_14, %c1_15, %c0_16], %7 {strides = array<i32>} : memref<18x18x4xf32, #tpu.memory_space<vmem>>, vector<16x16x4xf32>,
    %c0_17 = arith.constant 0 : index
    %c0_18 = arith.constant 0 : index
    %c0_19 = arith.constant 0 : index
    %9 = vector.load %arg2[%c0_17, %c0_18, %c0_19] : memref<3x3x4xf32, #tpu.memory_space<vmem>>, vector<1x1x4xf32>
    %c0_20 = arith.constant 0 : index
    %c0_21 = arith.constant 0 : index
    %c0_22 = arith.constant 0 : index
    %10 = vector.load %arg13[%c0_20, %c0_21, %c0_22] : memref<18x18x4xf32, #tpu.memory_space<vmem>>, vector<16x16x4xf32>
    %11 = vector.broadcast %9 : vector<1x1x4xf32> to vector<16x16x4xf32>
    %12 = arith.mulf %10, %11 : vector<16x16x4xf32>
    %c0_23 = arith.constant 0 : index
    %c0_24 = arith.constant 0 : index
    %c0_25 = arith.constant 0 : index
    %13 = vector.load %arg14[%c0_23, %c0_24, %c0_25] : memref<16x16x4xf32, #tpu.memory_space<vmem>>, vector<16x16x4xf32>
    tpu.vector_store %arg14[%c0_23, %c0_24, %c0_25], %12 {strides = array<i32>} : memref<16x16x4xf32, #tpu.memory_space<vmem>>, vector<16x16x4xf32>,
    %c0_26 = arith.constant 0 : index
    %c1_27 = arith.constant 1 : index
    %c0_28 = arith.constant 0 : index
    %14 = vector.load %arg2[%c0_26, %c1_27, %c0_28] : memref<3x3x4xf32, #tpu.memory_space<vmem>>, vector<1x1x4xf32>
    %c0_29 = arith.constant 0 : index
    %c1_30 = arith.constant 1 : index
    %c0_31 = arith.constant 0 : index
    %15 = vector.load %arg13[%c0_29, %c1_30, %c0_31] : memref<18x18x4xf32, #tpu.memory_space<vmem>>, vector<16x16x4xf32>
    %16 = vector.broadcast %14 : vector<1x1x4xf32> to vector<16x16x4xf32>
    %17 = arith.mulf %15, %16 : vector<16x16x4xf32>
    %c0_32 = arith.constant 0 : index
    %c0_33 = arith.constant 0 : index
    %c0_34 = arith.constant 0 : index
    %18 = vector.load %arg14[%c0_32, %c0_33, %c0_34] : memref<16x16x4xf32, #tpu.memory_space<vmem>>, vector<16x16x4xf32>
    %19 = arith.addf %18, %17 : vector<16x16x4xf32>
    %c0_35 = arith.constant 0 : index
    %c0_36 = arith.constant 0 : index
    %c0_37 = arith.constant 0 : index
    %20 = vector.load %arg14[%c0_35, %c0_36, %c0_37] : memref<16x16x4xf32, #tpu.memory_space<vmem>>, vector<16x16x4xf32>
    tpu.vector_store %arg14[%c0_35, %c0_36, %c0_37], %19 {strides = array<i32>} : memref<16x16x4xf32, #tpu.memory_space<vmem>>, vector<16x16x4xf32>,
    %c0_38 = arith.constant 0 : index
    %c2 = arith.constant 2 : index
    %c0_39 = arith.constant 0 : index
    %21 = vector.load %arg2[%c0_38, %c2, %c0_39] : memref<3x3x4xf32, #tpu.memory_space<vmem>>, vector<1x1x4xf32>
    %c0_40 = arith.constant 0 : index
    %c2_41 = arith.constant 2 : index
    %c0_42 = arith.constant 0 : index
    %22 = vector.load %arg13[%c0_40, %c2_41, %c0_42] : memref<18x18x4xf32, #tpu.memory_space<vmem>>, vector<16x16x4xf32>
    %23 = vector.broadcast %21 : vector<1x1x4xf32> to vector<16x16x4xf32>
    %24 = arith.mulf %22, %23 : vector<16x16x4xf32>
    %c0_43 = arith.constant 0 : index
    %c0_44 = arith.constant 0 : index
    %c0_45 = arith.constant 0 : index
    %25 = vector.load %arg14[%c0_43, %c0_44, %c0_45] : memref<16x16x4xf32, #tpu.memory_space<vmem>>, vector<16x16x4xf32>
    %26 = arith.addf %25, %24 : vector<16x16x4xf32>
    %c0_46 = arith.constant 0 : index
    %c0_47 = arith.constant 0 : index
    %c0_48 = arith.constant 0 : index
    %27 = vector.load %arg14[%c0_46, %c0_47, %c0_48] : memref<16x16x4xf32, #tpu.memory_space<vmem>>, vector<16x16x4xf32>
    tpu.vector_store %arg14[%c0_46, %c0_47, %c0_48], %26 {strides = array<i32>} : memref<16x16x4xf32, #tpu.memory_space<vmem>>, vector<16x16x4xf32>,
    %c1_49 = arith.constant 1 : index
    %c0_50 = arith.constant 0 : index
    %c0_51 = arith.constant 0 : index
    %28 = vector.load %arg2[%c1_49, %c0_50, %c0_51] : memref<3x3x4xf32, #tpu.memory_space<vmem>>, vector<1x1x4xf32>
    %c1_52 = arith.constant 1 : index
    %c0_53 = arith.constant 0 : index
    %c0_54 = arith.constant 0 : index
    %29 = vector.load %arg13[%c1_52, %c0_53, %c0_54] : memref<18x18x4xf32, #tpu.memory_space<vmem>>, vector<16x16x4xf32>
    %30 = vector.broadcast %28 : vector<1x1x4xf32> to vector<16x16x4xf32>
    %31 = arith.mulf %29, %30 : vector<16x16x4xf32>
    %c0_55 = arith.constant 0 : index
    %c0_56 = arith.constant 0 : index
    %c0_57 = arith.constant 0 : index
    %32 = vector.load %arg14[%c0_55, %c0_56, %c0_57] : memref<16x16x4xf32, #tpu.memory_space<vmem>>, vector<16x16x4xf32>
    %33 = arith.addf %32, %31 : vector<16x16x4xf32>
    %c0_58 = arith.constant 0 : index
    %c0_59 = arith.constant 0 : index
    %c0_60 = arith.constant 0 : index
    %34 = vector.load %arg14[%c0_58, %c0_59, %c0_60] : memref<16x16x4xf32, #tpu.memory_space<vmem>>, vector<16x16x4xf32>
    tpu.vector_store %arg14[%c0_58, %c0_59, %c0_60], %33 {strides = array<i32>} : memref<16x16x4xf32, #tpu.memory_space<vmem>>, vector<16x16x4xf32>,
    %c1_61 = arith.constant 1 : index
    %c1_62 = arith.constant 1 : index
    %c0_63 = arith.constant 0 : index
    %35 = vector.load %arg2[%c1_61, %c1_62, %c0_63] : memref<3x3x4xf32, #tpu.memory_space<vmem>>, vector<1x1x4xf32>
    %c1_64 = arith.constant 1 : index
    %c1_65 = arith.constant 1 : index
    %c0_66 = arith.constant 0 : index
    %36 = vector.load %arg13[%c1_64, %c1_65, %c0_66] : memref<18x18x4xf32, #tpu.memory_space<vmem>>, vector<16x16x4xf32>
    %37 = vector.broadcast %35 : vector<1x1x4xf32> to vector<16x16x4xf32>
    %38 = arith.mulf %36, %37 : vector<16x16x4xf32>
    %c0_67 = arith.constant 0 : index
    %c0_68 = arith.constant 0 : index
    %c0_69 = arith.constant 0 : index
    %39 = vector.load %arg14[%c0_67, %c0_68, %c0_69] : memref<16x16x4xf32, #tpu.memory_space<vmem>>, vector<16x16x4xf32>
    %40 = arith.addf %39, %38 : vector<16x16x4xf32>
    %c0_70 = arith.constant 0 : index
    %c0_71 = arith.constant 0 : index
    %c0_72 = arith.constant 0 : index
    %41 = vector.load %arg14[%c0_70, %c0_71, %c0_72] : memref<16x16x4xf32, #tpu.memory_space<vmem>>, vector<16x16x4xf32>
    tpu.vector_store %arg14[%c0_70, %c0_71, %c0_72], %40 {strides = array<i32>} : memref<16x16x4xf32, #tpu.memory_space<vmem>>, vector<16x16x4xf32>,
    %c1_73 = arith.constant 1 : index
    %c2_74 = arith.constant 2 : index
    %c0_75 = arith.constant 0 : index
    %42 = vector.load %arg2[%c1_73, %c2_74, %c0_75] : memref<3x3x4xf32, #tpu.memory_space<vmem>>, vector<1x1x4xf32>
    %c1_76 = arith.constant 1 : index
    %c2_77 = arith.constant 2 : index
    %c0_78 = arith.constant 0 : index
    %43 = vector.load %arg13[%c1_76, %c2_77, %c0_78] : memref<18x18x4xf32, #tpu.memory_space<vmem>>, vector<16x16x4xf32>
    %44 = vector.broadcast %42 : vector<1x1x4xf32> to vector<16x16x4xf32>
    %45 = arith.mulf %43, %44 : vector<16x16x4xf32>
    %c0_79 = arith.constant 0 : index
    %c0_80 = arith.constant 0 : index
    %c0_81 = arith.constant 0 : index
    %46 = vector.load %arg14[%c0_79, %c0_80, %c0_81] : memref<16x16x4xf32, #tpu.memory_space<vmem>>, vector<16x16x4xf32>
    %47 = arith.addf %46, %45 : vector<16x16x4xf32>
    %c0_82 = arith.constant 0 : index
    %c0_83 = arith.constant 0 : index
    %c0_84 = arith.constant 0 : index
    %48 = vector.load %arg14[%c0_82, %c0_83, %c0_84] : memref<16x16x4xf32, #tpu.memory_space<vmem>>, vector<16x16x4xf32>
    tpu.vector_store %arg14[%c0_82, %c0_83, %c0_84], %47 {strides = array<i32>} : memref<16x16x4xf32, #tpu.memory_space<vmem>>, vector<16x16x4xf32>,
    %c2_85 = arith.constant 2 : index
    %c0_86 = arith.constant 0 : index
    %c0_87 = arith.constant 0 : index
    %49 = vector.load %arg2[%c2_85, %c0_86, %c0_87] : memref<3x3x4xf32, #tpu.memory_space<vmem>>, vector<1x1x4xf32>
    %c2_88 = arith.constant 2 : index
    %c0_89 = arith.constant 0 : index
    %c0_90 = arith.constant 0 : index
    %50 = vector.load %arg13[%c2_88, %c0_89, %c0_90] : memref<18x18x4xf32, #tpu.memory_space<vmem>>, vector<16x16x4xf32>
    %51 = vector.broadcast %49 : vector<1x1x4xf32> to vector<16x16x4xf32>
    %52 = arith.mulf %50, %51 : vector<16x16x4xf32>
    %c0_91 = arith.constant 0 : index
    %c0_92 = arith.constant 0 : index
    %c0_93 = arith.constant 0 : index
    %53 = vector.load %arg14[%c0_91, %c0_92, %c0_93] : memref<16x16x4xf32, #tpu.memory_space<vmem>>, vector<16x16x4xf32>
    %54 = arith.addf %53, %52 : vector<16x16x4xf32>
    %c0_94 = arith.constant 0 : index
    %c0_95 = arith.constant 0 : index
    %c0_96 = arith.constant 0 : index
    %55 = vector.load %arg14[%c0_94, %c0_95, %c0_96] : memref<16x16x4xf32, #tpu.memory_space<vmem>>, vector<16x16x4xf32>
    tpu.vector_store %arg14[%c0_94, %c0_95, %c0_96], %54 {strides = array<i32>} : memref<16x16x4xf32, #tpu.memory_space<vmem>>, vector<16x16x4xf32>,
    %c2_97 = arith.constant 2 : index
    %c1_98 = arith.constant 1 : index
    %c0_99 = arith.constant 0 : index
    %56 = vector.load %arg2[%c2_97, %c1_98, %c0_99] : memref<3x3x4xf32, #tpu.memory_space<vmem>>, vector<1x1x4xf32>
    %c2_100 = arith.constant 2 : index
    %c1_101 = arith.constant 1 : index
    %c0_102 = arith.constant 0 : index
    %57 = vector.load %arg13[%c2_100, %c1_101, %c0_102] : memref<18x18x4xf32, #tpu.memory_space<vmem>>, vector<16x16x4xf32>
    %58 = vector.broadcast %56 : vector<1x1x4xf32> to vector<16x16x4xf32>
    %59 = arith.mulf %57, %58 : vector<16x16x4xf32>
    %c0_103 = arith.constant 0 : index
    %c0_104 = arith.constant 0 : index
    %c0_105 = arith.constant 0 : index
    %60 = vector.load %arg14[%c0_103, %c0_104, %c0_105] : memref<16x16x4xf32, #tpu.memory_space<vmem>>, vector<16x16x4xf32>
    %61 = arith.addf %60, %59 : vector<16x16x4xf32>
    %c0_106 = arith.constant 0 : index
    %c0_107 = arith.constant 0 : index
    %c0_108 = arith.constant 0 : index
    %62 = vector.load %arg14[%c0_106, %c0_107, %c0_108] : memref<16x16x4xf32, #tpu.memory_space<vmem>>, vector<16x16x4xf32>
    tpu.vector_store %arg14[%c0_106, %c0_107, %c0_108], %61 {strides = array<i32>} : memref<16x16x4xf32, #tpu.memory_space<vmem>>, vector<16x16x4xf32>,
    %c2_109 = arith.constant 2 : index
    %c2_110 = arith.constant 2 : index
    %c0_111 = arith.constant 0 : index
    %63 = vector.load %arg2[%c2_109, %c2_110, %c0_111] : memref<3x3x4xf32, #tpu.memory_space<vmem>>, vector<1x1x4xf32>
    %c2_112 = arith.constant 2 : index
    %c2_113 = arith.constant 2 : index
    %c0_114 = arith.constant 0 : index
    %64 = vector.load %arg13[%c2_112, %c2_113, %c0_114] : memref<18x18x4xf32, #tpu.memory_space<vmem>>, vector<16x16x4xf32>
    %65 = vector.broadcast %63 : vector<1x1x4xf32> to vector<16x16x4xf32>
    %66 = arith.mulf %64, %65 : vector<16x16x4xf32>
    %c0_115 = arith.constant 0 : index
    %c0_116 = arith.constant 0 : index
    %c0_117 = arith.constant 0 : index
    %67 = vector.load %arg14[%c0_115, %c0_116, %c0_117] : memref<16x16x4xf32, #tpu.memory_space<vmem>>, vector<16x16x4xf32>
    %68 = arith.addf %67, %66 : vector<16x16x4xf32>
    %c0_118 = arith.constant 0 : index
    %c0_119 = arith.constant 0 : index
    %c0_120 = arith.constant 0 : index
    %69 = vector.load %arg14[%c0_118, %c0_119, %c0_120] : memref<16x16x4xf32, #tpu.memory_space<vmem>>, vector<16x16x4xf32>
    tpu.vector_store %arg14[%c0_118, %c0_119, %c0_120], %68 {strides = array<i32>} : memref<16x16x4xf32, #tpu.memory_space<vmem>>, vector<16x16x4xf32>,
    %c0_121 = arith.constant 0 : index
    %c0_122 = arith.constant 0 : index
    %c0_123 = arith.constant 0 : index
    %70 = vector.load %arg14[%c0_121, %c0_122, %c0_123] : memref<16x16x4xf32, #tpu.memory_space<vmem>>, vector<16x16x4xf32>
    %c0_124 = arith.constant 0 : index
    %c0_125 = arith.constant 0 : index
    %71 = vector.load %arg3[%c0_124, %c0_125] : memref<1x4xf32, #tpu.memory_space<vmem>>, vector<1x4xf32>
    %72 = vector.shape_cast %71 : vector<1x4xf32> to vector<1x1x4xf32>
    %73 = vector.broadcast %72 : vector<1x1x4xf32> to vector<16x16x4xf32>
    %74 = arith.mulf %70, %73 : vector<16x16x4xf32>
    %c0_126 = arith.constant 0 : index
    %c0_127 = arith.constant 0 : index
    %75 = vector.load %arg4[%c0_126, %c0_127] : memref<1x4xf32, #tpu.memory_space<vmem>>, vector<1x4xf32>
    %76 = vector.shape_cast %75 : vector<1x4xf32> to vector<1x1x4xf32>
    %77 = vector.broadcast %76 : vector<1x1x4xf32> to vector<16x16x4xf32>
    %78 = arith.addf %74, %77 : vector<16x16x4xf32>
    %cst_128 = arith.constant 0.000000e+00 : f32
    %79 = vector.broadcast %cst_128 : f32 to vector<16x16x4xf32>
    %80 = arith.maximumf %78, %79 : vector<16x16x4xf32>
    %c0_129 = arith.constant 0 : index
    %c0_130 = arith.constant 0 : index
    %c0_131 = arith.constant 0 : index
    %81 = vector.load %arg14[%c0_129, %c0_130, %c0_131] : memref<16x16x4xf32, #tpu.memory_space<vmem>>, vector<16x16x4xf32>
    tpu.vector_store %arg14[%c0_129, %c0_130, %c0_131], %80 {strides = array<i32>} : memref<16x16x4xf32, #tpu.memory_space<vmem>>, vector<16x16x4xf32>,
    %c0_132 = arith.constant 0 : index
    %c0_133 = arith.constant 0 : index
    %c0_134 = arith.constant 0 : index
    %82 = vector.load %arg14[%c0_132, %c0_133, %c0_134] : memref<16x16x4xf32, #tpu.memory_space<vmem>>, vector<16x16x4xf32>
    %cst_135 = arith.constant dense<0.000000e+00> : vector<16x4xf32>
    %83 = vector.multi_reduction <add>, %82, %cst_135 [0] : vector<16x16x4xf32> to vector<16x4xf32>
    %cst_136 = arith.constant dense<0.000000e+00> : vector<4xf32>
    %84 = vector.multi_reduction <add>, %83, %cst_136 [0] : vector<16x4xf32> to vector<4xf32>
    %85 = vector.shape_cast %84 : vector<4xf32> to vector<1x4xf32>
    %cst_137 = arith.constant 3.906250e-03 : f32
    %86 = vector.broadcast %cst_137 : f32 to vector<1x4xf32>
    %87 = arith.mulf %85, %86 : vector<1x4xf32>
    %c0_138 = arith.constant 0 : index
    %c0_139 = arith.constant 0 : index
    %88 = vector.load %arg5[%c0_138, %c0_139] : memref<4x2xf32, #tpu.memory_space<vmem>>, vector<4x2xf32>
    %cst_140 = arith.constant dense<0.000000e+00> : vector<1x2xf32>
    %89 = tpu.matmul %87, %88, %cst_140 {dimension_numbers = #tpu.dot_dimension_numbers<[1], [0], [0], [1], [0, 0, 1, 1], [], []>} : vector<1x4xf32>, vector<4x2xf32>, vector<1x2xf32> -> vector<1x2xf32>
    %c0_141 = arith.constant 0 : index
    %c0_142 = arith.constant 0 : index
    %90 = vector.load %arg6[%c0_141, %c0_142] : memref<1x2xf32, #tpu.memory_space<vmem>>, vector<1x2xf32>
    %91 = arith.addf %89, %90 : vector<1x2xf32>
    %cst_143 = arith.constant 0.000000e+00 : f32
    %92 = vector.broadcast %cst_143 : f32 to vector<1x2xf32>
    %93 = arith.maximumf %91, %92 : vector<1x2xf32>
    %c0_144 = arith.constant 0 : index
    %c0_145 = arith.constant 0 : index
    %94 = vector.load %arg7[%c0_144, %c0_145] : memref<2x4xf32, #tpu.memory_space<vmem>>, vector<2x4xf32>
    %cst_146 = arith.constant dense<0.000000e+00> : vector<1x4xf32>
    %95 = tpu.matmul %93, %94, %cst_146 {dimension_numbers = #tpu.dot_dimension_numbers<[1], [0], [0], [1], [0, 0, 1, 1], [], []>} : vector<1x2xf32>, vector<2x4xf32>, vector<1x4xf32> -> vector<1x4xf32>
    %c0_147 = arith.constant 0 : index
    %c0_148 = arith.constant 0 : index
    %96 = vector.load %arg8[%c0_147, %c0_148] : memref<1x4xf32, #tpu.memory_space<vmem>>, vector<1x4xf32>
    %97 = arith.addf %95, %96 : vector<1x4xf32>
    %98 = arith.negf %97 : vector<1x4xf32>
    %99 = math.exp %98 : vector<1x4xf32>
    %cst_149 = arith.constant 1.000000e+00 : f32
    %100 = vector.broadcast %cst_149 : f32 to vector<1x4xf32>
    %101 = arith.addf %100, %99 : vector<1x4xf32>
    %102 = arith.divf %100, %101 : vector<1x4xf32>
    %c0_i32 = arith.constant 0 : i32
    %c8_i32 = arith.constant 8 : i32
    %103 = arith.muli %c0_i32, %c8_i32 : i32
    %104 = tpu.assume_multiple %103, 8 : i32
    %105 = arith.index_cast %104 : i32 to index
    %c0_150 = arith.constant 0 : index
    %c0_151 = arith.constant 0 : index
    %106 = vector.load %arg14[%105, %c0_150, %c0_151] : memref<16x16x4xf32, #tpu.memory_space<vmem>>, vector<8x16x4xf32>
    %107 = vector.shape_cast %102 : vector<1x4xf32> to vector<1x1x4xf32>
    %108 = vector.broadcast %107 : vector<1x1x4xf32> to vector<8x16x4xf32>
    %109 = arith.mulf %106, %108 : vector<8x16x4xf32>
    %110 = vector.shape_cast %109 : vector<8x16x4xf32> to vector<128x4xf32>
    %c0_152 = arith.constant 0 : index
    %c0_153 = arith.constant 0 : index
    %111 = vector.load %arg9[%c0_152, %c0_153] : memref<4x4xf32, #tpu.memory_space<vmem>>, vector<4x4xf32>
    %cst_154 = arith.constant dense<0.000000e+00> : vector<128x4xf32>
    %112 = tpu.matmul %110, %111, %cst_154 {dimension_numbers = #tpu.dot_dimension_numbers<[1], [0], [0], [1], [0, 0, 1, 1], [], []>} : vector<128x4xf32>, vector<4x4xf32>, vector<128x4xf32> -> vector<128x4xf32>
    %c0_155 = arith.constant 0 : index
    %c0_156 = arith.constant 0 : index
    %113 = vector.load %arg10[%c0_155, %c0_156] : memref<1x4xf32, #tpu.memory_space<vmem>>, vector<1x4xf32>
    %114 = vector.broadcast %113 : vector<1x4xf32> to vector<128x4xf32>
    %115 = arith.mulf %112, %114 : vector<128x4xf32>
    %c0_157 = arith.constant 0 : index
    %c0_158 = arith.constant 0 : index
    %116 = vector.load %arg11[%c0_157, %c0_158] : memref<1x4xf32, #tpu.memory_space<vmem>>, vector<1x4xf32>
    %117 = vector.broadcast %116 : vector<1x4xf32> to vector<128x4xf32>
    %118 = arith.addf %115, %117 : vector<128x4xf32>
    %cst_159 = arith.constant 0.000000e+00 : f32
    %119 = vector.broadcast %cst_159 : f32 to vector<128x4xf32>
    %120 = arith.maximumf %118, %119 : vector<128x4xf32>
    %c0_160 = arith.constant 0 : index
    %121 = arith.index_cast %104 : i32 to index
    %c0_161 = arith.constant 0 : index
    %c0_162 = arith.constant 0 : index
    %122 = vector.load %arg1[%c0_160, %121, %c0_161, %c0_162] : memref<1x16x16x4xf32, #tpu.memory_space<vmem>>, vector<1x8x16x4xf32>
    %123 = vector.shape_cast %122 : vector<1x8x16x4xf32> to vector<8x16x4xf32>
    %124 = vector.shape_cast %123 : vector<8x16x4xf32> to vector<128x4xf32>
    %125 = arith.addf %120, %124 : vector<128x4xf32>
    %126 = vector.shape_cast %125 : vector<128x4xf32> to vector<8x16x4xf32>
    %c0_163 = arith.constant 0 : index
    %127 = arith.index_cast %104 : i32 to index
    %c0_164 = arith.constant 0 : index
    %c0_165 = arith.constant 0 : index
    %128 = vector.load %arg12[%c0_163, %127, %c0_164, %c0_165] : memref<1x16x16x4xf32, #tpu.memory_space<vmem>>, vector<1x8x16x4xf32>
    %129 = vector.shape_cast %128 : vector<1x8x16x4xf32> to vector<8x16x4xf32>
    %130 = vector.shape_cast %126 : vector<8x16x4xf32> to vector<1x8x16x4xf32>
    tpu.vector_store %arg12[%c0_163, %127, %c0_164, %c0_165], %130 {strides = array<i32>} : memref<1x16x16x4xf32, #tpu.memory_space<vmem>>, vector<1x8x16x4xf32>,
    %c1_i32 = arith.constant 1 : i32
    %c8_i32_166 = arith.constant 8 : i32
    %131 = arith.muli %c1_i32, %c8_i32_166 : i32
    %132 = tpu.assume_multiple %131, 8 : i32
    %133 = arith.index_cast %132 : i32 to index
    %c0_167 = arith.constant 0 : index
    %c0_168 = arith.constant 0 : index
    %134 = vector.load %arg14[%133, %c0_167, %c0_168] : memref<16x16x4xf32, #tpu.memory_space<vmem>>, vector<8x16x4xf32>
    %135 = vector.shape_cast %102 : vector<1x4xf32> to vector<1x1x4xf32>
    %136 = vector.broadcast %135 : vector<1x1x4xf32> to vector<8x16x4xf32>
    %137 = arith.mulf %134, %136 : vector<8x16x4xf32>
    %138 = vector.shape_cast %137 : vector<8x16x4xf32> to vector<128x4xf32>
    %c0_169 = arith.constant 0 : index
    %c0_170 = arith.constant 0 : index
    %139 = vector.load %arg9[%c0_169, %c0_170] : memref<4x4xf32, #tpu.memory_space<vmem>>, vector<4x4xf32>
    %cst_171 = arith.constant dense<0.000000e+00> : vector<128x4xf32>
    %140 = tpu.matmul %138, %139, %cst_171 {dimension_numbers = #tpu.dot_dimension_numbers<[1], [0], [0], [1], [0, 0, 1, 1], [], []>} : vector<128x4xf32>, vector<4x4xf32>, vector<128x4xf32> -> vector<128x4xf32>
    %c0_172 = arith.constant 0 : index
    %c0_173 = arith.constant 0 : index
    %141 = vector.load %arg10[%c0_172, %c0_173] : memref<1x4xf32, #tpu.memory_space<vmem>>, vector<1x4xf32>
    %142 = vector.broadcast %141 : vector<1x4xf32> to vector<128x4xf32>
    %143 = arith.mulf %140, %142 : vector<128x4xf32>
    %c0_174 = arith.constant 0 : index
    %c0_175 = arith.constant 0 : index
    %144 = vector.load %arg11[%c0_174, %c0_175] : memref<1x4xf32, #tpu.memory_space<vmem>>, vector<1x4xf32>
    %145 = vector.broadcast %144 : vector<1x4xf32> to vector<128x4xf32>
    %146 = arith.addf %143, %145 : vector<128x4xf32>
    %cst_176 = arith.constant 0.000000e+00 : f32
    %147 = vector.broadcast %cst_176 : f32 to vector<128x4xf32>
    %148 = arith.maximumf %146, %147 : vector<128x4xf32>
    %c0_177 = arith.constant 0 : index
    %149 = arith.index_cast %132 : i32 to index
    %c0_178 = arith.constant 0 : index
    %c0_179 = arith.constant 0 : index
    %150 = vector.load %arg1[%c0_177, %149, %c0_178, %c0_179] : memref<1x16x16x4xf32, #tpu.memory_space<vmem>>, vector<1x8x16x4xf32>
    %151 = vector.shape_cast %150 : vector<1x8x16x4xf32> to vector<8x16x4xf32>
    %152 = vector.shape_cast %151 : vector<8x16x4xf32> to vector<128x4xf32>
    %153 = arith.addf %148, %152 : vector<128x4xf32>
    %154 = vector.shape_cast %153 : vector<128x4xf32> to vector<8x16x4xf32>
    %c0_180 = arith.constant 0 : index
    %155 = arith.index_cast %132 : i32 to index
    %c0_181 = arith.constant 0 : index
    %c0_182 = arith.constant 0 : index
    %156 = vector.load %arg12[%c0_180, %155, %c0_181, %c0_182] : memref<1x16x16x4xf32, #tpu.memory_space<vmem>>, vector<1x8x16x4xf32>
    %157 = vector.shape_cast %156 : vector<1x8x16x4xf32> to vector<8x16x4xf32>
    %158 = vector.shape_cast %154 : vector<8x16x4xf32> to vector<1x8x16x4xf32>
    tpu.vector_store %arg12[%c0_180, %155, %c0_181, %c0_182], %158 {strides = array<i32>} : memref<1x16x16x4xf32, #tpu.memory_space<vmem>>, vector<1x8x16x4xf32>,
    %c2_i32 = arith.constant 2 : i32
    return
  }
  func.func @transform_0(%arg0: i32) -> (i32, i32, i32, i32) {
    %c0_i32 = arith.constant 0 : i32
    %c0_i32_0 = arith.constant 0 : i32
    %c0_i32_1 = arith.constant 0 : i32
    %c0_i32_2 = arith.constant 0 : i32
    return %arg0, %c0_i32, %c0_i32_0, %c0_i32_1 : i32, i32, i32, i32
  }
  func.func @transform_1(%arg0: i32) -> (i32, i32, i32) {
    %c0_i32 = arith.constant 0 : i32
    %c0_i32_0 = arith.constant 0 : i32
    %c0_i32_1 = arith.constant 0 : i32
    %c0_i32_2 = arith.constant 0 : i32
    return %c0_i32, %c0_i32_0, %c0_i32_1 : i32, i32, i32
  }
  func.func @transform_2(%arg0: i32) -> (i32, i32) {
    %c0_i32 = arith.constant 0 : i32
    %c0_i32_0 = arith.constant 0 : i32
    %c0_i32_1 = arith.constant 0 : i32
    return %c0_i32, %c0_i32_0 : i32, i32
  }
  func.func @transform_3(%arg0: i32) -> (i32, i32) {
    %c0_i32 = arith.constant 0 : i32
    %c0_i32_0 = arith.constant 0 : i32
    %c0_i32_1 = arith.constant 0 : i32
    return %c0_i32, %c0_i32_0 : i32, i32
  }
  func.func @transform_4(%arg0: i32) -> (i32, i32) {
    %c0_i32 = arith.constant 0 : i32
    %c0_i32_0 = arith.constant 0 : i32
    %c0_i32_1 = arith.constant 0 : i32
    return %c0_i32, %c0_i32_0 : i32, i32
  }
  func.func @transform_5(%arg0: i32) -> (i32, i32) {
    %c0_i32 = arith.constant 0 : i32
    %c0_i32_0 = arith.constant 0 : i32
    %c0_i32_1 = arith.constant 0 : i32
    return %c0_i32, %c0_i32_0 : i32, i32
  }
  func.func @transform_6(%arg0: i32) -> (i32, i32) {
    %c0_i32 = arith.constant 0 : i32
    %c0_i32_0 = arith.constant 0 : i32
    %c0_i32_1 = arith.constant 0 : i32
    return %c0_i32, %c0_i32_0 : i32, i32
  }
  func.func @transform_7(%arg0: i32) -> (i32, i32) {
    %c0_i32 = arith.constant 0 : i32
    %c0_i32_0 = arith.constant 0 : i32
    %c0_i32_1 = arith.constant 0 : i32
    return %c0_i32, %c0_i32_0 : i32, i32
  }
  func.func @transform_8(%arg0: i32) -> (i32, i32) {
    %c0_i32 = arith.constant 0 : i32
    %c0_i32_0 = arith.constant 0 : i32
    %c0_i32_1 = arith.constant 0 : i32
    return %c0_i32, %c0_i32_0 : i32, i32
  }
  func.func @transform_9(%arg0: i32) -> (i32, i32) {
    %c0_i32 = arith.constant 0 : i32
    %c0_i32_0 = arith.constant 0 : i32
    %c0_i32_1 = arith.constant 0 : i32
    return %c0_i32, %c0_i32_0 : i32, i32
  }
  func.func @transform_10(%arg0: i32) -> (i32, i32) {
    %c0_i32 = arith.constant 0 : i32
    %c0_i32_0 = arith.constant 0 : i32
    %c0_i32_1 = arith.constant 0 : i32
    return %c0_i32, %c0_i32_0 : i32, i32
  }
  func.func @transform_11(%arg0: i32) -> (i32, i32, i32, i32) {
    %c0_i32 = arith.constant 0 : i32
    %c0_i32_0 = arith.constant 0 : i32
    %c0_i32_1 = arith.constant 0 : i32
    %c0_i32_2 = arith.constant 0 : i32
    return %arg0, %c0_i32, %c0_i32_0, %c0_i32_1 : i32, i32, i32, i32
  }
}

</mosaic_0001>

<llo_original>
// kernel: tpu_custom_call.1
$region0: #{tpu_custom_call.1}
  #allocation0 [shape = 'u32[]', space=smem, size = 0x4, offset = 0x4, fixed_abs, tag = 'smem constant byte address 0x4 - core index']
  #allocation1 [shape = 'u32[144,128]{1,0:T(1,128)}', space=vmem, size = 0x12000, scoped, tag = 'internal scratch']
  #allocation2 [shape = 'f32[18,18,4]{2,1,0:T(8,128)}', space=vmem, size = 0x36000, scoped, tag = 'scratch operand']
  #allocation3 [shape = 'f32[16,16,4]{2,1,0:T(8,128)}', space=vmem, size = 0x20000, scoped, tag = 'scratch operand']
  %s0 = inlined_call_operand.vmem [shape: f32[2,16,16,4], index: 0, kind: input, shape index: {}]
  %s1 = inlined_call_operand.vmem [shape: f32[3,3,4], index: 1, kind: input, shape index: {}]
  %s2 = inlined_call_operand.vmem [shape: f32[1,4], index: 2, kind: input, shape index: {}]
  %s3 = inlined_call_operand.vmem [shape: f32[1,4], index: 3, kind: input, shape index: {}]
  %s4 = inlined_call_operand.vmem [shape: f32[4,2], index: 4, kind: input, shape index: {}]
  %s5 = inlined_call_operand.vmem [shape: f32[1,2], index: 5, kind: input, shape index: {}]
  %s6 = inlined_call_operand.vmem [shape: f32[2,4], index: 6, kind: input, shape index: {}]
  %s7 = inlined_call_operand.vmem [shape: f32[1,4], index: 7, kind: input, shape index: {}]
  %s8 = inlined_call_operand.vmem [shape: f32[4,4], index: 8, kind: input, shape index: {}]
  %s9 = inlined_call_operand.vmem [shape: f32[1,4], index: 9, kind: input, shape index: {}]
  %s10 = inlined_call_operand.vmem [shape: f32[1,4], index: 10, kind: input, shape index: {}]
  %s11 = inlined_call_operand.vmem [shape: f32[2,16,16,4], index: 11, kind: output, shape index: {}]
  %s12 = sld [smem:[#allocation0]]
  $region77: #{tpu_custom_call.1} parent=0
    _
  %s14 = ssub.s32 1, %s12
  %s15 = scalar_select 0, %s14, %s12
  loop: start=0, step=1, limit=4
  $region2: #{tpu_custom_call.1} parent=0 // loop_pre_header
    _
  $region3: #{tpu_custom_call.1} parent=0 // loop_header
    %s17 = sphi 0, %s21
    %p18 = scmp.ge.s32.totalorder %s17, 4
    %s27 = sphi 0, %s29
    %s30 = sphi 0, %s27
    %s31 = sphi 0, %s30
    %s47 = sphi 0, %s31
    %s51 = sphi 0, %s51
    %s53 = sphi 0, %s51
    %s54 = sphi 0, %s53
    %s68 = sphi 0, %s54
    %s72 = sphi 0, %s72
    %s74 = sphi 0, %s72
    %s75 = sphi 0, %s74
    %s89 = sphi 0, %s75
    %s93 = sphi 0, %s93
    %s95 = sphi 0, %s93
    %s96 = sphi 0, %s95
    %s110 = sphi 0, %s96
    %s114 = sphi 0, %s114
    %s116 = sphi 0, %s114
    %s117 = sphi 0, %s116
    %s131 = sphi 0, %s117
    %s135 = sphi 0, %s135
    %s137 = sphi 0, %s135
    %s138 = sphi 0, %s137
    %s152 = sphi 0, %s138
    %s156 = sphi 0, %s156
    %s158 = sphi 0, %s156
    %s159 = sphi 0, %s158
    %s173 = sphi 0, %s159
    %s177 = sphi 0, %s177
    %s179 = sphi 0, %s177
    %s180 = sphi 0, %s179
    %s194 = sphi 0, %s180
    %s198 = sphi 0, %s198
    %s200 = sphi 0, %s198
    %s201 = sphi 0, %s200
    %s215 = sphi 0, %s201
    %s219 = sphi 0, %s219
    %s221 = sphi 0, %s219
    %s222 = sphi 0, %s221
    %s236 = sphi 0, %s222
    %s240 = sphi 0, %s240
    %s242 = sphi 0, %s240
    %s243 = sphi 0, %s242
    %s257 = sphi 0, %s243
    %s263 = sphi 0, %s265
    %s266 = sphi 0, %s263
    %s267 = sphi 0, %s266
    %s283 = sphi 0, %s267
  $region4: #{tpu_custom_call.1} parent=0 // loop_header_branch
    %20 = sbr.rel (%p18) target = $region8
  $region5: #{tpu_custom_call.1} parent=0 // loop_body
    %s22 = ssub.s32 %s17, 1
    %s23 = ssub.s32 %s17, 2
    %s24 = sadd.s32 %s17, 1
    %s25 = ssub.s32 %s17, %s24
    %p26 = scmp.eq.s32.totalorder %s25, 0
    %s28 = sadd.s32 %s27, 1
    %s29 = scalar_select %p26, %s27, %s28
    %p32 = pneg %p26
    %p33 = scmp.eq.s32.totalorder %s17, 1
    %p34 = por %p32, %p33
    %p35 = scmp.ne.s32.totalorder %s27, %s30
    %p36 = scmp.eq.s32.totalorder %s17, 0
    %p37 = por %p35, %p36
    %p38 = scmp.ne.s32.totalorder %s27, %s30
    %p39 = scmp.eq.s32.totalorder %s22, 1
    %p40 = por %p38, %p39
    %p41 = scmp.ne.s32.totalorder %s30, %s31
    %p42 = scmp.eq.s32.totalorder %s22, 0
    %p43 = por %p41, %p42
    %p44 = scmp.ne.s32.totalorder %s30, %s31
    %p45 = scmp.eq.s32.totalorder %s23, 1
    %p46 = por %p44, %p45
    %p48 = scmp.ne.s32.totalorder %s31, %s47
    %p49 = scmp.eq.s32.totalorder %s23, 0
    %p50 = por %p48, %p49
    %s52 = sadd.s32 %s51, 1
    %p55 = scmp.eq.s32.totalorder %s17, 1
    %p56 = scmp.ne.s32.totalorder %s51, %s53
    %p57 = scmp.eq.s32.totalorder %s17, 0
    %p58 = por %p56, %p57
    %p59 = scmp.ne.s32.totalorder %s51, %s53
    %p60 = scmp.eq.s32.totalorder %s22, 1
    %p61 = por %p59, %p60
    %p62 = scmp.ne.s32.totalorder %s53, %s54
    %p63 = scmp.eq.s32.totalorder %s22, 0
    %p64 = por %p62, %p63
    %p65 = scmp.ne.s32.totalorder %s53, %s54
    %p66 = scmp.eq.s32.totalorder %s23, 1
    %p67 = por %p65, %p66
    %p69 = scmp.ne.s32.totalorder %s54, %s68
    %p70 = scmp.eq.s32.totalorder %s23, 0
    %p71 = por %p69, %p70
    %s73 = sadd.s32 %s72, 1
    %p76 = scmp.eq.s32.totalorder %s17, 1
    %p77 = scmp.ne.s32.totalorder %s72, %s74
    %p78 = scmp.eq.s32.totalorder %s17, 0
    %p79 = por %p77, %p78
    %p80 = scmp.ne.s32.totalorder %s72, %s74
    %p81 = scmp.eq.s32.totalorder %s22, 1
    %p82 = por %p80, %p81
    %p83 = scmp.ne.s32.totalorder %s74, %s75
    %p84 = scmp.eq.s32.totalorder %s22, 0
    %p85 = por %p83, %p84
    %p86 = scmp.ne.s32.totalorder %s74, %s75
    %p87 = scmp.eq.s32.totalorder %s23, 1
    %p88 = por %p86, %p87
    %p90 = scmp.ne.s32.totalorder %s75, %s89
    %p91 = scmp.eq.s32.totalorder %s23, 0
    %p92 = por %p90, %p91
    %s94 = sadd.s32 %s93, 1
    %p97 = scmp.eq.s32.totalorder %s17, 1
    %p98 = scmp.ne.s32.totalorder %s93, %s95
    %p99 = scmp.eq.s32.totalorder %s17, 0
    %p100 = por %p98, %p99
    %p101 = scmp.ne.s32.totalorder %s93, %s95
    %p102 = scmp.eq.s32.totalorder %s22, 1
    %p103 = por %p101, %p102
    %p104 = scmp.ne.s32.totalorder %s95, %s96
    %p105 = scmp.eq.s32.totalorder %s22, 0
    %p106 = por %p104, %p105
    %p107 = scmp.ne.s32.totalorder %s95, %s96
    %p108 = scmp.eq.s32.totalorder %s23, 1
    %p109 = por %p107, %p108
    %p111 = scmp.ne.s32.totalorder %s96, %s110
    %p112 = scmp.eq.s32.totalorder %s23, 0
    %p113 = por %p111, %p112
    %s115 = sadd.s32 %s114, 1
    %p118 = scmp.eq.s32.totalorder %s17, 1
    %p119 = scmp.ne.s32.totalorder %s114, %s116
    %p120 = scmp.eq.s32.totalorder %s17, 0
    %p121 = por %p119, %p120
    %p122 = scmp.ne.s32.totalorder %s114, %s116
    %p123 = scmp.eq.s32.totalorder %s22, 1
    %p124 = por %p122, %p123
    %p125 = scmp.ne.s32.totalorder %s116, %s117
    %p126 = scmp.eq.s32.totalorder %s22, 0
    %p127 = por %p125, %p126
    %p128 = scmp.ne.s32.totalorder %s116, %s117
    %p129 = scmp.eq.s32.totalorder %s23, 1
    %p130 = por %p128, %p129
    %p132 = scmp.ne.s32.totalorder %s117, %s131
    %p133 = scmp.eq.s32.totalorder %s23, 0
    %p134 = por %p132, %p133
    %s136 = sadd.s32 %s135, 1
    %p139 = scmp.eq.s32.totalorder %s17, 1
    %p140 = scmp.ne.s32.totalorder %s135, %s137
    %p141 = scmp.eq.s32.totalorder %s17, 0
    %p142 = por %p140, %p141
    %p143 = scmp.ne.s32.totalorder %s135, %s137
    %p144 = scmp.eq.s32.totalorder %s22, 1
    %p145 = por %p143, %p144
    %p146 = scmp.ne.s32.totalorder %s137, %s138
    %p147 = scmp.eq.s32.totalorder %s22, 0
    %p148 = por %p146, %p147
    %p149 = scmp.ne.s32.totalorder %s137, %s138
    %p150 = scmp.eq.s32.totalorder %s23, 1
    %p151 = por %p149, %p150
    %p153 = scmp.ne.s32.totalorder %s138, %s152
    %p154 = scmp.eq.s32.totalorder %s23, 0
    %p155 = por %p153, %p154
    %s157 = sadd.s32 %s156, 1
    %p160 = scmp.eq.s32.totalorder %s17, 1
    %p161 = scmp.ne.s32.totalorder %s156, %s158
    %p162 = scmp.eq.s32.totalorder %s17, 0
    %p163 = por %p161, %p162
    %p164 = scmp.ne.s32.totalorder %s156, %s158
    %p165 = scmp.eq.s32.totalorder %s22, 1
    %p166 = por %p164, %p165
    %p167 = scmp.ne.s32.totalorder %s158, %s159
    %p168 = scmp.eq.s32.totalorder %s22, 0
    %p169 = por %p167, %p168
    %p170 = scmp.ne.s32.totalorder %s158, %s159
    %p171 = scmp.eq.s32.totalorder %s23, 1
    %p172 = por %p170, %p171
    %p174 = scmp.ne.s32.totalorder %s159, %s173
    %p175 = scmp.eq.s32.totalorder %s23, 0
    %p176 = por %p174, %p175
    %s178 = sadd.s32 %s177, 1
    %p181 = scmp.eq.s32.totalorder %s17, 1
    %p182 = scmp.ne.s32.totalorder %s177, %s179
    %p183 = scmp.eq.s32.totalorder %s17, 0
    %p184 = por %p182, %p183
    %p185 = scmp.ne.s32.totalorder %s177, %s179
    %p186 = scmp.eq.s32.totalorder %s22, 1
    %p187 = por %p185, %p186
    %p188 = scmp.ne.s32.totalorder %s179, %s180
    %p189 = scmp.eq.s32.totalorder %s22, 0
    %p190 = por %p188, %p189
    %p191 = scmp.ne.s32.totalorder %s179, %s180
    %p192 = scmp.eq.s32.totalorder %s23, 1
    %p193 = por %p191, %p192
    %p195 = scmp.ne.s32.totalorder %s180, %s194
    %p196 = scmp.eq.s32.totalorder %s23, 0
    %p197 = por %p195, %p196
    %s199 = sadd.s32 %s198, 1
    %p202 = scmp.eq.s32.totalorder %s17, 1
    %p203 = scmp.ne.s32.totalorder %s198, %s200
    %p204 = scmp.eq.s32.totalorder %s17, 0
    %p205 = por %p203, %p204
    %p206 = scmp.ne.s32.totalorder %s198, %s200
    %p207 = scmp.eq.s32.totalorder %s22, 1
    %p208 = por %p206, %p207
    %p209 = scmp.ne.s32.totalorder %s200, %s201
    %p210 = scmp.eq.s32.totalorder %s22, 0
    %p211 = por %p209, %p210
    %p212 = scmp.ne.s32.totalorder %s200, %s201
    %p213 = scmp.eq.s32.totalorder %s23, 1
    %p214 = por %p212, %p213
    %p216 = scmp.ne.s32.totalorder %s201, %s215
    %p217 = scmp.eq.s32.totalorder %s23, 0
    %p218 = por %p216, %p217
    %s220 = sadd.s32 %s219, 1
    %p223 = scmp.eq.s32.totalorder %s17, 1
    %p224 = scmp.ne.s32.totalorder %s219, %s221
    %p225 = scmp.eq.s32.totalorder %s17, 0
    %p226 = por %p224, %p225
    %p227 = scmp.ne.s32.totalorder %s219, %s221
    %p228 = scmp.eq.s32.totalorder %s22, 1
    %p229 = por %p227, %p228
    %p230 = scmp.ne.s32.totalorder %s221, %s222
    %p231 = scmp.eq.s32.totalorder %s22, 0
    %p232 = por %p230, %p231
    %p233 = scmp.ne.s32.totalorder %s221, %s222
    %p234 = scmp.eq.s32.totalorder %s23, 1
    %p235 = por %p233, %p234
    %p237 = scmp.ne.s32.totalorder %s222, %s236
    %p238 = scmp.eq.s32.totalorder %s23, 0
    %p239 = por %p237, %p238
    %s241 = sadd.s32 %s240, 1
    %p244 = scmp.eq.s32.totalorder %s17, 1
    %p245 = scmp.ne.s32.totalorder %s240, %s242
    %p246 = scmp.eq.s32.totalorder %s17, 0
    %p247 = por %p245, %p246
    %p248 = scmp.ne.s32.totalorder %s240, %s242
    %p249 = scmp.eq.s32.totalorder %s22, 1
    %p250 = por %p248, %p249
    %p251 = scmp.ne.s32.totalorder %s242, %s243
    %p252 = scmp.eq.s32.totalorder %s22, 0
    %p253 = por %p251, %p252
    %p254 = scmp.ne.s32.totalorder %s242, %s243
    %p255 = scmp.eq.s32.totalorder %s23, 1
    %p256 = por %p254, %p255
    %p258 = scmp.ne.s32.totalorder %s243, %s257
    %p259 = scmp.eq.s32.totalorder %s23, 0
    %p260 = por %p258, %p259
    %s261 = ssub.s32 %s17, %s24
    %p262 = scmp.eq.s32.totalorder %s261, 0
    %s264 = sadd.s32 %s263, 1
    %s265 = scalar_select %p262, %s263, %s264
    %p268 = pneg %p262
    %p269 = scmp.eq.s32.totalorder %s17, 1
    %p270 = por %p268, %p269
    %p271 = scmp.ne.s32.totalorder %s263, %s266
    %p272 = scmp.eq.s32.totalorder %s17, 0
    %p273 = por %p271, %p272
    %p274 = scmp.ne.s32.totalorder %s263, %s266
    %p275 = scmp.eq.s32.totalorder %s22, 1
    %p276 = por %p274, %p275
    %p277 = scmp.ne.s32.totalorder %s266, %s267
    %p278 = scmp.eq.s32.totalorder %s22, 0
    %p279 = por %p277, %p278
    %p280 = scmp.ne.s32.totalorder %s266, %s267
    %p281 = scmp.eq.s32.totalorder %s23, 1
    %p282 = por %p280, %p281
    %p284 = scmp.ne.s32.totalorder %s267, %s283
    %p285 = scmp.eq.s32.totalorder %s23, 0
    %p286 = por %p284, %p285
    %p287 = scmp.le.s32.totalorder 1, %s17
    %p288 = scmp.lt.s32.totalorder %s17, 3
    %p289 = pnand %p287, %p288
    %p290 = pneg %p289
    // Predicated region
    $region9: #{tpu_custom_call.1} parent=5 // pred_check
      _
    $region10: #{tpu_custom_call.1} parent=5 // pred_check_branch
      %292 = sbr.rel (%p289) target = $region12
    $region11: #{tpu_custom_call.1} parent=5 // pred_region
      %s293 = ssub.s32 %s17, 1
      // Predicated region
      $region13: #{tpu_custom_call.1} parent=11 // pred_check
        %p294 = pneg %p64
      $region14: #{tpu_custom_call.1} parent=11 // pred_check_branch
        %296 = sbr.rel (%p294) target = $region16
      $region15: #{tpu_custom_call.1} parent=11 // pred_region
        _
      $region16: #{tpu_custom_call.1} parent=11 // pred_fallthru
        _
      // Predicated region
      $region17: #{tpu_custom_call.1} parent=11 // pred_check
        %p297 = pneg %p85
      $region18: #{tpu_custom_call.1} parent=11 // pred_check_branch
        %299 = sbr.rel (%p297) target = $region20
      $region19: #{tpu_custom_call.1} parent=11 // pred_region
        _
      $region20: #{tpu_custom_call.1} parent=11 // pred_fallthru
        _
      // Predicated region
      $region21: #{tpu_custom_call.1} parent=11 // pred_check
        %p300 = pneg %p106
      $region22: #{tpu_custom_call.1} parent=11 // pred_check_branch
        %302 = sbr.rel (%p300) target = $region24
      $region23: #{tpu_custom_call.1} parent=11 // pred_region
        _
      $region24: #{tpu_custom_call.1} parent=11 // pred_fallthru
        _
      // Predicated region
      $region25: #{tpu_custom_call.1} parent=11 // pred_check
        %p303 = pneg %p127
      $region26: #{tpu_custom_call.1} parent=11 // pred_check_branch
        %305 = sbr.rel (%p303) target = $region28
      $region27: #{tpu_custom_call.1} parent=11 // pred_region
        _
      $region28: #{tpu_custom_call.1} parent=11 // pred_fallthru
        _
      // Predicated region
      $region29: #{tpu_custom_call.1} parent=11 // pred_check
        %p306 = pneg %p148
      $region30: #{tpu_custom_call.1} parent=11 // pred_check_branch
        %308 = sbr.rel (%p306) target = $region32
      $region31: #{tpu_custom_call.1} parent=11 // pred_region
        _
      $region32: #{tpu_custom_call.1} parent=11 // pred_fallthru
        _
      // Predicated region
      $region33: #{tpu_custom_call.1} parent=11 // pred_check
        %p309 = pneg %p169
      $region34: #{tpu_custom_call.1} parent=11 // pred_check_branch
        %311 = sbr.rel (%p309) target = $region36
      $region35: #{tpu_custom_call.1} parent=11 // pred_region
        _
      $region36: #{tpu_custom_call.1} parent=11 // pred_fallthru
        _
      // Predicated region
      $region37: #{tpu_custom_call.1} parent=11 // pred_check
        %p312 = pneg %p190
      $region38: #{tpu_custom_call.1} parent=11 // pred_check_branch
        %314 = sbr.rel (%p312) target = $region40
      $region39: #{tpu_custom_call.1} parent=11 // pred_region
        _
      $region40: #{tpu_custom_call.1} parent=11 // pred_fallthru
        _
      // Predicated region
      $region41: #{tpu_custom_call.1} parent=11 // pred_check
        %p315 = pneg %p211
      $region42: #{tpu_custom_call.1} parent=11 // pred_check_branch
        %317 = sbr.rel (%p315) target = $region44
      $region43: #{tpu_custom_call.1} parent=11 // pred_region
        _
      $region44: #{tpu_custom_call.1} parent=11 // pred_fallthru
        _
      // Predicated region
      $region45: #{tpu_custom_call.1} parent=11 // pred_check
        %p318 = pneg %p232
      $region46: #{tpu_custom_call.1} parent=11 // pred_check_branch
        %320 = sbr.rel (%p318) target = $region48
      $region47: #{tpu_custom_call.1} parent=11 // pred_region
        _
      $region48: #{tpu_custom_call.1} parent=11 // pred_fallthru
        _
      // Predicated region
      $region49: #{tpu_custom_call.1} parent=11 // pred_check
        %p321 = pneg %p253
      $region50: #{tpu_custom_call.1} parent=11 // pred_check_branch
        %323 = sbr.rel (%p321) target = $region52
      $region51: #{tpu_custom_call.1} parent=11 // pred_region
        _
      $region52: #{tpu_custom_call.1} parent=11 // pred_fallthru
        _
    $region12: #{tpu_custom_call.1} parent=5 // pred_fallthru
      _
    %p324 = scmp.lt.s32.totalorder %s17, 2
    // Predicated region
    $region53: #{tpu_custom_call.1} parent=5 // pred_check
      %p325 = pneg %p324
    $region54: #{tpu_custom_call.1} parent=5 // pred_check_branch
      %327 = sbr.rel (%p325) target = $region56
    $region55: #{tpu_custom_call.1} parent=5 // pred_region
      // Predicated region
      $region57: #{tpu_custom_call.1} parent=55 // pred_check
        %p328 = pneg %p37
      $region58: #{tpu_custom_call.1} parent=55 // pred_check_branch
        %330 = sbr.rel (%p328) target = $region60
      $region59: #{tpu_custom_call.1} parent=55 // pred_region
        %p331 = scmp.lt.s32.totalorder %s17, 1
        %s332 = scalar_select %p331, %s17, 1
        %s333 = smul.addr %s332, 32
        %s334 = smul.addr %s333, 8
        %s335 = scalar_lea.vmem %s0, %s334
      $region60: #{tpu_custom_call.1} parent=55 // pred_fallthru
        _
    $region56: #{tpu_custom_call.1} parent=5 // pred_fallthru
      _
    %p336 = scmp.le.s32.totalorder 1, %s17
    %p337 = scmp.lt.s32.totalorder %s17, 3
    %p338 = pnand %p336, %p337
    %p339 = pneg %p338
    // Predicated region
    $region61: #{tpu_custom_call.1} parent=5 // pred_check
      _
    $region62: #{tpu_custom_call.1} parent=5 // pred_check_branch
      %341 = sbr.rel (%p338) target = $region64
    $region63: #{tpu_custom_call.1} parent=5 // pred_region
      %s342 = ssub.s32 %s17, 1
      %p343 = scmp.lt.s32.totalorder %s22, 1
      %s344 = scalar_select %p343, %s22, 1
      %s345 = smul.addr %s344, 32
      %s346 = smul.addr %s345, 8
      %s347 = scalar_lea.vmem %s0, %s346
      %p348 = pneg %p43
      %p349 = pneg %p40
      %p350 = pneg %p64
      %p351 = pneg %p61
      %p352 = pneg %p85
      %p353 = pneg %p82
      %p354 = pneg %p106
      %p355 = pneg %p103
      %p356 = pneg %p127
      %p357 = pneg %p124
      %p358 = pneg %p148
      %p359 = pneg %p145
      %p360 = pneg %p169
      %p361 = pneg %p166
      %p362 = pneg %p190
      %p363 = pneg %p187
      %p364 = pneg %p211
      %p365 = pneg %p208
      %p366 = pneg %p232
      %p367 = pneg %p229
      %p368 = pneg %p253
      %p369 = pneg %p250
      %p370 = pneg %p279
      %p371 = pneg %p276
      %p372 = scmp.lt.s32.totalorder %s22, 1
      %s373 = scalar_select %p372, %s22, 1
      %s374 = smul.addr %s373, 32
      %s375 = smul.addr %s374, 8
      %s376 = scalar_lea.vmem %s11, %s375
      %p377 = scmp.lt.s32.totalorder %s22, 1
      %s378 = scalar_select %p377, %s22, 1
      %s379 = smul.addr %s378, 32
      %s380 = smul.addr %s379, 8
      %s381 = scalar_lea.vmem %s0, %s380
      %p382 = scmp.lt.s32.totalorder %s22, 1
      %s383 = scalar_select %p382, %s22, 1
      %s384 = smul.addr %s383, 32
      %s385 = smul.addr %s384, 8
      %s386 = scalar_lea.vmem %s11, %s385
      %vm387 = vcmask 31744
      %388 = vst.msk [vmem:[#allocation2] sm:$0xff] %vm387, 0.0
      %389 = vst.msk [vmem:[#allocation2 + $0x8] sm:$0xff] %vm387, 0.0
      %vm390 = vcmask 25600
      %391 = vst.msk [vmem:[#allocation2 + $0x10] sm:$0x3] %vm390, 0.0
      %s392 = scalar_lea.vmem [#allocation2], 408
      %393 = vst.msk [vmem:[%s392] sm:$0xff] %vm387, 0.0
      %394 = vst.msk [vmem:[%s392 + $0x8] sm:$0xff] %vm387, 0.0
      %395 = vst.msk [vmem:[%s392 + $0x10] sm:$0x3] %vm390, 0.0
      %s396 = scalar_lea.vmem [#allocation2], 24
      %vm397 = vcmask 24576
      %398 = vst.msk [vmem:[%s396] sm:$0x1] %vm397, 0.0
      %399 = vst.msk [vmem:[%s396 + $0x18] sm:$0x1] %vm397, 0.0
      %400 = vst.msk [vmem:[%s396 + $0x30] sm:$0x1] %vm397, 0.0
      %401 = vst.msk [vmem:[%s396 + $0x48] sm:$0x1] %vm397, 0.0
      %402 = vst.msk [vmem:[%s396 + $0x60] sm:$0x1] %vm397, 0.0
      %403 = vst.msk [vmem:[%s396 + $0x78] sm:$0x1] %vm397, 0.0
      %404 = vst.msk [vmem:[%s396 + $0x90] sm:$0x1] %vm397, 0.0
      %405 = vst.msk [vmem:[%s396 + $0xa8] sm:$0x1] %vm397, 0.0
      %406 = vst.msk [vmem:[%s396 + $0xc0] sm:$0x1] %vm397, 0.0
      %407 = vst.msk [vmem:[%s396 + $0xd8] sm:$0x1] %vm397, 0.0
      %408 = vst.msk [vmem:[%s396 + $0xf0] sm:$0x1] %vm397, 0.0
      %409 = vst.msk [vmem:[%s396 + $0x108] sm:$0x1] %vm397, 0.0
      %410 = vst.msk [vmem:[%s396 + $0x120] sm:$0x1] %vm397, 0.0
      %411 = vst.msk [vmem:[%s396 + $0x138] sm:$0x1] %vm397, 0.0
      %412 = vst.msk [vmem:[%s396 + $0x150] sm:$0x1] %vm397, 0.0
      %413 = vst.msk [vmem:[%s396 + $0x168] sm:$0x1] %vm397, 0.0
      %414 = vst.msk [vmem:[%s396 + $0x11] sm:$0x1] %vm397, 0.0
      %415 = vst.msk [vmem:[%s396 + $0x29] sm:$0x1] %vm397, 0.0
      %416 = vst.msk [vmem:[%s396 + $0x41] sm:$0x1] %vm397, 0.0
      %417 = vst.msk [vmem:[%s396 + $0x59] sm:$0x1] %vm397, 0.0
      %418 = vst.msk [vmem:[%s396 + $0x71] sm:$0x1] %vm397, 0.0
      %419 = vst.msk [vmem:[%s396 + $0x89] sm:$0x1] %vm397, 0.0
      %420 = vst.msk [vmem:[%s396 + $0xa1] sm:$0x1] %vm397, 0.0
      %421 = vst.msk [vmem:[%s396 + $0xb9] sm:$0x1] %vm397, 0.0
      %422 = vst.msk [vmem:[%s396 + $0xd1] sm:$0x1] %vm397, 0.0
      %423 = vst.msk [vmem:[%s396 + $0xe9] sm:$0x1] %vm397, 0.0
      %424 = vst.msk [vmem:[%s396 + $0x101] sm:$0x1] %vm397, 0.0
      %425 = vst.msk [vmem:[%s396 + $0x119] sm:$0x1] %vm397, 0.0
      %426 = vst.msk [vmem:[%s396 + $0x131] sm:$0x1] %vm397, 0.0
      %427 = vst.msk [vmem:[%s396 + $0x149] sm:$0x1] %vm397, 0.0
      %428 = vst.msk [vmem:[%s396 + $0x161] sm:$0x1] %vm397, 0.0
      %429 = vst.msk [vmem:[%s396 + $0x179] sm:$0x1] %vm397, 0.0
      %v430 = vld [vmem:[%s381] sm:$0xff]
      %v431 = vld [vmem:[%s381 + $0x8] sm:$0xff]
      %v432 = vld [vmem:[%s381 + $0x10] sm:$0xff]
      %v433 = vld [vmem:[%s381 + $0x18] sm:$0xff]
      %v434 = vld [vmem:[%s381 + $0x20] sm:$0xff]
      %v435 = vld [vmem:[%s381 + $0x28] sm:$0xff]
      %v436 = vld [vmem:[%s381 + $0x30] sm:$0xff]
      %v437 = vld [vmem:[%s381 + $0x38] sm:$0xff]
      %v438 = vld [vmem:[%s381 + $0x40] sm:$0xff]
      %v439 = vld [vmem:[%s381 + $0x48] sm:$0xff]
      %v440 = vld [vmem:[%s381 + $0x50] sm:$0xff]
      %v441 = vld [vmem:[%s381 + $0x58] sm:$0xff]
      %v442 = vld [vmem:[%s381 + $0x60] sm:$0xff]
      %v443 = vld [vmem:[%s381 + $0x68] sm:$0xff]
      %v444 = vld [vmem:[%s381 + $0x70] sm:$0xff]
      %v445 = vld [vmem:[%s381 + $0x78] sm:$0xff]
      %v446 = vld [vmem:[%s381 + $0x80] sm:$0xff]
      %v447 = vld [vmem:[%s381 + $0x88] sm:$0xff]
      %v448 = vld [vmem:[%s381 + $0x90] sm:$0xff]
      %v449 = vld [vmem:[%s381 + $0x98] sm:$0xff]
      %v450 = vld [vmem:[%s381 + $0xa0] sm:$0xff]
      %v451 = vld [vmem:[%s381 + $0xa8] sm:$0xff]
      %v452 = vld [vmem:[%s381 + $0xb0] sm:$0xff]
      %v453 = vld [vmem:[%s381 + $0xb8] sm:$0xff]
      %v454 = vld [vmem:[%s381 + $0xc0] sm:$0xff]
      %v455 = vld [vmem:[%s381 + $0xc8] sm:$0xff]
      %v456 = vld [vmem:[%s381 + $0xd0] sm:$0xff]
      %v457 = vld [vmem:[%s381 + $0xd8] sm:$0xff]
      %v458 = vld [vmem:[%s381 + $0xe0] sm:$0xff]
      %v459 = vld [vmem:[%s381 + $0xe8] sm:$0xff]
      %v460 = vld [vmem:[%s381 + $0xf0] sm:$0xff]
      %v461 = vld [vmem:[%s381 + $0xf8] sm:$0xff]
      %462 = vst.msk [vmem:[%s396 + $0x1] sm:$0xff] %vm387, %v430
      %463 = vst.msk [vmem:[%s396 + $0x9] sm:$0xff] %vm387, %v431
      %464 = vst.msk [vmem:[%s396 + $0x19] sm:$0xff] %vm387, %v432
      %465 = vst.msk [vmem:[%s396 + $0x21] sm:$0xff] %vm387, %v433
      %466 = vst.msk [vmem:[%s396 + $0x31] sm:$0xff] %vm387, %v434
      %467 = vst.msk [vmem:[%s396 + $0x39] sm:$0xff] %vm387, %v435
      %468 = vst.msk [vmem:[%s396 + $0x49] sm:$0xff] %vm387, %v436
      %469 = vst.msk [vmem:[%s396 + $0x51] sm:$0xff] %vm387, %v437
      %470 = vst.msk [vmem:[%s396 + $0x61] sm:$0xff] %vm387, %v438
      %471 = vst.msk [vmem:[%s396 + $0x69] sm:$0xff] %vm387, %v439
      %472 = vst.msk [vmem:[%s396 + $0x79] sm:$0xff] %vm387, %v440
      %473 = vst.msk [vmem:[%s396 + $0x81] sm:$0xff] %vm387, %v441
      %474 = vst.msk [vmem:[%s396 + $0x91] sm:$0xff] %vm387, %v442
      %475 = vst.msk [vmem:[%s396 + $0x99] sm:$0xff] %vm387, %v443
      %476 = vst.msk [vmem:[%s396 + $0xa9] sm:$0xff] %vm387, %v444
      %477 = vst.msk [vmem:[%s396 + $0xb1] sm:$0xff] %vm387, %v445
      %478 = vst.msk [vmem:[%s396 + $0xc1] sm:$0xff] %vm387, %v446
      %479 = vst.msk [vmem:[%s396 + $0xc9] sm:$0xff] %vm387, %v447
      %480 = vst.msk [vmem:[%s396 + $0xd9] sm:$0xff] %vm387, %v448
      %481 = vst.msk [vmem:[%s396 + $0xe1] sm:$0xff] %vm387, %v449
      %482 = vst.msk [vmem:[%s396 + $0xf1] sm:$0xff] %vm387, %v450
      %483 = vst.msk [vmem:[%s396 + $0xf9] sm:$0xff] %vm387, %v451
      %484 = vst.msk [vmem:[%s396 + $0x109] sm:$0xff] %vm387, %v452
      %485 = vst.msk [vmem:[%s396 + $0x111] sm:$0xff] %vm387, %v453
      %486 = vst.msk [vmem:[%s396 + $0x121] sm:$0xff] %vm387, %v454
      %487 = vst.msk [vmem:[%s396 + $0x129] sm:$0xff] %vm387, %v455
      %488 = vst.msk [vmem:[%s396 + $0x139] sm:$0xff] %vm387, %v456
      %489 = vst.msk [vmem:[%s396 + $0x141] sm:$0xff] %vm387, %v457
      %490 = vst.msk [vmem:[%s396 + $0x151] sm:$0xff] %vm387, %v458
      %491 = vst.msk [vmem:[%s396 + $0x159] sm:$0xff] %vm387, %v459
      %492 = vst.msk [vmem:[%s396 + $0x169] sm:$0xff] %vm387, %v460
      %493 = vst.msk [vmem:[%s396 + $0x171] sm:$0xff] %vm387, %v461
      %v494 = vld [vmem:[%s1] sm:$0x1]
      %v495 = vld [vmem:[#allocation2] sm:$0xff]
      %v496 = vld [vmem:[#allocation2 + $0x8] sm:$0xff]
      %v497 = vld [vmem:[#allocation2 + $0x18] sm:$0xff]
      %v498 = vld [vmem:[#allocation2 + $0x20] sm:$0xff]
      %v499 = vld [vmem:[#allocation2 + $0x30] sm:$0xff]
      %v500 = vld [vmem:[#allocation2 + $0x38] sm:$0xff]
      %v501 = vld [vmem:[#allocation2 + $0x48] sm:$0xff]
      %v502 = vld [vmem:[#allocation2 + $0x50] sm:$0xff]
      %v503 = vld [vmem:[#allocation2 + $0x60] sm:$0xff]
      %v504 = vld [vmem:[#allocation2 + $0x68] sm:$0xff]
      %v505 = vld [vmem:[#allocation2 + $0x78] sm:$0xff]
      %v506 = vld [vmem:[#allocation2 + $0x80] sm:$0xff]
      %v507 = vld [vmem:[#allocation2 + $0x90] sm:$0xff]
      %v508 = vld [vmem:[#allocation2 + $0x98] sm:$0xff]
      %v509 = vld [vmem:[#allocation2 + $0xa8] sm:$0xff]
      %v510 = vld [vmem:[#allocation2 + $0xb0] sm:$0xff]
      %v511 = vld [vmem:[#allocation2 + $0xc0] sm:$0xff]
      %v512 = vld [vmem:[#allocation2 + $0xc8] sm:$0xff]
      %v513 = vld [vmem:[#allocation2 + $0xd8] sm:$0xff]
      %v514 = vld [vmem:[#allocation2 + $0xe0] sm:$0xff]
      %v515 = vld [vmem:[#allocation2 + $0xf0] sm:$0xff]
      %v516 = vld [vmem:[#allocation2 + $0xf8] sm:$0xff]
      %v517 = vld [vmem:[#allocation2 + $0x108] sm:$0xff]
      %v518 = vld [vmem:[#allocation2 + $0x110] sm:$0xff]
      %v519 = vld [vmem:[#allocation2 + $0x120] sm:$0xff]
      %v520 = vld [vmem:[#allocation2 + $0x128] sm:$0xff]
      %v521 = vld [vmem:[#allocation2 + $0x138] sm:$0xff]
      %v522 = vld [vmem:[#allocation2 + $0x140] sm:$0xff]
      %v523 = vld [vmem:[#allocation2 + $0x150] sm:$0xff]
      %v524 = vld [vmem:[#allocation2 + $0x158] sm:$0xff]
      %v525 = vld [vmem:[#allocation2 + $0x168] sm:$0xff]
      %v526 = vld [vmem:[#allocation2 + $0x170] sm:$0xff]
      %v527 = vlaneseq
      %v528 = vshrl.u32 %v527, 7
      %v529 = vsub.s32 0, %v528
      %v530 = vrot.slane %v494, %v529
      %v531 = vmul.f32 %v495, %v530
      %v532 = vmul.f32 %v496, %v530
      %v533 = vmul.f32 %v497, %v530
      %v534 = vmul.f32 %v498, %v530
      %v535 = vmul.f32 %v499, %v530
      %v536 = vmul.f32 %v500, %v530
      %v537 = vmul.f32 %v501, %v530
      %v538 = vmul.f32 %v502, %v530
      %v539 = vmul.f32 %v503, %v530
      %v540 = vmul.f32 %v504, %v530
      %v541 = vmul.f32 %v505, %v530
      %v542 = vmul.f32 %v506, %v530
      %v543 = vmul.f32 %v507, %v530
      %v544 = vmul.f32 %v508, %v530
      %v545 = vmul.f32 %v509, %v530
      %v546 = vmul.f32 %v510, %v530
      %v547 = vmul.f32 %v511, %v530
      %v548 = vmul.f32 %v512, %v530
      %v549 = vmul.f32 %v513, %v530
      %v550 = vmul.f32 %v514, %v530
      %v551 = vmul.f32 %v515, %v530
      %v552 = vmul.f32 %v516, %v530
      %v553 = vmul.f32 %v517, %v530
      %v554 = vmul.f32 %v518, %v530
      %v555 = vmul.f32 %v519, %v530
      %v556 = vmul.f32 %v520, %v530
      %v557 = vmul.f32 %v521, %v530
      %v558 = vmul.f32 %v522, %v530
      %v559 = vmul.f32 %v523, %v530
      %v560 = vmul.f32 %v524, %v530
      %v561 = vmul.f32 %v525, %v530
      %v562 = vmul.f32 %v526, %v530
      %563 = vst.msk [vmem:[#allocation3] sm:$0xff] %vm387, %v531
      %564 = vst.msk [vmem:[#allocation3 + $0x8] sm:$0xff] %vm387, %v532
      %565 = vst.msk [vmem:[#allocation3 + $0x10] sm:$0xff] %vm387, %v533
      %566 = vst.msk [vmem:[#allocation3 + $0x18] sm:$0xff] %vm387, %v534
      %567 = vst.msk [vmem:[#allocation3 + $0x20] sm:$0xff] %vm387, %v535
      %568 = vst.msk [vmem:[#allocation3 + $0x28] sm:$0xff] %vm387, %v536
      %569 = vst.msk [vmem:[#allocation3 + $0x30] sm:$0xff] %vm387, %v537
      %570 = vst.msk [vmem:[#allocation3 + $0x38] sm:$0xff] %vm387, %v538
      %571 = vst.msk [vmem:[#allocation3 + $0x40] sm:$0xff] %vm387, %v539
      %572 = vst.msk [vmem:[#allocation3 + $0x48] sm:$0xff] %vm387, %v540
      %573 = vst.msk [vmem:[#allocation3 + $0x50] sm:$0xff] %vm387, %v541
      %574 = vst.msk [vmem:[#allocation3 + $0x58] sm:$0xff] %vm387, %v542
      %575 = vst.msk [vmem:[#allocation3 + $0x60] sm:$0xff] %vm387, %v543
      %576 = vst.msk [vmem:[#allocation3 + $0x68] sm:$0xff] %vm387, %v544
      %577 = vst.msk [vmem:[#allocation3 + $0x70] sm:$0xff] %vm387, %v545
      %578 = vst.msk [vmem:[#allocation3 + $0x78] sm:$0xff] %vm387, %v546
      %579 = vst.msk [vmem:[#allocation3 + $0x80] sm:$0xff] %vm387, %v547
      %580 = vst.msk [vmem:[#allocation3 + $0x88] sm:$0xff] %vm387, %v548
      %581 = vst.msk [vmem:[#allocation3 + $0x90] sm:$0xff] %vm387, %v549
      %582 = vst.msk [vmem:[#allocation3 + $0x98] sm:$0xff] %vm387, %v550
      %583 = vst.msk [vmem:[#allocation3 + $0xa0] sm:$0xff] %vm387, %v551
      %584 = vst.msk [vmem:[#allocation3 + $0xa8] sm:$0xff] %vm387, %v552
      %585 = vst.msk [vmem:[#allocation3 + $0xb0] sm:$0xff] %vm387, %v553
      %586 = vst.msk [vmem:[#allocation3 + $0xb8] sm:$0xff] %vm387, %v554
      %587 = vst.msk [vmem:[#allocation3 + $0xc0] sm:$0xff] %vm387, %v555
      %588 = vst.msk [vmem:[#allocation3 + $0xc8] sm:$0xff] %vm387, %v556
      %589 = vst.msk [vmem:[#allocation3 + $0xd0] sm:$0xff] %vm387, %v557
      %590 = vst.msk [vmem:[#allocation3 + $0xd8] sm:$0xff] %vm387, %v558
      %591 = vst.msk [vmem:[#allocation3 + $0xe0] sm:$0xff] %vm387, %v559
      %592 = vst.msk [vmem:[#allocation3 + $0xe8] sm:$0xff] %vm387, %v560
      %593 = vst.msk [vmem:[#allocation3 + $0xf0] sm:$0xff] %vm387, %v561
      %594 = vst.msk [vmem:[#allocation3 + $0xf8] sm:$0xff] %vm387, %v562
      %v595 = vld [vmem:[%s1 + $0x1] sm:$0x1]
      %v596 = vld [vmem:[#allocation2 + $0x1] sm:$0xff]
      %v597 = vld [vmem:[#allocation2 + $0x9] sm:$0xff]
      %v598 = vld [vmem:[#allocation2 + $0x19] sm:$0xff]
      %v599 = vld [vmem:[#allocation2 + $0x21] sm:$0xff]
      %v600 = vld [vmem:[#allocation2 + $0x31] sm:$0xff]
      %v601 = vld [vmem:[#allocation2 + $0x39] sm:$0xff]
      %v602 = vld [vmem:[#allocation2 + $0x49] sm:$0xff]
      %v603 = vld [vmem:[#allocation2 + $0x51] sm:$0xff]
      %v604 = vld [vmem:[#allocation2 + $0x61] sm:$0xff]
      %v605 = vld [vmem:[#allocation2 + $0x69] sm:$0xff]
      %v606 = vld [vmem:[#allocation2 + $0x79] sm:$0xff]
      %v607 = vld [vmem:[#allocation2 + $0x81] sm:$0xff]
      %v608 = vld [vmem:[#allocation2 + $0x91] sm:$0xff]
      %v609 = vld [vmem:[#allocation2 + $0x99] sm:$0xff]
      %v610 = vld [vmem:[#allocation2 + $0xa9] sm:$0xff]
      %v611 = vld [vmem:[#allocation2 + $0xb1] sm:$0xff]
      %v612 = vld [vmem:[#allocation2 + $0xc1] sm:$0xff]
      %v613 = vld [vmem:[#allocation2 + $0xc9] sm:$0xff]
      %v614 = vld [vmem:[#allocation2 + $0xd9] sm:$0xff]
      %v615 = vld [vmem:[#allocation2 + $0xe1] sm:$0xff]
      %v616 = vld [vmem:[#allocation2 + $0xf1] sm:$0xff]
      %v617 = vld [vmem:[#allocation2 + $0xf9] sm:$0xff]
      %v618 = vld [vmem:[#allocation2 + $0x109] sm:$0xff]
      %v619 = vld [vmem:[#allocation2 + $0x111] sm:$0xff]
      %v620 = vld [vmem:[#allocation2 + $0x121] sm:$0xff]
      %v621 = vld [vmem:[#allocation2 + $0x129] sm:$0xff]
      %v622 = vld [vmem:[#allocation2 + $0x139] sm:$0xff]
      %v623 = vld [vmem:[#allocation2 + $0x141] sm:$0xff]
      %v624 = vld [vmem:[#allocation2 + $0x151] sm:$0xff]
      %v625 = vld [vmem:[#allocation2 + $0x159] sm:$0xff]
      %v626 = vld [vmem:[#allocation2 + $0x169] sm:$0xff]
      %v627 = vld [vmem:[#allocation2 + $0x171] sm:$0xff]
      %v628 = vlaneseq
      %v629 = vshrl.u32 %v628, 7
      %v630 = vsub.s32 0, %v629
      %v631 = vrot.slane %v595, %v630
      %v632 = vmul.f32 %v596, %v631
      %v633 = vmul.f32 %v597, %v631
      %v634 = vmul.f32 %v598, %v631
      %v635 = vmul.f32 %v599, %v631
      %v636 = vmul.f32 %v600, %v631
      %v637 = vmul.f32 %v601, %v631
      %v638 = vmul.f32 %v602, %v631
      %v639 = vmul.f32 %v603, %v631
      %v640 = vmul.f32 %v604, %v631
      %v641 = vmul.f32 %v605, %v631
      %v642 = vmul.f32 %v606, %v631
      %v643 = vmul.f32 %v607, %v631
      %v644 = vmul.f32 %v608, %v631
      %v645 = vmul.f32 %v609, %v631
      %v646 = vmul.f32 %v610, %v631
      %v647 = vmul.f32 %v611, %v631
      %v648 = vmul.f32 %v612, %v631
      %v649 = vmul.f32 %v613, %v631
      %v650 = vmul.f32 %v614, %v631
      %v651 = vmul.f32 %v615, %v631
      %v652 = vmul.f32 %v616, %v631
      %v653 = vmul.f32 %v617, %v631
      %v654 = vmul.f32 %v618, %v631
      %v655 = vmul.f32 %v619, %v631
      %v656 = vmul.f32 %v620, %v631
      %v657 = vmul.f32 %v621, %v631
      %v658 = vmul.f32 %v622, %v631
      %v659 = vmul.f32 %v623, %v631
      %v660 = vmul.f32 %v624, %v631
      %v661 = vmul.f32 %v625, %v631
      %v662 = vmul.f32 %v626, %v631
      %v663 = vmul.f32 %v627, %v631
      %v664 = vld [vmem:[#allocation3] sm:$0xff]
      %v665 = vld [vmem:[#allocation3 + $0x8] sm:$0xff]
      %v666 = vld [vmem:[#allocation3 + $0x10] sm:$0xff]
      %v667 = vld [vmem:[#allocation3 + $0x18] sm:$0xff]
      %v668 = vld [vmem:[#allocation3 + $0x20] sm:$0xff]
      %v669 = vld [vmem:[#allocation3 + $0x28] sm:$0xff]
      %v670 = vld [vmem:[#allocation3 + $0x30] sm:$0xff]
      %v671 = vld [vmem:[#allocation3 + $0x38] sm:$0xff]
      %v672 = vld [vmem:[#allocation3 + $0x40] sm:$0xff]
      %v673 = vld [vmem:[#allocation3 + $0x48] sm:$0xff]
      %v674 = vld [vmem:[#allocation3 + $0x50] sm:$0xff]
      %v675 = vld [vmem:[#allocation3 + $0x58] sm:$0xff]
      %v676 = vld [vmem:[#allocation3 + $0x60] sm:$0xff]
      %v677 = vld [vmem:[#allocation3 + $0x68] sm:$0xff]
      %v678 = vld [vmem:[#allocation3 + $0x70] sm:$0xff]
      %v679 = vld [vmem:[#allocation3 + $0x78] sm:$0xff]
      %v680 = vld [vmem:[#allocation3 + $0x80] sm:$0xff]
      %v681 = vld [vmem:[#allocation3 + $0x88] sm:$0xff]
      %v682 = vld [vmem:[#allocation3 + $0x90] sm:$0xff]
      %v683 = vld [vmem:[#allocation3 + $0x98] sm:$0xff]
      %v684 = vld [vmem:[#allocation3 + $0xa0] sm:$0xff]
      %v685 = vld [vmem:[#allocation3 + $0xa8] sm:$0xff]
      %v686 = vld [vmem:[#allocation3 + $0xb0] sm:$0xff]
      %v687 = vld [vmem:[#allocation3 + $0xb8] sm:$0xff]
      %v688 = vld [vmem:[#allocation3 + $0xc0] sm:$0xff]
      %v689 = vld [vmem:[#allocation3 + $0xc8] sm:$0xff]
      %v690 = vld [vmem:[#allocation3 + $0xd0] sm:$0xff]
      %v691 = vld [vmem:[#allocation3 + $0xd8] sm:$0xff]
      %v692 = vld [vmem:[#allocation3 + $0xe0] sm:$0xff]
      %v693 = vld [vmem:[#allocation3 + $0xe8] sm:$0xff]
      %v694 = vld [vmem:[#allocation3 + $0xf0] sm:$0xff]
      %v695 = vld [vmem:[#allocation3 + $0xf8] sm:$0xff]
      %v696 = vadd.f32 %v664, %v632
      %v697 = vadd.f32 %v665, %v633
      %v698 = vadd.f32 %v666, %v634
      %v699 = vadd.f32 %v667, %v635
      %v700 = vadd.f32 %v668, %v636
      %v701 = vadd.f32 %v669, %v637
      %v702 = vadd.f32 %v670, %v638
      %v703 = vadd.f32 %v671, %v639
      %v704 = vadd.f32 %v672, %v640
      %v705 = vadd.f32 %v673, %v641
      %v706 = vadd.f32 %v674, %v642
      %v707 = vadd.f32 %v675, %v643
      %v708 = vadd.f32 %v676, %v644
      %v709 = vadd.f32 %v677, %v645
      %v710 = vadd.f32 %v678, %v646
      %v711 = vadd.f32 %v679, %v647
      %v712 = vadd.f32 %v680, %v648
      %v713 = vadd.f32 %v681, %v649
      %v714 = vadd.f32 %v682, %v650
      %v715 = vadd.f32 %v683, %v651
      %v716 = vadd.f32 %v684, %v652
      %v717 = vadd.f32 %v685, %v653
      %v718 = vadd.f32 %v686, %v654
      %v719 = vadd.f32 %v687, %v655
      %v720 = vadd.f32 %v688, %v656
      %v721 = vadd.f32 %v689, %v657
      %v722 = vadd.f32 %v690, %v658
      %v723 = vadd.f32 %v691, %v659
      %v724 = vadd.f32 %v692, %v660
      %v725 = vadd.f32 %v693, %v661
      %v726 = vadd.f32 %v694, %v662
      %v727 = vadd.f32 %v695, %v663
      %728 = vst.msk [vmem:[#allocation3] sm:$0xff] %vm387, %v696
      %729 = vst.msk [vmem:[#allocation3 + $0x8] sm:$0xff] %vm387, %v697
      %730 = vst.msk [vmem:[#allocation3 + $0x10] sm:$0xff] %vm387, %v698
      %731 = vst.msk [vmem:[#allocation3 + $0x18] sm:$0xff] %vm387, %v699
      %732 = vst.msk [vmem:[#allocation3 + $0x20] sm:$0xff] %vm387, %v700
      %733 = vst.msk [vmem:[#allocation3 + $0x28] sm:$0xff] %vm387, %v701
      %734 = vst.msk [vmem:[#allocation3 + $0x30] sm:$0xff] %vm387, %v702
      %735 = vst.msk [vmem:[#allocation3 + $0x38] sm:$0xff] %vm387, %v703
      %736 = vst.msk [vmem:[#allocation3 + $0x40] sm:$0xff] %vm387, %v704
      %737 = vst.msk [vmem:[#allocation3 + $0x48] sm:$0xff] %vm387, %v705
      %738 = vst.msk [vmem:[#allocation3 + $0x50] sm:$0xff] %vm387, %v706
      %739 = vst.msk [vmem:[#allocation3 + $0x58] sm:$0xff] %vm387, %v707
      %740 = vst.msk [vmem:[#allocation3 + $0x60] sm:$0xff] %vm387, %v708
      %741 = vst.msk [vmem:[#allocation3 + $0x68] sm:$0xff] %vm387, %v709
      %742 = vst.msk [vmem:[#allocation3 + $0x70] sm:$0xff] %vm387, %v710
      %743 = vst.msk [vmem:[#allocation3 + $0x78] sm:$0xff] %vm387, %v711
      %744 = vst.msk [vmem:[#allocation3 + $0x80] sm:$0xff] %vm387, %v712
      %745 = vst.msk [vmem:[#allocation3 + $0x88] sm:$0xff] %vm387, %v713
      %746 = vst.msk [vmem:[#allocation3 + $0x90] sm:$0xff] %vm387, %v714
      %747 = vst.msk [vmem:[#allocation3 + $0x98] sm:$0xff] %vm387, %v715
      %748 = vst.msk [vmem:[#allocation3 + $0xa0] sm:$0xff] %vm387, %v716
      %749 = vst.msk [vmem:[#allocation3 + $0xa8] sm:$0xff] %vm387, %v717
      %750 = vst.msk [vmem:[#allocation3 + $0xb0] sm:$0xff] %vm387, %v718
      %751 = vst.msk [vmem:[#allocation3 + $0xb8] sm:$0xff] %vm387, %v719
      %752 = vst.msk [vmem:[#allocation3 + $0xc0] sm:$0xff] %vm387, %v720
      %753 = vst.msk [vmem:[#allocation3 + $0xc8] sm:$0xff] %vm387, %v721
      %754 = vst.msk [vmem:[#allocation3 + $0xd0] sm:$0xff] %vm387, %v722
      %755 = vst.msk [vmem:[#allocation3 + $0xd8] sm:$0xff] %vm387, %v723
      %756 = vst.msk [vmem:[#allocation3 + $0xe0] sm:$0xff] %vm387, %v724
      %757 = vst.msk [vmem:[#allocation3 + $0xe8] sm:$0xff] %vm387, %v725
      %758 = vst.msk [vmem:[#allocation3 + $0xf0] sm:$0xff] %vm387, %v726
      %759 = vst.msk [vmem:[#allocation3 + $0xf8] sm:$0xff] %vm387, %v727
      %v760 = vld [vmem:[%s1 + $0x2] sm:$0x1]
      %v761 = vld [vmem:[#allocation2 + $0x2] sm:$0xff]
      %v762 = vld [vmem:[#allocation2 + $0xa] sm:$0xff]
      %v763 = vld [vmem:[#allocation2 + $0x1a] sm:$0xff]
      %v764 = vld [vmem:[#allocation2 + $0x22] sm:$0xff]
      %v765 = vld [vmem:[#allocation2 + $0x32] sm:$0xff]
      %v766 = vld [vmem:[#allocation2 + $0x3a] sm:$0xff]
      %v767 = vld [vmem:[#allocation2 + $0x4a] sm:$0xff]
      %v768 = vld [vmem:[#allocation2 + $0x52] sm:$0xff]
      %v769 = vld [vmem:[#allocation2 + $0x62] sm:$0xff]
      %v770 = vld [vmem:[#allocation2 + $0x6a] sm:$0xff]
      %v771 = vld [vmem:[#allocation2 + $0x7a] sm:$0xff]
      %v772 = vld [vmem:[#allocation2 + $0x82] sm:$0xff]
      %v773 = vld [vmem:[#allocation2 + $0x92] sm:$0xff]
      %v774 = vld [vmem:[#allocation2 + $0x9a] sm:$0xff]
      %v775 = vld [vmem:[#allocation2 + $0xaa] sm:$0xff]
      %v776 = vld [vmem:[#allocation2 + $0xb2] sm:$0xff]
      %v777 = vld [vmem:[#allocation2 + $0xc2] sm:$0xff]
      %v778 = vld [vmem:[#allocation2 + $0xca] sm:$0xff]
      %v779 = vld [vmem:[#allocation2 + $0xda] sm:$0xff]
      %v780 = vld [vmem:[#allocation2 + $0xe2] sm:$0xff]
      %v781 = vld [vmem:[#allocation2 + $0xf2] sm:$0xff]
      %v782 = vld [vmem:[#allocation2 + $0xfa] sm:$0xff]
      %v783 = vld [vmem:[#allocation2 + $0x10a] sm:$0xff]
      %v784 = vld [vmem:[#allocation2 + $0x112] sm:$0xff]
      %v785 = vld [vmem:[#allocation2 + $0x122] sm:$0xff]
      %v786 = vld [vmem:[#allocation2 + $0x12a] sm:$0xff]
      %v787 = vld [vmem:[#allocation2 + $0x13a] sm:$0xff]
      %v788 = vld [vmem:[#allocation2 + $0x142] sm:$0xff]
      %v789 = vld [vmem:[#allocation2 + $0x152] sm:$0xff]
      %v790 = vld [vmem:[#allocation2 + $0x15a] sm:$0xff]
      %v791 = vld [vmem:[#allocation2 + $0x16a] sm:$0xff]
      %v792 = vld [vmem:[#allocation2 + $0x172] sm:$0xff]
      %v793 = vlaneseq
      %v794 = vshrl.u32 %v793, 7
      %v795 = vsub.s32 0, %v794
      %v796 = vrot.slane %v760, %v795
      %v797 = vmul.f32 %v761, %v796
      %v798 = vmul.f32 %v762, %v796
      %v799 = vmul.f32 %v763, %v796
      %v800 = vmul.f32 %v764, %v796
      %v801 = vmul.f32 %v765, %v796
      %v802 = vmul.f32 %v766, %v796
      %v803 = vmul.f32 %v767, %v796
      %v804 = vmul.f32 %v768, %v796
      %v805 = vmul.f32 %v769, %v796
      %v806 = vmul.f32 %v770, %v796
      %v807 = vmul.f32 %v771, %v796
      %v808 = vmul.f32 %v772, %v796
      %v809 = vmul.f32 %v773, %v796
      %v810 = vmul.f32 %v774, %v796
      %v811 = vmul.f32 %v775, %v796
      %v812 = vmul.f32 %v776, %v796
      %v813 = vmul.f32 %v777, %v796
      %v814 = vmul.f32 %v778, %v796
      %v815 = vmul.f32 %v779, %v796
      %v816 = vmul.f32 %v780, %v796
      %v817 = vmul.f32 %v781, %v796
      %v818 = vmul.f32 %v782, %v796
      %v819 = vmul.f32 %v783, %v796
      %v820 = vmul.f32 %v784, %v796
      %v821 = vmul.f32 %v785, %v796
      %v822 = vmul.f32 %v786, %v796
      %v823 = vmul.f32 %v787, %v796
      %v824 = vmul.f32 %v788, %v796
      %v825 = vmul.f32 %v789, %v796
      %v826 = vmul.f32 %v790, %v796
      %v827 = vmul.f32 %v791, %v796
      %v828 = vmul.f32 %v792, %v796
      %v829 = vld [vmem:[#allocation3] sm:$0xff]
      %v830 = vld [vmem:[#allocation3 + $0x8] sm:$0xff]
      %v831 = vld [vmem:[#allocation3 + $0x10] sm:$0xff]
      %v832 = vld [vmem:[#allocation3 + $0x18] sm:$0xff]
      %v833 = vld [vmem:[#allocation3 + $0x20] sm:$0xff]
      %v834 = vld [vmem:[#allocation3 + $0x28] sm:$0xff]
      %v835 = vld [vmem:[#allocation3 + $0x30] sm:$0xff]
      %v836 = vld [vmem:[#allocation3 + $0x38] sm:$0xff]
      %v837 = vld [vmem:[#allocation3 + $0x40] sm:$0xff]
      %v838 = vld [vmem:[#allocation3 + $0x48] sm:$0xff]
      %v839 = vld [vmem:[#allocation3 + $0x50] sm:$0xff]
      %v840 = vld [vmem:[#allocation3 + $0x58] sm:$0xff]
      %v841 = vld [vmem:[#allocation3 + $0x60] sm:$0xff]
      %v842 = vld [vmem:[#allocation3 + $0x68] sm:$0xff]
      %v843 = vld [vmem:[#allocation3 + $0x70] sm:$0xff]
      %v844 = vld [vmem:[#allocation3 + $0x78] sm:$0xff]
      %v845 = vld [vmem:[#allocation3 + $0x80] sm:$0xff]
      %v846 = vld [vmem:[#allocation3 + $0x88] sm:$0xff]
      %v847 = vld [vmem:[#allocation3 + $0x90] sm:$0xff]
      %v848 = vld [vmem:[#allocation3 + $0x98] sm:$0xff]
      %v849 = vld [vmem:[#allocation3 + $0xa0] sm:$0xff]
      %v850 = vld [vmem:[#allocation3 + $0xa8] sm:$0xff]
      %v851 = vld [vmem:[#allocation3 + $0xb0] sm:$0xff]
      %v852 = vld [vmem:[#allocation3 + $0xb8] sm:$0xff]
      %v853 = vld [vmem:[#allocation3 + $0xc0] sm:$0xff]
      %v854 = vld [vmem:[#allocation3 + $0xc8] sm:$0xff]
      %v855 = vld [vmem:[#allocation3 + $0xd0] sm:$0xff]
      %v856 = vld [vmem:[#allocation3 + $0xd8] sm:$0xff]
      %v857 = vld [vmem:[#allocation3 + $0xe0] sm:$0xff]
      %v858 = vld [vmem:[#allocation3 + $0xe8] sm:$0xff]
      %v859 = vld [vmem:[#allocation3 + $0xf0] sm:$0xff]
      %v860 = vld [vmem:[#allocation3 + $0xf8] sm:$0xff]
      %v861 = vadd.f32 %v829, %v797
      %v862 = vadd.f32 %v830, %v798
      %v863 = vadd.f32 %v831, %v799
      %v864 = vadd.f32 %v832, %v800
      %v865 = vadd.f32 %v833, %v801
      %v866 = vadd.f32 %v834, %v802
      %v867 = vadd.f32 %v835, %v803
      %v868 = vadd.f32 %v836, %v804
      %v869 = vadd.f32 %v837, %v805
      %v870 = vadd.f32 %v838, %v806
      %v871 = vadd.f32 %v839, %v807
      %v872 = vadd.f32 %v840, %v808
      %v873 = vadd.f32 %v841, %v809
      %v874 = vadd.f32 %v842, %v810
      %v875 = vadd.f32 %v843, %v811
      %v876 = vadd.f32 %v844, %v812
      %v877 = vadd.f32 %v845, %v813
      %v878 = vadd.f32 %v846, %v814
      %v879 = vadd.f32 %v847, %v815
      %v880 = vadd.f32 %v848, %v816
      %v881 = vadd.f32 %v849, %v817
      %v882 = vadd.f32 %v850, %v818
      %v883 = vadd.f32 %v851, %v819
      %v884 = vadd.f32 %v852, %v820
      %v885 = vadd.f32 %v853, %v821
      %v886 = vadd.f32 %v854, %v822
      %v887 = vadd.f32 %v855, %v823
      %v888 = vadd.f32 %v856, %v824
      %v889 = vadd.f32 %v857, %v825
      %v890 = vadd.f32 %v858, %v826
      %v891 = vadd.f32 %v859, %v827
      %v892 = vadd.f32 %v860, %v828
      %893 = vst.msk [vmem:[#allocation3] sm:$0xff] %vm387, %v861
      %894 = vst.msk [vmem:[#allocation3 + $0x8] sm:$0xff] %vm387, %v862
      %895 = vst.msk [vmem:[#allocation3 + $0x10] sm:$0xff] %vm387, %v863
      %896 = vst.msk [vmem:[#allocation3 + $0x18] sm:$0xff] %vm387, %v864
      %897 = vst.msk [vmem:[#allocation3 + $0x20] sm:$0xff] %vm387, %v865
      %898 = vst.msk [vmem:[#allocation3 + $0x28] sm:$0xff] %vm387, %v866
      %899 = vst.msk [vmem:[#allocation3 + $0x30] sm:$0xff] %vm387, %v867
      %900 = vst.msk [vmem:[#allocation3 + $0x38] sm:$0xff] %vm387, %v868
      %901 = vst.msk [vmem:[#allocation3 + $0x40] sm:$0xff] %vm387, %v869
      %902 = vst.msk [vmem:[#allocation3 + $0x48] sm:$0xff] %vm387, %v870
      %903 = vst.msk [vmem:[#allocation3 + $0x50] sm:$0xff] %vm387, %v871
      %904 = vst.msk [vmem:[#allocation3 + $0x58] sm:$0xff] %vm387, %v872
      %905 = vst.msk [vmem:[#allocation3 + $0x60] sm:$0xff] %vm387, %v873
      %906 = vst.msk [vmem:[#allocation3 + $0x68] sm:$0xff] %vm387, %v874
      %907 = vst.msk [vmem:[#allocation3 + $0x70] sm:$0xff] %vm387, %v875
      %908 = vst.msk [vmem:[#allocation3 + $0x78] sm:$0xff] %vm387, %v876
      %909 = vst.msk [vmem:[#allocation3 + $0x80] sm:$0xff] %vm387, %v877
      %910 = vst.msk [vmem:[#allocation3 + $0x88] sm:$0xff] %vm387, %v878
      %911 = vst.msk [vmem:[#allocation3 + $0x90] sm:$0xff] %vm387, %v879
      %912 = vst.msk [vmem:[#allocation3 + $0x98] sm:$0xff] %vm387, %v880
      %913 = vst.msk [vmem:[#allocation3 + $0xa0] sm:$0xff] %vm387, %v881
      %914 = vst.msk [vmem:[#allocation3 + $0xa8] sm:$0xff] %vm387, %v882
      %915 = vst.msk [vmem:[#allocation3 + $0xb0] sm:$0xff] %vm387, %v883
      %916 = vst.msk [vmem:[#allocation3 + $0xb8] sm:$0xff] %vm387, %v884
      %917 = vst.msk [vmem:[#allocation3 + $0xc0] sm:$0xff] %vm387, %v885
      %918 = vst.msk [vmem:[#allocation3 + $0xc8] sm:$0xff] %vm387, %v886
      %919 = vst.msk [vmem:[#allocation3 + $0xd0] sm:$0xff] %vm387, %v887
      %920 = vst.msk [vmem:[#allocation3 + $0xd8] sm:$0xff] %vm387, %v888
      %921 = vst.msk [vmem:[#allocation3 + $0xe0] sm:$0xff] %vm387, %v889
      %922 = vst.msk [vmem:[#allocation3 + $0xe8] sm:$0xff] %vm387, %v890
      %923 = vst.msk [vmem:[#allocation3 + $0xf0] sm:$0xff] %vm387, %v891
      %924 = vst.msk [vmem:[#allocation3 + $0xf8] sm:$0xff] %vm387, %v892
      %s925 = scalar_lea.vmem %s1, 4
      %v926 = vld [vmem:[%s925] sm:$0x1]
      %v927 = vld [vmem:[%s396] sm:$0xff]
      %v928 = vld [vmem:[%s396 + $0x8] sm:$0xff]
      %v929 = vld [vmem:[%s396 + $0x18] sm:$0xff]
      %v930 = vld [vmem:[%s396 + $0x20] sm:$0xff]
      %v931 = vld [vmem:[%s396 + $0x30] sm:$0xff]
      %v932 = vld [vmem:[%s396 + $0x38] sm:$0xff]
      %v933 = vld [vmem:[%s396 + $0x48] sm:$0xff]
      %v934 = vld [vmem:[%s396 + $0x50] sm:$0xff]
      %v935 = vld [vmem:[%s396 + $0x60] sm:$0xff]
      %v936 = vld [vmem:[%s396 + $0x68] sm:$0xff]
      %v937 = vld [vmem:[%s396 + $0x78] sm:$0xff]
      %v938 = vld [vmem:[%s396 + $0x80] sm:$0xff]
      %v939 = vld [vmem:[%s396 + $0x90] sm:$0xff]
      %v940 = vld [vmem:[%s396 + $0x98] sm:$0xff]
      %v941 = vld [vmem:[%s396 + $0xa8] sm:$0xff]
      %v942 = vld [vmem:[%s396 + $0xb0] sm:$0xff]
      %v943 = vld [vmem:[%s396 + $0xc0] sm:$0xff]
      %v944 = vld [vmem:[%s396 + $0xc8] sm:$0xff]
      %v945 = vld [vmem:[%s396 + $0xd8] sm:$0xff]
      %v946 = vld [vmem:[%s396 + $0xe0] sm:$0xff]
      %v947 = vld [vmem:[%s396 + $0xf0] sm:$0xff]
      %v948 = vld [vmem:[%s396 + $0xf8] sm:$0xff]
      %v949 = vld [vmem:[%s396 + $0x108] sm:$0xff]
      %v950 = vld [vmem:[%s396 + $0x110] sm:$0xff]
      %v951 = vld [vmem:[%s396 + $0x120] sm:$0xff]
      %v952 = vld [vmem:[%s396 + $0x128] sm:$0xff]
      %v953 = vld [vmem:[%s396 + $0x138] sm:$0xff]
      %v954 = vld [vmem:[%s396 + $0x140] sm:$0xff]
      %v955 = vld [vmem:[%s396 + $0x150] sm:$0xff]
      %v956 = vld [vmem:[%s396 + $0x158] sm:$0xff]
      %v957 = vld [vmem:[%s396 + $0x168] sm:$0xff]
      %v958 = vld [vmem:[%s396 + $0x170] sm:$0xff]
      %v959 = vlaneseq
      %v960 = vshrl.u32 %v959, 7
      %v961 = vsub.s32 0, %v960
      %v962 = vrot.slane %v926, %v961
      %v963 = vmul.f32 %v927, %v962
      %v964 = vmul.f32 %v928, %v962
      %v965 = vmul.f32 %v929, %v962
      %v966 = vmul.f32 %v930, %v962
      %v967 = vmul.f32 %v931, %v962
      %v968 = vmul.f32 %v932, %v962
      %v969 = vmul.f32 %v933, %v962
      %v970 = vmul.f32 %v934, %v962
      %v971 = vmul.f32 %v935, %v962
      %v972 = vmul.f32 %v936, %v962
      %v973 = vmul.f32 %v937, %v962
      %v974 = vmul.f32 %v938, %v962
      %v975 = vmul.f32 %v939, %v962
      %v976 = vmul.f32 %v940, %v962
      %v977 = vmul.f32 %v941, %v962
      %v978 = vmul.f32 %v942, %v962
      %v979 = vmul.f32 %v943, %v962
      %v980 = vmul.f32 %v944, %v962
      %v981 = vmul.f32 %v945, %v962
      %v982 = vmul.f32 %v946, %v962
      %v983 = vmul.f32 %v947, %v962
      %v984 = vmul.f32 %v948, %v962
      %v985 = vmul.f32 %v949, %v962
      %v986 = vmul.f32 %v950, %v962
      %v987 = vmul.f32 %v951, %v962
      %v988 = vmul.f32 %v952, %v962
      %v989 = vmul.f32 %v953, %v962
      %v990 = vmul.f32 %v954, %v962
      %v991 = vmul.f32 %v955, %v962
      %v992 = vmul.f32 %v956, %v962
      %v993 = vmul.f32 %v957, %v962
      %v994 = vmul.f32 %v958, %v962
      %v995 = vld [vmem:[#allocation3] sm:$0xff]
      %v996 = vld [vmem:[#allocation3 + $0x8] sm:$0xff]
      %v997 = vld [vmem:[#allocation3 + $0x10] sm:$0xff]
      %v998 = vld [vmem:[#allocation3 + $0x18] sm:$0xff]
      %v999 = vld [vmem:[#allocation3 + $0x20] sm:$0xff]
      %v1000 = vld [vmem:[#allocation3 + $0x28] sm:$0xff]
      %v1001 = vld [vmem:[#allocation3 + $0x30] sm:$0xff]
      %v1002 = vld [vmem:[#allocation3 + $0x38] sm:$0xff]
      %v1003 = vld [vmem:[#allocation3 + $0x40] sm:$0xff]
      %v1004 = vld [vmem:[#allocation3 + $0x48] sm:$0xff]
      %v1005 = vld [vmem:[#allocation3 + $0x50] sm:$0xff]
      %v1006 = vld [vmem:[#allocation3 + $0x58] sm:$0xff]
      %v1007 = vld [vmem:[#allocation3 + $0x60] sm:$0xff]
      %v1008 = vld [vmem:[#allocation3 + $0x68] sm:$0xff]
      %v1009 = vld [vmem:[#allocation3 + $0x70] sm:$0xff]
      %v1010 = vld [vmem:[#allocation3 + $0x78] sm:$0xff]
      %v1011 = vld [vmem:[#allocation3 + $0x80] sm:$0xff]
      %v1012 = vld [vmem:[#allocation3 + $0x88] sm:$0xff]
      %v1013 = vld [vmem:[#allocation3 + $0x90] sm:$0xff]
      %v1014 = vld [vmem:[#allocation3 + $0x98] sm:$0xff]
      %v1015 = vld [vmem:[#allocation3 + $0xa0] sm:$0xff]
      %v1016 = vld [vmem:[#allocation3 + $0xa8] sm:$0xff]
      %v1017 = vld [vmem:[#allocation3 + $0xb0] sm:$0xff]
      %v1018 = vld [vmem:[#allocation3 + $0xb8] sm:$0xff]
      %v1019 = vld [vmem:[#allocation3 + $0xc0] sm:$0xff]
      %v1020 = vld [vmem:[#allocation3 + $0xc8] sm:$0xff]
      %v1021 = vld [vmem:[#allocation3 + $0xd0] sm:$0xff]
      %v1022 = vld [vmem:[#allocation3 + $0xd8] sm:$0xff]
      %v1023 = vld [vmem:[#allocation3 + $0xe0] sm:$0xff]
      %v1024 = vld [vmem:[#allocation3 + $0xe8] sm:$0xff]
      %v1025 = vld [vmem:[#allocation3 + $0xf0] sm:$0xff]
      %v1026 = vld [vmem:[#allocation3 + $0xf8] sm:$0xff]
      %v1027 = vadd.f32 %v995, %v963
      %v1028 = vadd.f32 %v996, %v964
      %v1029 = vadd.f32 %v997, %v965
      %v1030 = vadd.f32 %v998, %v966
      %v1031 = vadd.f32 %v999, %v967
      %v1032 = vadd.f32 %v1000, %v968
      %v1033 = vadd.f32 %v1001, %v969
      %v1034 = vadd.f32 %v1002, %v970
      %v1035 = vadd.f32 %v1003, %v971
      %v1036 = vadd.f32 %v1004, %v972
      %v1037 = vadd.f32 %v1005, %v973
      %v1038 = vadd.f32 %v1006, %v974
      %v1039 = vadd.f32 %v1007, %v975
      %v1040 = vadd.f32 %v1008, %v976
      %v1041 = vadd.f32 %v1009, %v977
      %v1042 = vadd.f32 %v1010, %v978
      %v1043 = vadd.f32 %v1011, %v979
      %v1044 = vadd.f32 %v1012, %v980
      %v1045 = vadd.f32 %v1013, %v981
      %v1046 = vadd.f32 %v1014, %v982
      %v1047 = vadd.f32 %v1015, %v983
      %v1048 = vadd.f32 %v1016, %v984
      %v1049 = vadd.f32 %v1017, %v985
      %v1050 = vadd.f32 %v1018, %v986
      %v1051 = vadd.f32 %v1019, %v987
      %v1052 = vadd.f32 %v1020, %v988
      %v1053 = vadd.f32 %v1021, %v989
      %v1054 = vadd.f32 %v1022, %v990
      %v1055 = vadd.f32 %v1023, %v991
      %v1056 = vadd.f32 %v1024, %v992
      %v1057 = vadd.f32 %v1025, %v993
      %v1058 = vadd.f32 %v1026, %v994
      %1059 = vst.msk [vmem:[#allocation3] sm:$0xff] %vm387, %v1027
      %1060 = vst.msk [vmem:[#allocation3 + $0x8] sm:$0xff] %vm387, %v1028
      %1061 = vst.msk [vmem:[#allocation3 + $0x10] sm:$0xff] %vm387, %v1029
      %1062 = vst.msk [vmem:[#allocation3 + $0x18] sm:$0xff] %vm387, %v1030
      %1063 = vst.msk [vmem:[#allocation3 + $0x20] sm:$0xff] %vm387, %v1031
      %1064 = vst.msk [vmem:[#allocation3 + $0x28] sm:$0xff] %vm387, %v1032
      %1065 = vst.msk [vmem:[#allocation3 + $0x30] sm:$0xff] %vm387, %v1033
      %1066 = vst.msk [vmem:[#allocation3 + $0x38] sm:$0xff] %vm387, %v1034
      %1067 = vst.msk [vmem:[#allocation3 + $0x40] sm:$0xff] %vm387, %v1035
      %1068 = vst.msk [vmem:[#allocation3 + $0x48] sm:$0xff] %vm387, %v1036
      %1069 = vst.msk [vmem:[#allocation3 + $0x50] sm:$0xff] %vm387, %v1037
      %1070 = vst.msk [vmem:[#allocation3 + $0x58] sm:$0xff] %vm387, %v1038
      %1071 = vst.msk [vmem:[#allocation3 + $0x60] sm:$0xff] %vm387, %v1039
      %1072 = vst.msk [vmem:[#allocation3 + $0x68] sm:$0xff] %vm387, %v1040
      %1073 = vst.msk [vmem:[#allocation3 + $0x70] sm:$0xff] %vm387, %v1041
      %1074 = vst.msk [vmem:[#allocation3 + $0x78] sm:$0xff] %vm387, %v1042
      %1075 = vst.msk [vmem:[#allocation3 + $0x80] sm:$0xff] %vm387, %v1043
      %1076 = vst.msk [vmem:[#allocation3 + $0x88] sm:$0xff] %vm387, %v1044
      %1077 = vst.msk [vmem:[#allocation3 + $0x90] sm:$0xff] %vm387, %v1045
      %1078 = vst.msk [vmem:[#allocation3 + $0x98] sm:$0xff] %vm387, %v1046
      %1079 = vst.msk [vmem:[#allocation3 + $0xa0] sm:$0xff] %vm387, %v1047
      %1080 = vst.msk [vmem:[#allocation3 + $0xa8] sm:$0xff] %vm387, %v1048
      %1081 = vst.msk [vmem:[#allocation3 + $0xb0] sm:$0xff] %vm387, %v1049
      %1082 = vst.msk [vmem:[#allocation3 + $0xb8] sm:$0xff] %vm387, %v1050
      %1083 = vst.msk [vmem:[#allocation3 + $0xc0] sm:$0xff] %vm387, %v1051
      %1084 = vst.msk [vmem:[#allocation3 + $0xc8] sm:$0xff] %vm387, %v1052
      %1085 = vst.msk [vmem:[#allocation3 + $0xd0] sm:$0xff] %vm387, %v1053
      %1086 = vst.msk [vmem:[#allocation3 + $0xd8] sm:$0xff] %vm387, %v1054
      %1087 = vst.msk [vmem:[#allocation3 + $0xe0] sm:$0xff] %vm387, %v1055
      %1088 = vst.msk [vmem:[#allocation3 + $0xe8] sm:$0xff] %vm387, %v1056
      %1089 = vst.msk [vmem:[#allocation3 + $0xf0] sm:$0xff] %vm387, %v1057
      %1090 = vst.msk [vmem:[#allocation3 + $0xf8] sm:$0xff] %vm387, %v1058
      %v1091 = vld [vmem:[%s925 + $0x1] sm:$0x1]
      %v1092 = vld [vmem:[%s396 + $0x1] sm:$0xff]
      %v1093 = vld [vmem:[%s396 + $0x9] sm:$0xff]
      %v1094 = vld [vmem:[%s396 + $0x19] sm:$0xff]
      %v1095 = vld [vmem:[%s396 + $0x21] sm:$0xff]
      %v1096 = vld [vmem:[%s396 + $0x31] sm:$0xff]
      %v1097 = vld [vmem:[%s396 + $0x39] sm:$0xff]
      %v1098 = vld [vmem:[%s396 + $0x49] sm:$0xff]
      %v1099 = vld [vmem:[%s396 + $0x51] sm:$0xff]
      %v1100 = vld [vmem:[%s396 + $0x61] sm:$0xff]
      %v1101 = vld [vmem:[%s396 + $0x69] sm:$0xff]
      %v1102 = vld [vmem:[%s396 + $0x79] sm:$0xff]
      %v1103 = vld [vmem:[%s396 + $0x81] sm:$0xff]
      %v1104 = vld [vmem:[%s396 + $0x91] sm:$0xff]
      %v1105 = vld [vmem:[%s396 + $0x99] sm:$0xff]
      %v1106 = vld [vmem:[%s396 + $0xa9] sm:$0xff]
      %v1107 = vld [vmem:[%s396 + $0xb1] sm:$0xff]
      %v1108 = vld [vmem:[%s396 + $0xc1] sm:$0xff]
      %v1109 = vld [vmem:[%s396 + $0xc9] sm:$0xff]
      %v1110 = vld [vmem:[%s396 + $0xd9] sm:$0xff]
      %v1111 = vld [vmem:[%s396 + $0xe1] sm:$0xff]
      %v1112 = vld [vmem:[%s396 + $0xf1] sm:$0xff]
      %v1113 = vld [vmem:[%s396 + $0xf9] sm:$0xff]
      %v1114 = vld [vmem:[%s396 + $0x109] sm:$0xff]
      %v1115 = vld [vmem:[%s396 + $0x111] sm:$0xff]
      %v1116 = vld [vmem:[%s396 + $0x121] sm:$0xff]
      %v1117 = vld [vmem:[%s396 + $0x129] sm:$0xff]
      %v1118 = vld [vmem:[%s396 + $0x139] sm:$0xff]
      %v1119 = vld [vmem:[%s396 + $0x141] sm:$0xff]
      %v1120 = vld [vmem:[%s396 + $0x151] sm:$0xff]
      %v1121 = vld [vmem:[%s396 + $0x159] sm:$0xff]
      %v1122 = vld [vmem:[%s396 + $0x169] sm:$0xff]
      %v1123 = vld [vmem:[%s396 + $0x171] sm:$0xff]
      %v1124 = vlaneseq
      %v1125 = vshrl.u32 %v1124, 7
      %v1126 = vsub.s32 0, %v1125
      %v1127 = vrot.slane %v1091, %v1126
      %v1128 = vmul.f32 %v1092, %v1127
      %v1129 = vmul.f32 %v1093, %v1127
      %v1130 = vmul.f32 %v1094, %v1127
      %v1131 = vmul.f32 %v1095, %v1127
      %v1132 = vmul.f32 %v1096, %v1127
      %v1133 = vmul.f32 %v1097, %v1127
      %v1134 = vmul.f32 %v1098, %v1127
      %v1135 = vmul.f32 %v1099, %v1127
      %v1136 = vmul.f32 %v1100, %v1127
      %v1137 = vmul.f32 %v1101, %v1127
      %v1138 = vmul.f32 %v1102, %v1127
      %v1139 = vmul.f32 %v1103, %v1127
      %v1140 = vmul.f32 %v1104, %v1127
      %v1141 = vmul.f32 %v1105, %v1127
      %v1142 = vmul.f32 %v1106, %v1127
      %v1143 = vmul.f32 %v1107, %v1127
      %v1144 = vmul.f32 %v1108, %v1127
      %v1145 = vmul.f32 %v1109, %v1127
      %v1146 = vmul.f32 %v1110, %v1127
      %v1147 = vmul.f32 %v1111, %v1127
      %v1148 = vmul.f32 %v1112, %v1127
      %v1149 = vmul.f32 %v1113, %v1127
      %v1150 = vmul.f32 %v1114, %v1127
      %v1151 = vmul.f32 %v1115, %v1127
      %v1152 = vmul.f32 %v1116, %v1127
      %v1153 = vmul.f32 %v1117, %v1127
      %v1154 = vmul.f32 %v1118, %v1127
      %v1155 = vmul.f32 %v1119, %v1127
      %v1156 = vmul.f32 %v1120, %v1127
      %v1157 = vmul.f32 %v1121, %v1127
      %v1158 = vmul.f32 %v1122, %v1127
      %v1159 = vmul.f32 %v1123, %v1127
      %v1160 = vld [vmem:[#allocation3] sm:$0xff]
      %v1161 = vld [vmem:[#allocation3 + $0x8] sm:$0xff]
      %v1162 = vld [vmem:[#allocation3 + $0x10] sm:$0xff]
      %v1163 = vld [vmem:[#allocation3 + $0x18] sm:$0xff]
      %v1164 = vld [vmem:[#allocation3 + $0x20] sm:$0xff]
      %v1165 = vld [vmem:[#allocation3 + $0x28] sm:$0xff]
      %v1166 = vld [vmem:[#allocation3 + $0x30] sm:$0xff]
      %v1167 = vld [vmem:[#allocation3 + $0x38] sm:$0xff]
      %v1168 = vld [vmem:[#allocation3 + $0x40] sm:$0xff]
      %v1169 = vld [vmem:[#allocation3 + $0x48] sm:$0xff]
      %v1170 = vld [vmem:[#allocation3 + $0x50] sm:$0xff]
      %v1171 = vld [vmem:[#allocation3 + $0x58] sm:$0xff]
      %v1172 = vld [vmem:[#allocation3 + $0x60] sm:$0xff]
      %v1173 = vld [vmem:[#allocation3 + $0x68] sm:$0xff]
      %v1174 = vld [vmem:[#allocation3 + $0x70] sm:$0xff]
      %v1175 = vld [vmem:[#allocation3 + $0x78] sm:$0xff]
      %v1176 = vld [vmem:[#allocation3 + $0x80] sm:$0xff]
      %v1177 = vld [vmem:[#allocation3 + $0x88] sm:$0xff]
      %v1178 = vld [vmem:[#allocation3 + $0x90] sm:$0xff]
      %v1179 = vld [vmem:[#allocation3 + $0x98] sm:$0xff]
      %v1180 = vld [vmem:[#allocation3 + $0xa0] sm:$0xff]
      %v1181 = vld [vmem:[#allocation3 + $0xa8] sm:$0xff]
      %v1182 = vld [vmem:[#allocation3 + $0xb0] sm:$0xff]
      %v1183 = vld [vmem:[#allocation3 + $0xb8] sm:$0xff]
      %v1184 = vld [vmem:[#allocation3 + $0xc0] sm:$0xff]
      %v1185 = vld [vmem:[#allocation3 + $0xc8] sm:$0xff]
      %v1186 = vld [vmem:[#allocation3 + $0xd0] sm:$0xff]
      %v1187 = vld [vmem:[#allocation3 + $0xd8] sm:$0xff]
      %v1188 = vld [vmem:[#allocation3 + $0xe0] sm:$0xff]
      %v1189 = vld [vmem:[#allocation3 + $0xe8] sm:$0xff]
      %v1190 = vld [vmem:[#allocation3 + $0xf0] sm:$0xff]
      %v1191 = vld [vmem:[#allocation3 + $0xf8] sm:$0xff]
      %v1192 = vadd.f32 %v1160, %v1128
      %v1193 = vadd.f32 %v1161, %v1129
      %v1194 = vadd.f32 %v1162, %v1130
      %v1195 = vadd.f32 %v1163, %v1131
      %v1196 = vadd.f32 %v1164, %v1132
      %v1197 = vadd.f32 %v1165, %v1133
      %v1198 = vadd.f32 %v1166, %v1134
      %v1199 = vadd.f32 %v1167, %v1135
      %v1200 = vadd.f32 %v1168, %v1136
      %v1201 = vadd.f32 %v1169, %v1137
      %v1202 = vadd.f32 %v1170, %v1138
      %v1203 = vadd.f32 %v1171, %v1139
      %v1204 = vadd.f32 %v1172, %v1140
      %v1205 = vadd.f32 %v1173, %v1141
      %v1206 = vadd.f32 %v1174, %v1142
      %v1207 = vadd.f32 %v1175, %v1143
      %v1208 = vadd.f32 %v1176, %v1144
      %v1209 = vadd.f32 %v1177, %v1145
      %v1210 = vadd.f32 %v1178, %v1146
      %v1211 = vadd.f32 %v1179, %v1147
      %v1212 = vadd.f32 %v1180, %v1148
      %v1213 = vadd.f32 %v1181, %v1149
      %v1214 = vadd.f32 %v1182, %v1150
      %v1215 = vadd.f32 %v1183, %v1151
      %v1216 = vadd.f32 %v1184, %v1152
      %v1217 = vadd.f32 %v1185, %v1153
      %v1218 = vadd.f32 %v1186, %v1154
      %v1219 = vadd.f32 %v1187, %v1155
      %v1220 = vadd.f32 %v1188, %v1156
      %v1221 = vadd.f32 %v1189, %v1157
      %v1222 = vadd.f32 %v1190, %v1158
      %v1223 = vadd.f32 %v1191, %v1159
      %1224 = vst.msk [vmem:[#allocation3] sm:$0xff] %vm387, %v1192
      %1225 = vst.msk [vmem:[#allocation3 + $0x8] sm:$0xff] %vm387, %v1193
      %1226 = vst.msk [vmem:[#allocation3 + $0x10] sm:$0xff] %vm387, %v1194
      %1227 = vst.msk [vmem:[#allocation3 + $0x18] sm:$0xff] %vm387, %v1195
      %1228 = vst.msk [vmem:[#allocation3 + $0x20] sm:$0xff] %vm387, %v1196
      %1229 = vst.msk [vmem:[#allocation3 + $0x28] sm:$0xff] %vm387, %v1197
      %1230 = vst.msk [vmem:[#allocation3 + $0x30] sm:$0xff] %vm387, %v1198
      %1231 = vst.msk [vmem:[#allocation3 + $0x38] sm:$0xff] %vm387, %v1199
      %1232 = vst.msk [vmem:[#allocation3 + $0x40] sm:$0xff] %vm387, %v1200
      %1233 = vst.msk [vmem:[#allocation3 + $0x48] sm:$0xff] %vm387, %v1201
      %1234 = vst.msk [vmem:[#allocation3 + $0x50] sm:$0xff] %vm387, %v1202
      %1235 = vst.msk [vmem:[#allocation3 + $0x58] sm:$0xff] %vm387, %v1203
      %1236 = vst.msk [vmem:[#allocation3 + $0x60] sm:$0xff] %vm387, %v1204
      %1237 = vst.msk [vmem:[#allocation3 + $0x68] sm:$0xff] %vm387, %v1205
      %1238 = vst.msk [vmem:[#allocation3 + $0x70] sm:$0xff] %vm387, %v1206
      %1239 = vst.msk [vmem:[#allocation3 + $0x78] sm:$0xff] %vm387, %v1207
      %1240 = vst.msk [vmem:[#allocation3 + $0x80] sm:$0xff] %vm387, %v1208
      %1241 = vst.msk [vmem:[#allocation3 + $0x88] sm:$0xff] %vm387, %v1209
      %1242 = vst.msk [vmem:[#allocation3 + $0x90] sm:$0xff] %vm387, %v1210
      %1243 = vst.msk [vmem:[#allocation3 + $0x98] sm:$0xff] %vm387, %v1211
      %1244 = vst.msk [vmem:[#allocation3 + $0xa0] sm:$0xff] %vm387, %v1212
      %1245 = vst.msk [vmem:[#allocation3 + $0xa8] sm:$0xff] %vm387, %v1213
      %1246 = vst.msk [vmem:[#allocation3 + $0xb0] sm:$0xff] %vm387, %v1214
      %1247 = vst.msk [vmem:[#allocation3 + $0xb8] sm:$0xff] %vm387, %v1215
      %1248 = vst.msk [vmem:[#allocation3 + $0xc0] sm:$0xff] %vm387, %v1216
      %1249 = vst.msk [vmem:[#allocation3 + $0xc8] sm:$0xff] %vm387, %v1217
      %1250 = vst.msk [vmem:[#allocation3 + $0xd0] sm:$0xff] %vm387, %v1218
      %1251 = vst.msk [vmem:[#allocation3 + $0xd8] sm:$0xff] %vm387, %v1219
      %1252 = vst.msk [vmem:[#allocation3 + $0xe0] sm:$0xff] %vm387, %v1220
      %1253 = vst.msk [vmem:[#allocation3 + $0xe8] sm:$0xff] %vm387, %v1221
      %1254 = vst.msk [vmem:[#allocation3 + $0xf0] sm:$0xff] %vm387, %v1222
      %1255 = vst.msk [vmem:[#allocation3 + $0xf8] sm:$0xff] %vm387, %v1223
      %v1256 = vld [vmem:[%s925 + $0x2] sm:$0x1]
      %v1257 = vld [vmem:[%s396 + $0x2] sm:$0xff]
      %v1258 = vld [vmem:[%s396 + $0xa] sm:$0xff]
      %v1259 = vld [vmem:[%s396 + $0x1a] sm:$0xff]
      %v1260 = vld [vmem:[%s396 + $0x22] sm:$0xff]
      %v1261 = vld [vmem:[%s396 + $0x32] sm:$0xff]
      %v1262 = vld [vmem:[%s396 + $0x3a] sm:$0xff]
      %v1263 = vld [vmem:[%s396 + $0x4a] sm:$0xff]
      %v1264 = vld [vmem:[%s396 + $0x52] sm:$0xff]
      %v1265 = vld [vmem:[%s396 + $0x62] sm:$0xff]
      %v1266 = vld [vmem:[%s396 + $0x6a] sm:$0xff]
      %v1267 = vld [vmem:[%s396 + $0x7a] sm:$0xff]
      %v1268 = vld [vmem:[%s396 + $0x82] sm:$0xff]
      %v1269 = vld [vmem:[%s396 + $0x92] sm:$0xff]
      %v1270 = vld [vmem:[%s396 + $0x9a] sm:$0xff]
      %v1271 = vld [vmem:[%s396 + $0xaa] sm:$0xff]
      %v1272 = vld [vmem:[%s396 + $0xb2] sm:$0xff]
      %v1273 = vld [vmem:[%s396 + $0xc2] sm:$0xff]
      %v1274 = vld [vmem:[%s396 + $0xca] sm:$0xff]
      %v1275 = vld [vmem:[%s396 + $0xda] sm:$0xff]
      %v1276 = vld [vmem:[%s396 + $0xe2] sm:$0xff]
      %v1277 = vld [vmem:[%s396 + $0xf2] sm:$0xff]
      %v1278 = vld [vmem:[%s396 + $0xfa] sm:$0xff]
      %v1279 = vld [vmem:[%s396 + $0x10a] sm:$0xff]
      %v1280 = vld [vmem:[%s396 + $0x112] sm:$0xff]
      %v1281 = vld [vmem:[%s396 + $0x122] sm:$0xff]
      %v1282 = vld [vmem:[%s396 + $0x12a] sm:$0xff]
      %v1283 = vld [vmem:[%s396 + $0x13a] sm:$0xff]
      %v1284 = vld [vmem:[%s396 + $0x142] sm:$0xff]
      %v1285 = vld [vmem:[%s396 + $0x152] sm:$0xff]
      %v1286 = vld [vmem:[%s396 + $0x15a] sm:$0xff]
      %v1287 = vld [vmem:[%s396 + $0x16a] sm:$0xff]
      %v1288 = vld [vmem:[%s396 + $0x172] sm:$0xff]
      %v1289 = vlaneseq
      %v1290 = vshrl.u32 %v1289, 7
      %v1291 = vsub.s32 0, %v1290
      %v1292 = vrot.slane %v1256, %v1291
      %v1293 = vmul.f32 %v1257, %v1292
      %v1294 = vmul.f32 %v1258, %v1292
      %v1295 = vmul.f32 %v1259, %v1292
      %v1296 = vmul.f32 %v1260, %v1292
      %v1297 = vmul.f32 %v1261, %v1292
      %v1298 = vmul.f32 %v1262, %v1292
      %v1299 = vmul.f32 %v1263, %v1292
      %v1300 = vmul.f32 %v1264, %v1292
      %v1301 = vmul.f32 %v1265, %v1292
      %v1302 = vmul.f32 %v1266, %v1292
      %v1303 = vmul.f32 %v1267, %v1292
      %v1304 = vmul.f32 %v1268, %v1292
      %v1305 = vmul.f32 %v1269, %v1292
      %v1306 = vmul.f32 %v1270, %v1292
      %v1307 = vmul.f32 %v1271, %v1292
      %v1308 = vmul.f32 %v1272, %v1292
      %v1309 = vmul.f32 %v1273, %v1292
      %v1310 = vmul.f32 %v1274, %v1292
      %v1311 = vmul.f32 %v1275, %v1292
      %v1312 = vmul.f32 %v1276, %v1292
      %v1313 = vmul.f32 %v1277, %v1292
      %v1314 = vmul.f32 %v1278, %v1292
      %v1315 = vmul.f32 %v1279, %v1292
      %v1316 = vmul.f32 %v1280, %v1292
      %v1317 = vmul.f32 %v1281, %v1292
      %v1318 = vmul.f32 %v1282, %v1292
      %v1319 = vmul.f32 %v1283, %v1292
      %v1320 = vmul.f32 %v1284, %v1292
      %v1321 = vmul.f32 %v1285, %v1292
      %v1322 = vmul.f32 %v1286, %v1292
      %v1323 = vmul.f32 %v1287, %v1292
      %v1324 = vmul.f32 %v1288, %v1292
      %v1325 = vld [vmem:[#allocation3] sm:$0xff]
      %v1326 = vld [vmem:[#allocation3 + $0x8] sm:$0xff]
      %v1327 = vld [vmem:[#allocation3 + $0x10] sm:$0xff]
      %v1328 = vld [vmem:[#allocation3 + $0x18] sm:$0xff]
      %v1329 = vld [vmem:[#allocation3 + $0x20] sm:$0xff]
      %v1330 = vld [vmem:[#allocation3 + $0x28] sm:$0xff]
      %v1331 = vld [vmem:[#allocation3 + $0x30] sm:$0xff]
      %v1332 = vld [vmem:[#allocation3 + $0x38] sm:$0xff]
      %v1333 = vld [vmem:[#allocation3 + $0x40] sm:$0xff]
      %v1334 = vld [vmem:[#allocation3 + $0x48] sm:$0xff]
      %v1335 = vld [vmem:[#allocation3 + $0x50] sm:$0xff]
      %v1336 = vld [vmem:[#allocation3 + $0x58] sm:$0xff]
      %v1337 = vld [vmem:[#allocation3 + $0x60] sm:$0xff]
      %v1338 = vld [vmem:[#allocation3 + $0x68] sm:$0xff]
      %v1339 = vld [vmem:[#allocation3 + $0x70] sm:$0xff]
      %v1340 = vld [vmem:[#allocation3 + $0x78] sm:$0xff]
      %v1341 = vld [vmem:[#allocation3 + $0x80] sm:$0xff]
      %v1342 = vld [vmem:[#allocation3 + $0x88] sm:$0xff]
      %v1343 = vld [vmem:[#allocation3 + $0x90] sm:$0xff]
      %v1344 = vld [vmem:[#allocation3 + $0x98] sm:$0xff]
      %v1345 = vld [vmem:[#allocation3 + $0xa0] sm:$0xff]
      %v1346 = vld [vmem:[#allocation3 + $0xa8] sm:$0xff]
      %v1347 = vld [vmem:[#allocation3 + $0xb0] sm:$0xff]
      %v1348 = vld [vmem:[#allocation3 + $0xb8] sm:$0xff]
      %v1349 = vld [vmem:[#allocation3 + $0xc0] sm:$0xff]
      %v1350 = vld [vmem:[#allocation3 + $0xc8] sm:$0xff]
      %v1351 = vld [vmem:[#allocation3 + $0xd0] sm:$0xff]
      %v1352 = vld [vmem:[#allocation3 + $0xd8] sm:$0xff]
      %v1353 = vld [vmem:[#allocation3 + $0xe0] sm:$0xff]
      %v1354 = vld [vmem:[#allocation3 + $0xe8] sm:$0xff]
      %v1355 = vld [vmem:[#allocation3 + $0xf0] sm:$0xff]
      %v1356 = vld [vmem:[#allocation3 + $0xf8] sm:$0xff]
      %v1357 = vadd.f32 %v1325, %v1293
      %v1358 = vadd.f32 %v1326, %v1294
      %v1359 = vadd.f32 %v1327, %v1295
      %v1360 = vadd.f32 %v1328, %v1296
      %v1361 = vadd.f32 %v1329, %v1297
      %v1362 = vadd.f32 %v1330, %v1298
      %v1363 = vadd.f32 %v1331, %v1299
      %v1364 = vadd.f32 %v1332, %v1300
      %v1365 = vadd.f32 %v1333, %v1301
      %v1366 = vadd.f32 %v1334, %v1302
      %v1367 = vadd.f32 %v1335, %v1303
      %v1368 = vadd.f32 %v1336, %v1304
      %v1369 = vadd.f32 %v1337, %v1305
      %v1370 = vadd.f32 %v1338, %v1306
      %v1371 = vadd.f32 %v1339, %v1307
      %v1372 = vadd.f32 %v1340, %v1308
      %v1373 = vadd.f32 %v1341, %v1309
      %v1374 = vadd.f32 %v1342, %v1310
      %v1375 = vadd.f32 %v1343, %v1311
      %v1376 = vadd.f32 %v1344, %v1312
      %v1377 = vadd.f32 %v1345, %v1313
      %v1378 = vadd.f32 %v1346, %v1314
      %v1379 = vadd.f32 %v1347, %v1315
      %v1380 = vadd.f32 %v1348, %v1316
      %v1381 = vadd.f32 %v1349, %v1317
      %v1382 = vadd.f32 %v1350, %v1318
      %v1383 = vadd.f32 %v1351, %v1319
      %v1384 = vadd.f32 %v1352, %v1320
      %v1385 = vadd.f32 %v1353, %v1321
      %v1386 = vadd.f32 %v1354, %v1322
      %v1387 = vadd.f32 %v1355, %v1323
      %v1388 = vadd.f32 %v1356, %v1324
      %1389 = vst.msk [vmem:[#allocation3] sm:$0xff] %vm387, %v1357
      %1390 = vst.msk [vmem:[#allocation3 + $0x8] sm:$0xff] %vm387, %v1358
      %1391 = vst.msk [vmem:[#allocation3 + $0x10] sm:$0xff] %vm387, %v1359
      %1392 = vst.msk [vmem:[#allocation3 + $0x18] sm:$0xff] %vm387, %v1360
      %1393 = vst.msk [vmem:[#allocation3 + $0x20] sm:$0xff] %vm387, %v1361
      %1394 = vst.msk [vmem:[#allocation3 + $0x28] sm:$0xff] %vm387, %v1362
      %1395 = vst.msk [vmem:[#allocation3 + $0x30] sm:$0xff] %vm387, %v1363
      %1396 = vst.msk [vmem:[#allocation3 + $0x38] sm:$0xff] %vm387, %v1364
      %1397 = vst.msk [vmem:[#allocation3 + $0x40] sm:$0xff] %vm387, %v1365
      %1398 = vst.msk [vmem:[#allocation3 + $0x48] sm:$0xff] %vm387, %v1366
      %1399 = vst.msk [vmem:[#allocation3 + $0x50] sm:$0xff] %vm387, %v1367
      %1400 = vst.msk [vmem:[#allocation3 + $0x58] sm:$0xff] %vm387, %v1368
      %1401 = vst.msk [vmem:[#allocation3 + $0x60] sm:$0xff] %vm387, %v1369
      %1402 = vst.msk [vmem:[#allocation3 + $0x68] sm:$0xff] %vm387, %v1370
      %1403 = vst.msk [vmem:[#allocation3 + $0x70] sm:$0xff] %vm387, %v1371
      %1404 = vst.msk [vmem:[#allocation3 + $0x78] sm:$0xff] %vm387, %v1372
      %1405 = vst.msk [vmem:[#allocation3 + $0x80] sm:$0xff] %vm387, %v1373
      %1406 = vst.msk [vmem:[#allocation3 + $0x88] sm:$0xff] %vm387, %v1374
      %1407 = vst.msk [vmem:[#allocation3 + $0x90] sm:$0xff] %vm387, %v1375
      %1408 = vst.msk [vmem:[#allocation3 + $0x98] sm:$0xff] %vm387, %v1376
      %1409 = vst.msk [vmem:[#allocation3 + $0xa0] sm:$0xff] %vm387, %v1377
      %1410 = vst.msk [vmem:[#allocation3 + $0xa8] sm:$0xff] %vm387, %v1378
      %1411 = vst.msk [vmem:[#allocation3 + $0xb0] sm:$0xff] %vm387, %v1379
      %1412 = vst.msk [vmem:[#allocation3 + $0xb8] sm:$0xff] %vm387, %v1380
      %1413 = vst.msk [vmem:[#allocation3 + $0xc0] sm:$0xff] %vm387, %v1381
      %1414 = vst.msk [vmem:[#allocation3 + $0xc8] sm:$0xff] %vm387, %v1382
      %1415 = vst.msk [vmem:[#allocation3 + $0xd0] sm:$0xff] %vm387, %v1383
      %1416 = vst.msk [vmem:[#allocation3 + $0xd8] sm:$0xff] %vm387, %v1384
      %1417 = vst.msk [vmem:[#allocation3 + $0xe0] sm:$0xff] %vm387, %v1385
      %1418 = vst.msk [vmem:[#allocation3 + $0xe8] sm:$0xff] %vm387, %v1386
      %1419 = vst.msk [vmem:[#allocation3 + $0xf0] sm:$0xff] %vm387, %v1387
      %1420 = vst.msk [vmem:[#allocation3 + $0xf8] sm:$0xff] %vm387, %v1388
      %s1421 = scalar_lea.vmem %s1, 8
      %v1422 = vld [vmem:[%s1421] sm:$0x1]
      %s1423 = scalar_lea.vmem [#allocation2], 48
      %v1424 = vld [vmem:[%s1423] sm:$0xff]
      %v1425 = vld [vmem:[%s1423 + $0x8] sm:$0xff]
      %v1426 = vld [vmem:[%s1423 + $0x18] sm:$0xff]
      %v1427 = vld [vmem:[%s1423 + $0x20] sm:$0xff]
      %v1428 = vld [vmem:[%s1423 + $0x30] sm:$0xff]
      %v1429 = vld [vmem:[%s1423 + $0x38] sm:$0xff]
      %v1430 = vld [vmem:[%s1423 + $0x48] sm:$0xff]
      %v1431 = vld [vmem:[%s1423 + $0x50] sm:$0xff]
      %v1432 = vld [vmem:[%s1423 + $0x60] sm:$0xff]
      %v1433 = vld [vmem:[%s1423 + $0x68] sm:$0xff]
      %v1434 = vld [vmem:[%s1423 + $0x78] sm:$0xff]
      %v1435 = vld [vmem:[%s1423 + $0x80] sm:$0xff]
      %v1436 = vld [vmem:[%s1423 + $0x90] sm:$0xff]
      %v1437 = vld [vmem:[%s1423 + $0x98] sm:$0xff]
      %v1438 = vld [vmem:[%s1423 + $0xa8] sm:$0xff]
      %v1439 = vld [vmem:[%s1423 + $0xb0] sm:$0xff]
      %v1440 = vld [vmem:[%s1423 + $0xc0] sm:$0xff]
      %v1441 = vld [vmem:[%s1423 + $0xc8] sm:$0xff]
      %v1442 = vld [vmem:[%s1423 + $0xd8] sm:$0xff]
      %v1443 = vld [vmem:[%s1423 + $0xe0] sm:$0xff]
      %v1444 = vld [vmem:[%s1423 + $0xf0] sm:$0xff]
      %v1445 = vld [vmem:[%s1423 + $0xf8] sm:$0xff]
      %v1446 = vld [vmem:[%s1423 + $0x108] sm:$0xff]
      %v1447 = vld [vmem:[%s1423 + $0x110] sm:$0xff]
      %v1448 = vld [vmem:[%s1423 + $0x120] sm:$0xff]
      %v1449 = vld [vmem:[%s1423 + $0x128] sm:$0xff]
      %v1450 = vld [vmem:[%s1423 + $0x138] sm:$0xff]
      %v1451 = vld [vmem:[%s1423 + $0x140] sm:$0xff]
      %v1452 = vld [vmem:[%s1423 + $0x150] sm:$0xff]
      %v1453 = vld [vmem:[%s1423 + $0x158] sm:$0xff]
      %v1454 = vld [vmem:[%s1423 + $0x168] sm:$0xff]
      %v1455 = vld [vmem:[%s1423 + $0x170] sm:$0xff]
      %v1456 = vlaneseq
      %v1457 = vshrl.u32 %v1456, 7
      %v1458 = vsub.s32 0, %v1457
      %v1459 = vrot.slane %v1422, %v1458
      %v1460 = vmul.f32 %v1424, %v1459
      %v1461 = vmul.f32 %v1425, %v1459
      %v1462 = vmul.f32 %v1426, %v1459
      %v1463 = vmul.f32 %v1427, %v1459
      %v1464 = vmul.f32 %v1428, %v1459
      %v1465 = vmul.f32 %v1429, %v1459
      %v1466 = vmul.f32 %v1430, %v1459
      %v1467 = vmul.f32 %v1431, %v1459
      %v1468 = vmul.f32 %v1432, %v1459
      %v1469 = vmul.f32 %v1433, %v1459
      %v1470 = vmul.f32 %v1434, %v1459
      %v1471 = vmul.f32 %v1435, %v1459
      %v1472 = vmul.f32 %v1436, %v1459
      %v1473 = vmul.f32 %v1437, %v1459
      %v1474 = vmul.f32 %v1438, %v1459
      %v1475 = vmul.f32 %v1439, %v1459
      %v1476 = vmul.f32 %v1440, %v1459
      %v1477 = vmul.f32 %v1441, %v1459
      %v1478 = vmul.f32 %v1442, %v1459
      %v1479 = vmul.f32 %v1443, %v1459
      %v1480 = vmul.f32 %v1444, %v1459
      %v1481 = vmul.f32 %v1445, %v1459
      %v1482 = vmul.f32 %v1446, %v1459
      %v1483 = vmul.f32 %v1447, %v1459
      %v1484 = vmul.f32 %v1448, %v1459
      %v1485 = vmul.f32 %v1449, %v1459
      %v1486 = vmul.f32 %v1450, %v1459
      %v1487 = vmul.f32 %v1451, %v1459
      %v1488 = vmul.f32 %v1452, %v1459
      %v1489 = vmul.f32 %v1453, %v1459
      %v1490 = vmul.f32 %v1454, %v1459
      %v1491 = vmul.f32 %v1455, %v1459
      %v1492 = vld [vmem:[#allocation3] sm:$0xff]
      %v1493 = vld [vmem:[#allocation3 + $0x8] sm:$0xff]
      %v1494 = vld [vmem:[#allocation3 + $0x10] sm:$0xff]
      %v1495 = vld [vmem:[#allocation3 + $0x18] sm:$0xff]
      %v1496 = vld [vmem:[#allocation3 + $0x20] sm:$0xff]
      %v1497 = vld [vmem:[#allocation3 + $0x28] sm:$0xff]
      %v1498 = vld [vmem:[#allocation3 + $0x30] sm:$0xff]
      %v1499 = vld [vmem:[#allocation3 + $0x38] sm:$0xff]
      %v1500 = vld [vmem:[#allocation3 + $0x40] sm:$0xff]
      %v1501 = vld [vmem:[#allocation3 + $0x48] sm:$0xff]
      %v1502 = vld [vmem:[#allocation3 + $0x50] sm:$0xff]
      %v1503 = vld [vmem:[#allocation3 + $0x58] sm:$0xff]
      %v1504 = vld [vmem:[#allocation3 + $0x60] sm:$0xff]
      %v1505 = vld [vmem:[#allocation3 + $0x68] sm:$0xff]
      %v1506 = vld [vmem:[#allocation3 + $0x70] sm:$0xff]
      %v1507 = vld [vmem:[#allocation3 + $0x78] sm:$0xff]
      %v1508 = vld [vmem:[#allocation3 + $0x80] sm:$0xff]
      %v1509 = vld [vmem:[#allocation3 + $0x88] sm:$0xff]
      %v1510 = vld [vmem:[#allocation3 + $0x90] sm:$0xff]
      %v1511 = vld [vmem:[#allocation3 + $0x98] sm:$0xff]
      %v1512 = vld [vmem:[#allocation3 + $0xa0] sm:$0xff]
      %v1513 = vld [vmem:[#allocation3 + $0xa8] sm:$0xff]
      %v1514 = vld [vmem:[#allocation3 + $0xb0] sm:$0xff]
      %v1515 = vld [vmem:[#allocation3 + $0xb8] sm:$0xff]
      %v1516 = vld [vmem:[#allocation3 + $0xc0] sm:$0xff]
      %v1517 = vld [vmem:[#allocation3 + $0xc8] sm:$0xff]
      %v1518 = vld [vmem:[#allocation3 + $0xd0] sm:$0xff]
      %v1519 = vld [vmem:[#allocation3 + $0xd8] sm:$0xff]
      %v1520 = vld [vmem:[#allocation3 + $0xe0] sm:$0xff]
      %v1521 = vld [vmem:[#allocation3 + $0xe8] sm:$0xff]
      %v1522 = vld [vmem:[#allocation3 + $0xf0] sm:$0xff]
      %v1523 = vld [vmem:[#allocation3 + $0xf8] sm:$0xff]
      %v1524 = vadd.f32 %v1492, %v1460
      %v1525 = vadd.f32 %v1493, %v1461
      %v1526 = vadd.f32 %v1494, %v1462
      %v1527 = vadd.f32 %v1495, %v1463
      %v1528 = vadd.f32 %v1496, %v1464
      %v1529 = vadd.f32 %v1497, %v1465
      %v1530 = vadd.f32 %v1498, %v1466
      %v1531 = vadd.f32 %v1499, %v1467
      %v1532 = vadd.f32 %v1500, %v1468
      %v1533 = vadd.f32 %v1501, %v1469
      %v1534 = vadd.f32 %v1502, %v1470
      %v1535 = vadd.f32 %v1503, %v1471
      %v1536 = vadd.f32 %v1504, %v1472
      %v1537 = vadd.f32 %v1505, %v1473
      %v1538 = vadd.f32 %v1506, %v1474
      %v1539 = vadd.f32 %v1507, %v1475
      %v1540 = vadd.f32 %v1508, %v1476
      %v1541 = vadd.f32 %v1509, %v1477
      %v1542 = vadd.f32 %v1510, %v1478
      %v1543 = vadd.f32 %v1511, %v1479
      %v1544 = vadd.f32 %v1512, %v1480
      %v1545 = vadd.f32 %v1513, %v1481
      %v1546 = vadd.f32 %v1514, %v1482
      %v1547 = vadd.f32 %v1515, %v1483
      %v1548 = vadd.f32 %v1516, %v1484
      %v1549 = vadd.f32 %v1517, %v1485
      %v1550 = vadd.f32 %v1518, %v1486
      %v1551 = vadd.f32 %v1519, %v1487
      %v1552 = vadd.f32 %v1520, %v1488
      %v1553 = vadd.f32 %v1521, %v1489
      %v1554 = vadd.f32 %v1522, %v1490
      %v1555 = vadd.f32 %v1523, %v1491
      %1556 = vst.msk [vmem:[#allocation3] sm:$0xff] %vm387, %v1524
      %1557 = vst.msk [vmem:[#allocation3 + $0x8] sm:$0xff] %vm387, %v1525
      %1558 = vst.msk [vmem:[#allocation3 + $0x10] sm:$0xff] %vm387, %v1526
      %1559 = vst.msk [vmem:[#allocation3 + $0x18] sm:$0xff] %vm387, %v1527
      %1560 = vst.msk [vmem:[#allocation3 + $0x20] sm:$0xff] %vm387, %v1528
      %1561 = vst.msk [vmem:[#allocation3 + $0x28] sm:$0xff] %vm387, %v1529
      %1562 = vst.msk [vmem:[#allocation3 + $0x30] sm:$0xff] %vm387, %v1530
      %1563 = vst.msk [vmem:[#allocation3 + $0x38] sm:$0xff] %vm387, %v1531
      %1564 = vst.msk [vmem:[#allocation3 + $0x40] sm:$0xff] %vm387, %v1532
      %1565 = vst.msk [vmem:[#allocation3 + $0x48] sm:$0xff] %vm387, %v1533
      %1566 = vst.msk [vmem:[#allocation3 + $0x50] sm:$0xff] %vm387, %v1534
      %1567 = vst.msk [vmem:[#allocation3 + $0x58] sm:$0xff] %vm387, %v1535
      %1568 = vst.msk [vmem:[#allocation3 + $0x60] sm:$0xff] %vm387, %v1536
      %1569 = vst.msk [vmem:[#allocation3 + $0x68] sm:$0xff] %vm387, %v1537
      %1570 = vst.msk [vmem:[#allocation3 + $0x70] sm:$0xff] %vm387, %v1538
      %1571 = vst.msk [vmem:[#allocation3 + $0x78] sm:$0xff] %vm387, %v1539
      %1572 = vst.msk [vmem:[#allocation3 + $0x80] sm:$0xff] %vm387, %v1540
      %1573 = vst.msk [vmem:[#allocation3 + $0x88] sm:$0xff] %vm387, %v1541
      %1574 = vst.msk [vmem:[#allocation3 + $0x90] sm:$0xff] %vm387, %v1542
      %1575 = vst.msk [vmem:[#allocation3 + $0x98] sm:$0xff] %vm387, %v1543
      %1576 = vst.msk [vmem:[#allocation3 + $0xa0] sm:$0xff] %vm387, %v1544
      %1577 = vst.msk [vmem:[#allocation3 + $0xa8] sm:$0xff] %vm387, %v1545
      %1578 = vst.msk [vmem:[#allocation3 + $0xb0] sm:$0xff] %vm387, %v1546
      %1579 = vst.msk [vmem:[#allocation3 + $0xb8] sm:$0xff] %vm387, %v1547
      %1580 = vst.msk [vmem:[#allocation3 + $0xc0] sm:$0xff] %vm387, %v1548
      %1581 = vst.msk [vmem:[#allocation3 + $0xc8] sm:$0xff] %vm387, %v1549
      %1582 = vst.msk [vmem:[#allocation3 + $0xd0] sm:$0xff] %vm387, %v1550
      %1583 = vst.msk [vmem:[#allocation3 + $0xd8] sm:$0xff] %vm387, %v1551
      %1584 = vst.msk [vmem:[#allocation3 + $0xe0] sm:$0xff] %vm387, %v1552
      %1585 = vst.msk [vmem:[#allocation3 + $0xe8] sm:$0xff] %vm387, %v1553
      %1586 = vst.msk [vmem:[#allocation3 + $0xf0] sm:$0xff] %vm387, %v1554
      %1587 = vst.msk [vmem:[#allocation3 + $0xf8] sm:$0xff] %vm387, %v1555
      %v1588 = vld [vmem:[%s1421 + $0x1] sm:$0x1]
      %v1589 = vld [vmem:[%s1423 + $0x1] sm:$0xff]
      %v1590 = vld [vmem:[%s1423 + $0x9] sm:$0xff]
      %v1591 = vld [vmem:[%s1423 + $0x19] sm:$0xff]
      %v1592 = vld [vmem:[%s1423 + $0x21] sm:$0xff]
      %v1593 = vld [vmem:[%s1423 + $0x31] sm:$0xff]
      %v1594 = vld [vmem:[%s1423 + $0x39] sm:$0xff]
      %v1595 = vld [vmem:[%s1423 + $0x49] sm:$0xff]
      %v1596 = vld [vmem:[%s1423 + $0x51] sm:$0xff]
      %v1597 = vld [vmem:[%s1423 + $0x61] sm:$0xff]
      %v1598 = vld [vmem:[%s1423 + $0x69] sm:$0xff]
      %v1599 = vld [vmem:[%s1423 + $0x79] sm:$0xff]
      %v1600 = vld [vmem:[%s1423 + $0x81] sm:$0xff]
      %v1601 = vld [vmem:[%s1423 + $0x91] sm:$0xff]
      %v1602 = vld [vmem:[%s1423 + $0x99] sm:$0xff]
      %v1603 = vld [vmem:[%s1423 + $0xa9] sm:$0xff]
      %v1604 = vld [vmem:[%s1423 + $0xb1] sm:$0xff]
      %v1605 = vld [vmem:[%s1423 + $0xc1] sm:$0xff]
      %v1606 = vld [vmem:[%s1423 + $0xc9] sm:$0xff]
      %v1607 = vld [vmem:[%s1423 + $0xd9] sm:$0xff]
      %v1608 = vld [vmem:[%s1423 + $0xe1] sm:$0xff]
      %v1609 = vld [vmem:[%s1423 + $0xf1] sm:$0xff]
      %v1610 = vld [vmem:[%s1423 + $0xf9] sm:$0xff]
      %v1611 = vld [vmem:[%s1423 + $0x109] sm:$0xff]
      %v1612 = vld [vmem:[%s1423 + $0x111] sm:$0xff]
      %v1613 = vld [vmem:[%s1423 + $0x121] sm:$0xff]
      %v1614 = vld [vmem:[%s1423 + $0x129] sm:$0xff]
      %v1615 = vld [vmem:[%s1423 + $0x139] sm:$0xff]
      %v1616 = vld [vmem:[%s1423 + $0x141] sm:$0xff]
      %v1617 = vld [vmem:[%s1423 + $0x151] sm:$0xff]
      %v1618 = vld [vmem:[%s1423 + $0x159] sm:$0xff]
      %v1619 = vld [vmem:[%s1423 + $0x169] sm:$0xff]
      %v1620 = vld [vmem:[%s1423 + $0x171] sm:$0xff]
      %v1621 = vlaneseq
      %v1622 = vshrl.u32 %v1621, 7
      %v1623 = vsub.s32 0, %v1622
      %v1624 = vrot.slane %v1588, %v1623
      %v1625 = vmul.f32 %v1589, %v1624
      %v1626 = vmul.f32 %v1590, %v1624
      %v1627 = vmul.f32 %v1591, %v1624
      %v1628 = vmul.f32 %v1592, %v1624
      %v1629 = vmul.f32 %v1593, %v1624
      %v1630 = vmul.f32 %v1594, %v1624
      %v1631 = vmul.f32 %v1595, %v1624
      %v1632 = vmul.f32 %v1596, %v1624
      %v1633 = vmul.f32 %v1597, %v1624
      %v1634 = vmul.f32 %v1598, %v1624
      %v1635 = vmul.f32 %v1599, %v1624
      %v1636 = vmul.f32 %v1600, %v1624
      %v1637 = vmul.f32 %v1601, %v1624
      %v1638 = vmul.f32 %v1602, %v1624
      %v1639 = vmul.f32 %v1603, %v1624
      %v1640 = vmul.f32 %v1604, %v1624
      %v1641 = vmul.f32 %v1605, %v1624
      %v1642 = vmul.f32 %v1606, %v1624
      %v1643 = vmul.f32 %v1607, %v1624
      %v1644 = vmul.f32 %v1608, %v1624
      %v1645 = vmul.f32 %v1609, %v1624
      %v1646 = vmul.f32 %v1610, %v1624
      %v1647 = vmul.f32 %v1611, %v1624
      %v1648 = vmul.f32 %v1612, %v1624
      %v1649 = vmul.f32 %v1613, %v1624
      %v1650 = vmul.f32 %v1614, %v1624
      %v1651 = vmul.f32 %v1615, %v1624
      %v1652 = vmul.f32 %v1616, %v1624
      %v1653 = vmul.f32 %v1617, %v1624
      %v1654 = vmul.f32 %v1618, %v1624
      %v1655 = vmul.f32 %v1619, %v1624
      %v1656 = vmul.f32 %v1620, %v1624
      %v1657 = vld [vmem:[#allocation3] sm:$0xff]
      %v1658 = vld [vmem:[#allocation3 + $0x8] sm:$0xff]
      %v1659 = vld [vmem:[#allocation3 + $0x10] sm:$0xff]
      %v1660 = vld [vmem:[#allocation3 + $0x18] sm:$0xff]
      %v1661 = vld [vmem:[#allocation3 + $0x20] sm:$0xff]
      %v1662 = vld [vmem:[#allocation3 + $0x28] sm:$0xff]
      %v1663 = vld [vmem:[#allocation3 + $0x30] sm:$0xff]
      %v1664 = vld [vmem:[#allocation3 + $0x38] sm:$0xff]
      %v1665 = vld [vmem:[#allocation3 + $0x40] sm:$0xff]
      %v1666 = vld [vmem:[#allocation3 + $0x48] sm:$0xff]
      %v1667 = vld [vmem:[#allocation3 + $0x50] sm:$0xff]
      %v1668 = vld [vmem:[#allocation3 + $0x58] sm:$0xff]
      %v1669 = vld [vmem:[#allocation3 + $0x60] sm:$0xff]
      %v1670 = vld [vmem:[#allocation3 + $0x68] sm:$0xff]
      %v1671 = vld [vmem:[#allocation3 + $0x70] sm:$0xff]
      %v1672 = vld [vmem:[#allocation3 + $0x78] sm:$0xff]
      %v1673 = vld [vmem:[#allocation3 + $0x80] sm:$0xff]
      %v1674 = vld [vmem:[#allocation3 + $0x88] sm:$0xff]
      %v1675 = vld [vmem:[#allocation3 + $0x90] sm:$0xff]
      %v1676 = vld [vmem:[#allocation3 + $0x98] sm:$0xff]
      %v1677 = vld [vmem:[#allocation3 + $0xa0] sm:$0xff]
      %v1678 = vld [vmem:[#allocation3 + $0xa8] sm:$0xff]
      %v1679 = vld [vmem:[#allocation3 + $0xb0] sm:$0xff]
      %v1680 = vld [vmem:[#allocation3 + $0xb8] sm:$0xff]
      %v1681 = vld [vmem:[#allocation3 + $0xc0] sm:$0xff]
      %v1682 = vld [vmem:[#allocation3 + $0xc8] sm:$0xff]
      %v1683 = vld [vmem:[#allocation3 + $0xd0] sm:$0xff]
      %v1684 = vld [vmem:[#allocation3 + $0xd8] sm:$0xff]
      %v1685 = vld [vmem:[#allocation3 + $0xe0] sm:$0xff]
      %v1686 = vld [vmem:[#allocation3 + $0xe8] sm:$0xff]
      %v1687 = vld [vmem:[#allocation3 + $0xf0] sm:$0xff]
      %v1688 = vld [vmem:[#allocation3 + $0xf8] sm:$0xff]
      %v1689 = vadd.f32 %v1657, %v1625
      %v1690 = vadd.f32 %v1658, %v1626
      %v1691 = vadd.f32 %v1659, %v1627
      %v1692 = vadd.f32 %v1660, %v1628
      %v1693 = vadd.f32 %v1661, %v1629
      %v1694 = vadd.f32 %v1662, %v1630
      %v1695 = vadd.f32 %v1663, %v1631
      %v1696 = vadd.f32 %v1664, %v1632
      %v1697 = vadd.f32 %v1665, %v1633
      %v1698 = vadd.f32 %v1666, %v1634
      %v1699 = vadd.f32 %v1667, %v1635
      %v1700 = vadd.f32 %v1668, %v1636
      %v1701 = vadd.f32 %v1669, %v1637
      %v1702 = vadd.f32 %v1670, %v1638
      %v1703 = vadd.f32 %v1671, %v1639
      %v1704 = vadd.f32 %v1672, %v1640
      %v1705 = vadd.f32 %v1673, %v1641
      %v1706 = vadd.f32 %v1674, %v1642
      %v1707 = vadd.f32 %v1675, %v1643
      %v1708 = vadd.f32 %v1676, %v1644
      %v1709 = vadd.f32 %v1677, %v1645
      %v1710 = vadd.f32 %v1678, %v1646
      %v1711 = vadd.f32 %v1679, %v1647
      %v1712 = vadd.f32 %v1680, %v1648
      %v1713 = vadd.f32 %v1681, %v1649
      %v1714 = vadd.f32 %v1682, %v1650
      %v1715 = vadd.f32 %v1683, %v1651
      %v1716 = vadd.f32 %v1684, %v1652
      %v1717 = vadd.f32 %v1685, %v1653
      %v1718 = vadd.f32 %v1686, %v1654
      %v1719 = vadd.f32 %v1687, %v1655
      %v1720 = vadd.f32 %v1688, %v1656
      %1721 = vst.msk [vmem:[#allocation3] sm:$0xff] %vm387, %v1689
      %1722 = vst.msk [vmem:[#allocation3 + $0x8] sm:$0xff] %vm387, %v1690
      %1723 = vst.msk [vmem:[#allocation3 + $0x10] sm:$0xff] %vm387, %v1691
      %1724 = vst.msk [vmem:[#allocation3 + $0x18] sm:$0xff] %vm387, %v1692
      %1725 = vst.msk [vmem:[#allocation3 + $0x20] sm:$0xff] %vm387, %v1693
      %1726 = vst.msk [vmem:[#allocation3 + $0x28] sm:$0xff] %vm387, %v1694
      %1727 = vst.msk [vmem:[#allocation3 + $0x30] sm:$0xff] %vm387, %v1695
      %1728 = vst.msk [vmem:[#allocation3 + $0x38] sm:$0xff] %vm387, %v1696
      %1729 = vst.msk [vmem:[#allocation3 + $0x40] sm:$0xff] %vm387, %v1697
      %1730 = vst.msk [vmem:[#allocation3 + $0x48] sm:$0xff] %vm387, %v1698
      %1731 = vst.msk [vmem:[#allocation3 + $0x50] sm:$0xff] %vm387, %v1699
      %1732 = vst.msk [vmem:[#allocation3 + $0x58] sm:$0xff] %vm387, %v1700
      %1733 = vst.msk [vmem:[#allocation3 + $0x60] sm:$0xff] %vm387, %v1701
      %1734 = vst.msk [vmem:[#allocation3 + $0x68] sm:$0xff] %vm387, %v1702
      %1735 = vst.msk [vmem:[#allocation3 + $0x70] sm:$0xff] %vm387, %v1703
      %1736 = vst.msk [vmem:[#allocation3 + $0x78] sm:$0xff] %vm387, %v1704
      %1737 = vst.msk [vmem:[#allocation3 + $0x80] sm:$0xff] %vm387, %v1705
      %1738 = vst.msk [vmem:[#allocation3 + $0x88] sm:$0xff] %vm387, %v1706
      %1739 = vst.msk [vmem:[#allocation3 + $0x90] sm:$0xff] %vm387, %v1707
      %1740 = vst.msk [vmem:[#allocation3 + $0x98] sm:$0xff] %vm387, %v1708
      %1741 = vst.msk [vmem:[#allocation3 + $0xa0] sm:$0xff] %vm387, %v1709
      %1742 = vst.msk [vmem:[#allocation3 + $0xa8] sm:$0xff] %vm387, %v1710
      %1743 = vst.msk [vmem:[#allocation3 + $0xb0] sm:$0xff] %vm387, %v1711
      %1744 = vst.msk [vmem:[#allocation3 + $0xb8] sm:$0xff] %vm387, %v1712
      %1745 = vst.msk [vmem:[#allocation3 + $0xc0] sm:$0xff] %vm387, %v1713
      %1746 = vst.msk [vmem:[#allocation3 + $0xc8] sm:$0xff] %vm387, %v1714
      %1747 = vst.msk [vmem:[#allocation3 + $0xd0] sm:$0xff] %vm387, %v1715
      %1748 = vst.msk [vmem:[#allocation3 + $0xd8] sm:$0xff] %vm387, %v1716
      %1749 = vst.msk [vmem:[#allocation3 + $0xe0] sm:$0xff] %vm387, %v1717
      %1750 = vst.msk [vmem:[#allocation3 + $0xe8] sm:$0xff] %vm387, %v1718
      %1751 = vst.msk [vmem:[#allocation3 + $0xf0] sm:$0xff] %vm387, %v1719
      %1752 = vst.msk [vmem:[#allocation3 + $0xf8] sm:$0xff] %vm387, %v1720
      %v1753 = vld [vmem:[%s1421 + $0x2] sm:$0x1]
      %v1754 = vld [vmem:[%s1423 + $0x2] sm:$0xff]
      %v1755 = vld [vmem:[%s1423 + $0xa] sm:$0xff]
      %v1756 = vld [vmem:[%s1423 + $0x1a] sm:$0xff]
      %v1757 = vld [vmem:[%s1423 + $0x22] sm:$0xff]
      %v1758 = vld [vmem:[%s1423 + $0x32] sm:$0xff]
      %v1759 = vld [vmem:[%s1423 + $0x3a] sm:$0xff]
      %v1760 = vld [vmem:[%s1423 + $0x4a] sm:$0xff]
      %v1761 = vld [vmem:[%s1423 + $0x52] sm:$0xff]
      %v1762 = vld [vmem:[%s1423 + $0x62] sm:$0xff]
      %v1763 = vld [vmem:[%s1423 + $0x6a] sm:$0xff]
      %v1764 = vld [vmem:[%s1423 + $0x7a] sm:$0xff]
      %v1765 = vld [vmem:[%s1423 + $0x82] sm:$0xff]
      %v1766 = vld [vmem:[%s1423 + $0x92] sm:$0xff]
      %v1767 = vld [vmem:[%s1423 + $0x9a] sm:$0xff]
      %v1768 = vld [vmem:[%s1423 + $0xaa] sm:$0xff]
      %v1769 = vld [vmem:[%s1423 + $0xb2] sm:$0xff]
      %v1770 = vld [vmem:[%s1423 + $0xc2] sm:$0xff]
      %v1771 = vld [vmem:[%s1423 + $0xca] sm:$0xff]
      %v1772 = vld [vmem:[%s1423 + $0xda] sm:$0xff]
      %v1773 = vld [vmem:[%s1423 + $0xe2] sm:$0xff]
      %v1774 = vld [vmem:[%s1423 + $0xf2] sm:$0xff]
      %v1775 = vld [vmem:[%s1423 + $0xfa] sm:$0xff]
      %v1776 = vld [vmem:[%s1423 + $0x10a] sm:$0xff]
      %v1777 = vld [vmem:[%s1423 + $0x112] sm:$0xff]
      %v1778 = vld [vmem:[%s1423 + $0x122] sm:$0xff]
      %v1779 = vld [vmem:[%s1423 + $0x12a] sm:$0xff]
      %v1780 = vld [vmem:[%s1423 + $0x13a] sm:$0xff]
      %v1781 = vld [vmem:[%s1423 + $0x142] sm:$0xff]
      %v1782 = vld [vmem:[%s1423 + $0x152] sm:$0xff]
      %v1783 = vld [vmem:[%s1423 + $0x15a] sm:$0xff]
      %v1784 = vld [vmem:[%s1423 + $0x16a] sm:$0xff]
      %v1785 = vld [vmem:[%s1423 + $0x172] sm:$0xff]
      %v1786 = vlaneseq
      %v1787 = vshrl.u32 %v1786, 7
      %v1788 = vsub.s32 0, %v1787
      %v1789 = vrot.slane %v1753, %v1788
      %v1790 = vmul.f32 %v1754, %v1789
      %v1791 = vmul.f32 %v1755, %v1789
      %v1792 = vmul.f32 %v1756, %v1789
      %v1793 = vmul.f32 %v1757, %v1789
      %v1794 = vmul.f32 %v1758, %v1789
      %v1795 = vmul.f32 %v1759, %v1789
      %v1796 = vmul.f32 %v1760, %v1789
      %v1797 = vmul.f32 %v1761, %v1789
      %v1798 = vmul.f32 %v1762, %v1789
      %v1799 = vmul.f32 %v1763, %v1789
      %v1800 = vmul.f32 %v1764, %v1789
      %v1801 = vmul.f32 %v1765, %v1789
      %v1802 = vmul.f32 %v1766, %v1789
      %v1803 = vmul.f32 %v1767, %v1789
      %v1804 = vmul.f32 %v1768, %v1789
      %v1805 = vmul.f32 %v1769, %v1789
      %v1806 = vmul.f32 %v1770, %v1789
      %v1807 = vmul.f32 %v1771, %v1789
      %v1808 = vmul.f32 %v1772, %v1789
      %v1809 = vmul.f32 %v1773, %v1789
      %v1810 = vmul.f32 %v1774, %v1789
      %v1811 = vmul.f32 %v1775, %v1789
      %v1812 = vmul.f32 %v1776, %v1789
      %v1813 = vmul.f32 %v1777, %v1789
      %v1814 = vmul.f32 %v1778, %v1789
      %v1815 = vmul.f32 %v1779, %v1789
      %v1816 = vmul.f32 %v1780, %v1789
      %v1817 = vmul.f32 %v1781, %v1789
      %v1818 = vmul.f32 %v1782, %v1789
      %v1819 = vmul.f32 %v1783, %v1789
      %v1820 = vmul.f32 %v1784, %v1789
      %v1821 = vmul.f32 %v1785, %v1789
      %v1822 = vld [vmem:[#allocation3] sm:$0xff]
      %v1823 = vld [vmem:[#allocation3 + $0x8] sm:$0xff]
      %v1824 = vld [vmem:[#allocation3 + $0x10] sm:$0xff]
      %v1825 = vld [vmem:[#allocation3 + $0x18] sm:$0xff]
      %v1826 = vld [vmem:[#allocation3 + $0x20] sm:$0xff]
      %v1827 = vld [vmem:[#allocation3 + $0x28] sm:$0xff]
      %v1828 = vld [vmem:[#allocation3 + $0x30] sm:$0xff]
      %v1829 = vld [vmem:[#allocation3 + $0x38] sm:$0xff]
      %v1830 = vld [vmem:[#allocation3 + $0x40] sm:$0xff]
      %v1831 = vld [vmem:[#allocation3 + $0x48] sm:$0xff]
      %v1832 = vld [vmem:[#allocation3 + $0x50] sm:$0xff]
      %v1833 = vld [vmem:[#allocation3 + $0x58] sm:$0xff]
      %v1834 = vld [vmem:[#allocation3 + $0x60] sm:$0xff]
      %v1835 = vld [vmem:[#allocation3 + $0x68] sm:$0xff]
      %v1836 = vld [vmem:[#allocation3 + $0x70] sm:$0xff]
      %v1837 = vld [vmem:[#allocation3 + $0x78] sm:$0xff]
      %v1838 = vld [vmem:[#allocation3 + $0x80] sm:$0xff]
      %v1839 = vld [vmem:[#allocation3 + $0x88] sm:$0xff]
      %v1840 = vld [vmem:[#allocation3 + $0x90] sm:$0xff]
      %v1841 = vld [vmem:[#allocation3 + $0x98] sm:$0xff]
      %v1842 = vld [vmem:[#allocation3 + $0xa0] sm:$0xff]
      %v1843 = vld [vmem:[#allocation3 + $0xa8] sm:$0xff]
      %v1844 = vld [vmem:[#allocation3 + $0xb0] sm:$0xff]
      %v1845 = vld [vmem:[#allocation3 + $0xb8] sm:$0xff]
      %v1846 = vld [vmem:[#allocation3 + $0xc0] sm:$0xff]
      %v1847 = vld [vmem:[#allocation3 + $0xc8] sm:$0xff]
      %v1848 = vld [vmem:[#allocation3 + $0xd0] sm:$0xff]
      %v1849 = vld [vmem:[#allocation3 + $0xd8] sm:$0xff]
      %v1850 = vld [vmem:[#allocation3 + $0xe0] sm:$0xff]
      %v1851 = vld [vmem:[#allocation3 + $0xe8] sm:$0xff]
      %v1852 = vld [vmem:[#allocation3 + $0xf0] sm:$0xff]
      %v1853 = vld [vmem:[#allocation3 + $0xf8] sm:$0xff]
      %v1854 = vadd.f32 %v1822, %v1790
      %v1855 = vadd.f32 %v1823, %v1791
      %v1856 = vadd.f32 %v1824, %v1792
      %v1857 = vadd.f32 %v1825, %v1793
      %v1858 = vadd.f32 %v1826, %v1794
      %v1859 = vadd.f32 %v1827, %v1795
      %v1860 = vadd.f32 %v1828, %v1796
      %v1861 = vadd.f32 %v1829, %v1797
      %v1862 = vadd.f32 %v1830, %v1798
      %v1863 = vadd.f32 %v1831, %v1799
      %v1864 = vadd.f32 %v1832, %v1800
      %v1865 = vadd.f32 %v1833, %v1801
      %v1866 = vadd.f32 %v1834, %v1802
      %v1867 = vadd.f32 %v1835, %v1803
      %v1868 = vadd.f32 %v1836, %v1804
      %v1869 = vadd.f32 %v1837, %v1805
      %v1870 = vadd.f32 %v1838, %v1806
      %v1871 = vadd.f32 %v1839, %v1807
      %v1872 = vadd.f32 %v1840, %v1808
      %v1873 = vadd.f32 %v1841, %v1809
      %v1874 = vadd.f32 %v1842, %v1810
      %v1875 = vadd.f32 %v1843, %v1811
      %v1876 = vadd.f32 %v1844, %v1812
      %v1877 = vadd.f32 %v1845, %v1813
      %v1878 = vadd.f32 %v1846, %v1814
      %v1879 = vadd.f32 %v1847, %v1815
      %v1880 = vadd.f32 %v1848, %v1816
      %v1881 = vadd.f32 %v1849, %v1817
      %v1882 = vadd.f32 %v1850, %v1818
      %v1883 = vadd.f32 %v1851, %v1819
      %v1884 = vadd.f32 %v1852, %v1820
      %v1885 = vadd.f32 %v1853, %v1821
      %1886 = vst.msk [vmem:[#allocation3] sm:$0xff] %vm387, %v1854
      %1887 = vst.msk [vmem:[#allocation3 + $0x8] sm:$0xff] %vm387, %v1855
      %1888 = vst.msk [vmem:[#allocation3 + $0x10] sm:$0xff] %vm387, %v1856
      %1889 = vst.msk [vmem:[#allocation3 + $0x18] sm:$0xff] %vm387, %v1857
      %1890 = vst.msk [vmem:[#allocation3 + $0x20] sm:$0xff] %vm387, %v1858
      %1891 = vst.msk [vmem:[#allocation3 + $0x28] sm:$0xff] %vm387, %v1859
      %1892 = vst.msk [vmem:[#allocation3 + $0x30] sm:$0xff] %vm387, %v1860
      %1893 = vst.msk [vmem:[#allocation3 + $0x38] sm:$0xff] %vm387, %v1861
      %1894 = vst.msk [vmem:[#allocation3 + $0x40] sm:$0xff] %vm387, %v1862
      %1895 = vst.msk [vmem:[#allocation3 + $0x48] sm:$0xff] %vm387, %v1863
      %1896 = vst.msk [vmem:[#allocation3 + $0x50] sm:$0xff] %vm387, %v1864
      %1897 = vst.msk [vmem:[#allocation3 + $0x58] sm:$0xff] %vm387, %v1865
      %1898 = vst.msk [vmem:[#allocation3 + $0x60] sm:$0xff] %vm387, %v1866
      %1899 = vst.msk [vmem:[#allocation3 + $0x68] sm:$0xff] %vm387, %v1867
      %1900 = vst.msk [vmem:[#allocation3 + $0x70] sm:$0xff] %vm387, %v1868
      %1901 = vst.msk [vmem:[#allocation3 + $0x78] sm:$0xff] %vm387, %v1869
      %1902 = vst.msk [vmem:[#allocation3 + $0x80] sm:$0xff] %vm387, %v1870
      %1903 = vst.msk [vmem:[#allocation3 + $0x88] sm:$0xff] %vm387, %v1871
      %1904 = vst.msk [vmem:[#allocation3 + $0x90] sm:$0xff] %vm387, %v1872
      %1905 = vst.msk [vmem:[#allocation3 + $0x98] sm:$0xff] %vm387, %v1873
      %1906 = vst.msk [vmem:[#allocation3 + $0xa0] sm:$0xff] %vm387, %v1874
      %1907 = vst.msk [vmem:[#allocation3 + $0xa8] sm:$0xff] %vm387, %v1875
      %1908 = vst.msk [vmem:[#allocation3 + $0xb0] sm:$0xff] %vm387, %v1876
      %1909 = vst.msk [vmem:[#allocation3 + $0xb8] sm:$0xff] %vm387, %v1877
      %1910 = vst.msk [vmem:[#allocation3 + $0xc0] sm:$0xff] %vm387, %v1878
      %1911 = vst.msk [vmem:[#allocation3 + $0xc8] sm:$0xff] %vm387, %v1879
      %1912 = vst.msk [vmem:[#allocation3 + $0xd0] sm:$0xff] %vm387, %v1880
      %1913 = vst.msk [vmem:[#allocation3 + $0xd8] sm:$0xff] %vm387, %v1881
      %1914 = vst.msk [vmem:[#allocation3 + $0xe0] sm:$0xff] %vm387, %v1882
      %1915 = vst.msk [vmem:[#allocation3 + $0xe8] sm:$0xff] %vm387, %v1883
      %1916 = vst.msk [vmem:[#allocation3 + $0xf0] sm:$0xff] %vm387, %v1884
      %1917 = vst.msk [vmem:[#allocation3 + $0xf8] sm:$0xff] %vm387, %v1885
      %v1918 = vld [vmem:[#allocation3] sm:$0xff]
      %v1919 = vld [vmem:[#allocation3 + $0x8] sm:$0xff]
      %v1920 = vld [vmem:[#allocation3 + $0x10] sm:$0xff]
      %v1921 = vld [vmem:[#allocation3 + $0x18] sm:$0xff]
      %v1922 = vld [vmem:[#allocation3 + $0x20] sm:$0xff]
      %v1923 = vld [vmem:[#allocation3 + $0x28] sm:$0xff]
      %v1924 = vld [vmem:[#allocation3 + $0x30] sm:$0xff]
      %v1925 = vld [vmem:[#allocation3 + $0x38] sm:$0xff]
      %v1926 = vld [vmem:[#allocation3 + $0x40] sm:$0xff]
      %v1927 = vld [vmem:[#allocation3 + $0x48] sm:$0xff]
      %v1928 = vld [vmem:[#allocation3 + $0x50] sm:$0xff]
      %v1929 = vld [vmem:[#allocation3 + $0x58] sm:$0xff]
      %v1930 = vld [vmem:[#allocation3 + $0x60] sm:$0xff]
      %v1931 = vld [vmem:[#allocation3 + $0x68] sm:$0xff]
      %v1932 = vld [vmem:[#allocation3 + $0x70] sm:$0xff]
      %v1933 = vld [vmem:[#allocation3 + $0x78] sm:$0xff]
      %v1934 = vld [vmem:[#allocation3 + $0x80] sm:$0xff]
      %v1935 = vld [vmem:[#allocation3 + $0x88] sm:$0xff]
      %v1936 = vld [vmem:[#allocation3 + $0x90] sm:$0xff]
      %v1937 = vld [vmem:[#allocation3 + $0x98] sm:$0xff]
      %v1938 = vld [vmem:[#allocation3 + $0xa0] sm:$0xff]
      %v1939 = vld [vmem:[#allocation3 + $0xa8] sm:$0xff]
      %v1940 = vld [vmem:[#allocation3 + $0xb0] sm:$0xff]
      %v1941 = vld [vmem:[#allocation3 + $0xb8] sm:$0xff]
      %v1942 = vld [vmem:[#allocation3 + $0xc0] sm:$0xff]
      %v1943 = vld [vmem:[#allocation3 + $0xc8] sm:$0xff]
      %v1944 = vld [vmem:[#allocation3 + $0xd0] sm:$0xff]
      %v1945 = vld [vmem:[#allocation3 + $0xd8] sm:$0xff]
      %v1946 = vld [vmem:[#allocation3 + $0xe0] sm:$0xff]
      %v1947 = vld [vmem:[#allocation3 + $0xe8] sm:$0xff]
      %v1948 = vld [vmem:[#allocation3 + $0xf0] sm:$0xff]
      %v1949 = vld [vmem:[#allocation3 + $0xf8] sm:$0xff]
      %v1950 = vld [vmem:[%s2] sm:$0x1]
      %v1952 = vlaneseq
      %v1953 = vshrl.u32 %v1952, 7
      %v1954 = vsub.s32 0, %v1953
      %v1955 = vrot.slane %v1950, %v1954
      %v1957 = vmul.f32 %v1918, %v1955
      %v1958 = vmul.f32 %v1919, %v1955
      %v1959 = vmul.f32 %v1920, %v1955
      %v1960 = vmul.f32 %v1921, %v1955
      %v1961 = vmul.f32 %v1922, %v1955
      %v1962 = vmul.f32 %v1923, %v1955
      %v1963 = vmul.f32 %v1924, %v1955
      %v1964 = vmul.f32 %v1925, %v1955
      %v1965 = vmul.f32 %v1926, %v1955
      %v1966 = vmul.f32 %v1927, %v1955
      %v1967 = vmul.f32 %v1928, %v1955
      %v1968 = vmul.f32 %v1929, %v1955
      %v1969 = vmul.f32 %v1930, %v1955
      %v1970 = vmul.f32 %v1931, %v1955
      %v1971 = vmul.f32 %v1932, %v1955
      %v1972 = vmul.f32 %v1933, %v1955
      %v1973 = vmul.f32 %v1934, %v1955
      %v1974 = vmul.f32 %v1935, %v1955
      %v1975 = vmul.f32 %v1936, %v1955
      %v1976 = vmul.f32 %v1937, %v1955
      %v1977 = vmul.f32 %v1938, %v1955
      %v1978 = vmul.f32 %v1939, %v1955
      %v1979 = vmul.f32 %v1940, %v1955
      %v1980 = vmul.f32 %v1941, %v1955
      %v1981 = vmul.f32 %v1942, %v1955
      %v1982 = vmul.f32 %v1943, %v1955
      %v1983 = vmul.f32 %v1944, %v1955
      %v1984 = vmul.f32 %v1945, %v1955
      %v1985 = vmul.f32 %v1946, %v1955
      %v1986 = vmul.f32 %v1947, %v1955
      %v1987 = vmul.f32 %v1948, %v1955
      %v1988 = vmul.f32 %v1949, %v1955
      %v1989 = vld [vmem:[%s3] sm:$0x1]
      %v1991 = vlaneseq
      %v1992 = vshrl.u32 %v1991, 7
      %v1993 = vsub.s32 0, %v1992
      %v1994 = vrot.slane %v1989, %v1993
      %v1996 = vadd.f32 %v1957, %v1994
      %v1997 = vadd.f32 %v1958, %v1994
      %v1998 = vadd.f32 %v1959, %v1994
      %v1999 = vadd.f32 %v1960, %v1994
      %v2000 = vadd.f32 %v1961, %v1994
      %v2001 = vadd.f32 %v1962, %v1994
      %v2002 = vadd.f32 %v1963, %v1994
      %v2003 = vadd.f32 %v1964, %v1994
      %v2004 = vadd.f32 %v1965, %v1994
      %v2005 = vadd.f32 %v1966, %v1994
      %v2006 = vadd.f32 %v1967, %v1994
      %v2007 = vadd.f32 %v1968, %v1994
      %v2008 = vadd.f32 %v1969, %v1994
      %v2009 = vadd.f32 %v1970, %v1994
      %v2010 = vadd.f32 %v1971, %v1994
      %v2011 = vadd.f32 %v1972, %v1994
      %v2012 = vadd.f32 %v1973, %v1994
      %v2013 = vadd.f32 %v1974, %v1994
      %v2014 = vadd.f32 %v1975, %v1994
      %v2015 = vadd.f32 %v1976, %v1994
      %v2016 = vadd.f32 %v1977, %v1994
      %v2017 = vadd.f32 %v1978, %v1994
      %v2018 = vadd.f32 %v1979, %v1994
      %v2019 = vadd.f32 %v1980, %v1994
      %v2020 = vadd.f32 %v1981, %v1994
      %v2021 = vadd.f32 %v1982, %v1994
      %v2022 = vadd.f32 %v1983, %v1994
      %v2023 = vadd.f32 %v1984, %v1994
      %v2024 = vadd.f32 %v1985, %v1994
      %v2025 = vadd.f32 %v1986, %v1994
      %v2026 = vadd.f32 %v1987, %v1994
      %v2027 = vadd.f32 %v1988, %v1994
      %v2028 = vmax.f32 %v1996, 0.0
      %v2029 = vmax.f32 %v1997, 0.0
      %v2030 = vmax.f32 %v1998, 0.0
      %v2031 = vmax.f32 %v1999, 0.0
      %v2032 = vmax.f32 %v2000, 0.0
      %v2033 = vmax.f32 %v2001, 0.0
      %v2034 = vmax.f32 %v2002, 0.0
      %v2035 = vmax.f32 %v2003, 0.0
      %v2036 = vmax.f32 %v2004, 0.0
      %v2037 = vmax.f32 %v2005, 0.0
      %v2038 = vmax.f32 %v2006, 0.0
      %v2039 = vmax.f32 %v2007, 0.0
      %v2040 = vmax.f32 %v2008, 0.0
      %v2041 = vmax.f32 %v2009, 0.0
      %v2042 = vmax.f32 %v2010, 0.0
      %v2043 = vmax.f32 %v2011, 0.0
      %v2044 = vmax.f32 %v2012, 0.0
      %v2045 = vmax.f32 %v2013, 0.0
      %v2046 = vmax.f32 %v2014, 0.0
      %v2047 = vmax.f32 %v2015, 0.0
      %v2048 = vmax.f32 %v2016, 0.0
      %v2049 = vmax.f32 %v2017, 0.0
      %v2050 = vmax.f32 %v2018, 0.0
      %v2051 = vmax.f32 %v2019, 0.0
      %v2052 = vmax.f32 %v2020, 0.0
      %v2053 = vmax.f32 %v2021, 0.0
      %v2054 = vmax.f32 %v2022, 0.0
      %v2055 = vmax.f32 %v2023, 0.0
      %v2056 = vmax.f32 %v2024, 0.0
      %v2057 = vmax.f32 %v2025, 0.0
      %v2058 = vmax.f32 %v2026, 0.0
      %v2059 = vmax.f32 %v2027, 0.0
      %2060 = vst.msk [vmem:[#allocation3] sm:$0xff] %vm387, %v2028
      %2061 = vst.msk [vmem:[#allocation3 + $0x8] sm:$0xff] %vm387, %v2029
      %2062 = vst.msk [vmem:[#allocation3 + $0x10] sm:$0xff] %vm387, %v2030
      %2063 = vst.msk [vmem:[#allocation3 + $0x18] sm:$0xff] %vm387, %v2031
      %2064 = vst.msk [vmem:[#allocation3 + $0x20] sm:$0xff] %vm387, %v2032
      %2065 = vst.msk [vmem:[#allocation3 + $0x28] sm:$0xff] %vm387, %v2033
      %2066 = vst.msk [vmem:[#allocation3 + $0x30] sm:$0xff] %vm387, %v2034
      %2067 = vst.msk [vmem:[#allocation3 + $0x38] sm:$0xff] %vm387, %v2035
      %2068 = vst.msk [vmem:[#allocation3 + $0x40] sm:$0xff] %vm387, %v2036
      %2069 = vst.msk [vmem:[#allocation3 + $0x48] sm:$0xff] %vm387, %v2037
      %2070 = vst.msk [vmem:[#allocation3 + $0x50] sm:$0xff] %vm387, %v2038
      %2071 = vst.msk [vmem:[#allocation3 + $0x58] sm:$0xff] %vm387, %v2039
      %2072 = vst.msk [vmem:[#allocation3 + $0x60] sm:$0xff] %vm387, %v2040
      %2073 = vst.msk [vmem:[#allocation3 + $0x68] sm:$0xff] %vm387, %v2041
      %2074 = vst.msk [vmem:[#allocation3 + $0x70] sm:$0xff] %vm387, %v2042
      %2075 = vst.msk [vmem:[#allocation3 + $0x78] sm:$0xff] %vm387, %v2043
      %2076 = vst.msk [vmem:[#allocation3 + $0x80] sm:$0xff] %vm387, %v2044
      %2077 = vst.msk [vmem:[#allocation3 + $0x88] sm:$0xff] %vm387, %v2045
      %2078 = vst.msk [vmem:[#allocation3 + $0x90] sm:$0xff] %vm387, %v2046
      %2079 = vst.msk [vmem:[#allocation3 + $0x98] sm:$0xff] %vm387, %v2047
      %2080 = vst.msk [vmem:[#allocation3 + $0xa0] sm:$0xff] %vm387, %v2048
      %2081 = vst.msk [vmem:[#allocation3 + $0xa8] sm:$0xff] %vm387, %v2049
      %2082 = vst.msk [vmem:[#allocation3 + $0xb0] sm:$0xff] %vm387, %v2050
      %2083 = vst.msk [vmem:[#allocation3 + $0xb8] sm:$0xff] %vm387, %v2051
      %2084 = vst.msk [vmem:[#allocation3 + $0xc0] sm:$0xff] %vm387, %v2052
      %2085 = vst.msk [vmem:[#allocation3 + $0xc8] sm:$0xff] %vm387, %v2053
      %2086 = vst.msk [vmem:[#allocation3 + $0xd0] sm:$0xff] %vm387, %v2054
      %2087 = vst.msk [vmem:[#allocation3 + $0xd8] sm:$0xff] %vm387, %v2055
      %2088 = vst.msk [vmem:[#allocation3 + $0xe0] sm:$0xff] %vm387, %v2056
      %2089 = vst.msk [vmem:[#allocation3 + $0xe8] sm:$0xff] %vm387, %v2057
      %2090 = vst.msk [vmem:[#allocation3 + $0xf0] sm:$0xff] %vm387, %v2058
      %2091 = vst.msk [vmem:[#allocation3 + $0xf8] sm:$0xff] %vm387, %v2059
      %v2092 = vld [vmem:[#allocation3] sm:$0xff]
      %v2093 = vld [vmem:[#allocation3 + $0x8] sm:$0xff]
      %v2094 = vld [vmem:[#allocation3 + $0x10] sm:$0xff]
      %v2095 = vld [vmem:[#allocation3 + $0x18] sm:$0xff]
      %v2096 = vld [vmem:[#allocation3 + $0x20] sm:$0xff]
      %v2097 = vld [vmem:[#allocation3 + $0x28] sm:$0xff]
      %v2098 = vld [vmem:[#allocation3 + $0x30] sm:$0xff]
      %v2099 = vld [vmem:[#allocation3 + $0x38] sm:$0xff]
      %v2100 = vld [vmem:[#allocation3 + $0x40] sm:$0xff]
      %v2101 = vld [vmem:[#allocation3 + $0x48] sm:$0xff]
      %v2102 = vld [vmem:[#allocation3 + $0x50] sm:$0xff]
      %v2103 = vld [vmem:[#allocation3 + $0x58] sm:$0xff]
      %v2104 = vld [vmem:[#allocation3 + $0x60] sm:$0xff]
      %v2105 = vld [vmem:[#allocation3 + $0x68] sm:$0xff]
      %v2106 = vld [vmem:[#allocation3 + $0x70] sm:$0xff]
      %v2107 = vld [vmem:[#allocation3 + $0x78] sm:$0xff]
      %v2108 = vld [vmem:[#allocation3 + $0x80] sm:$0xff]
      %v2109 = vld [vmem:[#allocation3 + $0x88] sm:$0xff]
      %v2110 = vld [vmem:[#allocation3 + $0x90] sm:$0xff]
      %v2111 = vld [vmem:[#allocation3 + $0x98] sm:$0xff]
      %v2112 = vld [vmem:[#allocation3 + $0xa0] sm:$0xff]
      %v2113 = vld [vmem:[#allocation3 + $0xa8] sm:$0xff]
      %v2114 = vld [vmem:[#allocation3 + $0xb0] sm:$0xff]
      %v2115 = vld [vmem:[#allocation3 + $0xb8] sm:$0xff]
      %v2116 = vld [vmem:[#allocation3 + $0xc0] sm:$0xff]
      %v2117 = vld [vmem:[#allocation3 + $0xc8] sm:$0xff]
      %v2118 = vld [vmem:[#allocation3 + $0xd0] sm:$0xff]
      %v2119 = vld [vmem:[#allocation3 + $0xd8] sm:$0xff]
      %v2120 = vld [vmem:[#allocation3 + $0xe0] sm:$0xff]
      %v2121 = vld [vmem:[#allocation3 + $0xe8] sm:$0xff]
      %v2122 = vld [vmem:[#allocation3 + $0xf0] sm:$0xff]
      %v2123 = vld [vmem:[#allocation3 + $0xf8] sm:$0xff]
      %v2124 = vsel %vm387, %v2092, 0.0
      %v2125 = vsel %vm387, %v2094, 0.0
      %v2126 = vadd.f32 %v2124, %v2125
      %v2127 = vsel %vm387, %v2096, 0.0
      %v2128 = vadd.f32 %v2126, %v2127
      %v2129 = vsel %vm387, %v2098, 0.0
      %v2130 = vadd.f32 %v2128, %v2129
      %v2131 = vsel %vm387, %v2100, 0.0
      %v2132 = vadd.f32 %v2130, %v2131
      %v2133 = vsel %vm387, %v2102, 0.0
      %v2134 = vadd.f32 %v2132, %v2133
      %v2135 = vsel %vm387, %v2104, 0.0
      %v2136 = vadd.f32 %v2134, %v2135
      %v2137 = vsel %vm387, %v2106, 0.0
      %v2138 = vadd.f32 %v2136, %v2137
      %v2139 = vsel %vm387, %v2108, 0.0
      %v2140 = vadd.f32 %v2138, %v2139
      %v2141 = vsel %vm387, %v2110, 0.0
      %v2142 = vadd.f32 %v2140, %v2141
      %v2143 = vsel %vm387, %v2112, 0.0
      %v2144 = vadd.f32 %v2142, %v2143
      %v2145 = vsel %vm387, %v2114, 0.0
      %v2146 = vadd.f32 %v2144, %v2145
      %v2147 = vsel %vm387, %v2116, 0.0
      %v2148 = vadd.f32 %v2146, %v2147
      %v2149 = vsel %vm387, %v2118, 0.0
      %v2150 = vadd.f32 %v2148, %v2149
      %v2151 = vsel %vm387, %v2120, 0.0
      %v2152 = vadd.f32 %v2150, %v2151
      %v2153 = vsel %vm387, %v2122, 0.0
      %v2154 = vadd.f32 %v2152, %v2153
      %v2155 = vsel %vm387, %v2093, 0.0
      %v2156 = vsel %vm387, %v2095, 0.0
      %v2157 = vadd.f32 %v2155, %v2156
      %v2158 = vsel %vm387, %v2097, 0.0
      %v2159 = vadd.f32 %v2157, %v2158
      %v2160 = vsel %vm387, %v2099, 0.0
      %v2161 = vadd.f32 %v2159, %v2160
      %v2162 = vsel %vm387, %v2101, 0.0
      %v2163 = vadd.f32 %v2161, %v2162
      %v2164 = vsel %vm387, %v2103, 0.0
      %v2165 = vadd.f32 %v2163, %v2164
      %v2166 = vsel %vm387, %v2105, 0.0
      %v2167 = vadd.f32 %v2165, %v2166
      %v2168 = vsel %vm387, %v2107, 0.0
      %v2169 = vadd.f32 %v2167, %v2168
      %v2170 = vsel %vm387, %v2109, 0.0
      %v2171 = vadd.f32 %v2169, %v2170
      %v2172 = vsel %vm387, %v2111, 0.0
      %v2173 = vadd.f32 %v2171, %v2172
      %v2174 = vsel %vm387, %v2113, 0.0
      %v2175 = vadd.f32 %v2173, %v2174
      %v2176 = vsel %vm387, %v2115, 0.0
      %v2177 = vadd.f32 %v2175, %v2176
      %v2178 = vsel %vm387, %v2117, 0.0
      %v2179 = vadd.f32 %v2177, %v2178
      %v2180 = vsel %vm387, %v2119, 0.0
      %v2181 = vadd.f32 %v2179, %v2180
      %v2182 = vsel %vm387, %v2121, 0.0
      %v2183 = vadd.f32 %v2181, %v2182
      %v2184 = vsel %vm387, %v2123, 0.0
      %v2185 = vadd.f32 %v2183, %v2184
      %v2186 = vsel %vm387, %v2154, 0.0
      %v2187 = vsel %vm387, %v2185, 0.0
      %v2188 = vadd.f32 %v2186, %v2187
      %v2189 = vrot.slane %v2188, 4
      %v2190 = vadd.f32 %v2188, %v2189
      %v2191 = vrot.slane %v2190, 2
      %v2192 = vadd.f32 %v2190, %v2191
      %v2193 = vrot.slane %v2192, 1
      %v2194 = vadd.f32 %v2192, %v2193
      %v2195 = vmul.f32 %v2194, 0.00390625
      %v2196 = vld [vmem:[%s4] sm:$0xf]
      %v2197 = vld [vmem:[%s5] sm:$0x1]
      %v2199 = vsel %vm387, %v2195, 0
      %vm2201 = vcmask 1043456
      %v2203 = vsel %vm2201, %v2196, 0
      %2205 = vmatprep.subr.mxu0 0.0
      %2206 = vmatpush1.msra.mxu0 %v2203
      %2207 = vmatprep.subr.mxu0 0.0
      %2208 = vmatpush1.msra.mxu0 0.0
      %2209 = vmatprep.subr.mxu0 0.0
      %2210 = vmatpush1.msra.mxu0 0.0
      %2211 = vmatprep.subr.mxu0 0.0
      %2212 = vmatpush1.msra.mxu0 0.0
      %2213 = vmatprep.subr.mxu0 0.0
      %2214 = vmatpush1.msra.mxu0 0.0
      %2215 = vmatprep.subr.mxu0 0.0
      %2216 = vmatpush1.msra.mxu0 0.0
      %2217 = vmatprep.subr.mxu0 0.0
      %2218 = vmatpush1.msra.mxu0 0.0
      %2219 = vmatprep.subr.mxu0 0.0
      %2220 = vmatpush1.msra.mxu0 0.0
      %2221 = vmatprep.subr.mxu0 0.0
      %2222 = vmatpush1.msra.mxu0 0.0
      %2223 = vmatprep.subr.mxu0 0.0
      %2224 = vmatpush1.msra.mxu0 0.0
      %2225 = vmatprep.subr.mxu0 0.0
      %2226 = vmatpush1.msra.mxu0 0.0
      %2227 = vmatprep.subr.mxu0 0.0
      %2228 = vmatpush1.msra.mxu0 0.0
      %2229 = vmatprep.subr.mxu0 0.0
      %2230 = vmatpush1.msra.mxu0 0.0
      %2231 = vmatprep.subr.mxu0 0.0
      %2232 = vmatpush1.msra.mxu0 0.0
      %2233 = vmatprep.subr.mxu0 0.0
      %2234 = vmatpush1.msra.mxu0 0.0
      %2235 = vmatprep.subr.mxu0 0.0
      %2236 = vmatpush1.msra.mxu0 0.0
      %2237 = vmatprep.subr.mxu0 0.0
      %2238 = vmatpush1.msra.mxu0 0.0
      %2239 = vmatprep.subr.mxu0 0.0
      %2240 = vmatpush1.msra.mxu0 0.0
      %2241 = vmatprep.subr.mxu0 0.0
      %2242 = vmatpush1.msra.mxu0 0.0
      %2243 = vmatprep.subr.mxu0 0.0
      %2244 = vmatpush1.msra.mxu0 0.0
      %2245 = vmatprep.subr.mxu0 0.0
      %2246 = vmatpush1.msra.mxu0 0.0
      %2247 = vmatprep.subr.mxu0 0.0
      %2248 = vmatpush1.msra.mxu0 0.0
      %2249 = vmatprep.subr.mxu0 0.0
      %2250 = vmatpush1.msra.mxu0 0.0
      %2251 = vmatprep.subr.mxu0 0.0
      %2252 = vmatpush1.msra.mxu0 0.0
      %2253 = vmatprep.subr.mxu0 0.0
      %2254 = vmatpush1.msra.mxu0 0.0
      %2255 = vmatprep.subr.mxu0 0.0
      %2256 = vmatpush1.msra.mxu0 0.0
      %2257 = vmatprep.subr.mxu0 0.0
      %2258 = vmatpush1.msra.mxu0 0.0
      %2259 = vmatprep.subr.mxu0 0.0
      %2260 = vmatpush1.msra.mxu0 0.0
      %2261 = vmatprep.subr.mxu0 0.0
      %2262 = vmatpush1.msra.mxu0 0.0
      %2263 = vmatprep.subr.mxu0 0.0
      %2264 = vmatpush1.msra.mxu0 0.0
      %2265 = vmatprep.subr.mxu0 0.0
      %2266 = vmatpush1.msra.mxu0 0.0
      %2267 = vmatprep.subr.mxu0 0.0
      %2268 = vmatpush1.msra.mxu0 0.0
      %2269 = vmatprep.mubr.f32.mxu0 0.0
      %2270 = vmatmul.mubr.f32.gmra.mrb[0].mxu0 %v2199
      %v2271 = vpop.f32.mrb[0].mxu0
      %v2272 = vadd.f32 %v2197, %v2271
      %v2273 = vpop.f32.mrb[0].mxu0
      %2274 = vdwg.mxu0
      %v2275 = vmax.f32 %v2272, 0.0
      %v2276 = vld [vmem:[%s6] sm:$0x3]
      %v2277 = vld [vmem:[%s7] sm:$0x1]
      %vm2278 = vcmask 15360
      %v2280 = vsel %vm2278, %v2275, 0
      %vm2282 = vcmask 1041408
      %v2284 = vsel %vm2282, %v2276, 0
      %2286 = vmatprep.subr.mxu0 0.0
      %2287 = vmatpush1.msra.mxu0 %v2284
      %2288 = vmatprep.subr.mxu0 0.0
      %2289 = vmatpush1.msra.mxu0 0.0
      %2290 = vmatprep.subr.mxu0 0.0
      %2291 = vmatpush1.msra.mxu0 0.0
      %2292 = vmatprep.subr.mxu0 0.0
      %2293 = vmatpush1.msra.mxu0 0.0
      %2294 = vmatprep.subr.mxu0 0.0
      %2295 = vmatpush1.msra.mxu0 0.0
      %2296 = vmatprep.subr.mxu0 0.0
      %2297 = vmatpush1.msra.mxu0 0.0
      %2298 = vmatprep.subr.mxu0 0.0
      %2299 = vmatpush1.msra.mxu0 0.0
      %2300 = vmatprep.subr.mxu0 0.0
      %2301 = vmatpush1.msra.mxu0 0.0
      %2302 = vmatprep.subr.mxu0 0.0
      %2303 = vmatpush1.msra.mxu0 0.0
      %2304 = vmatprep.subr.mxu0 0.0
      %2305 = vmatpush1.msra.mxu0 0.0
      %2306 = vmatprep.subr.mxu0 0.0
      %2307 = vmatpush1.msra.mxu0 0.0
      %2308 = vmatprep.subr.mxu0 0.0
      %2309 = vmatpush1.msra.mxu0 0.0
      %2310 = vmatprep.subr.mxu0 0.0
      %2311 = vmatpush1.msra.mxu0 0.0
      %2312 = vmatprep.subr.mxu0 0.0
      %2313 = vmatpush1.msra.mxu0 0.0
      %2314 = vmatprep.subr.mxu0 0.0
      %2315 = vmatpush1.msra.mxu0 0.0
      %2316 = vmatprep.subr.mxu0 0.0
      %2317 = vmatpush1.msra.mxu0 0.0
      %2318 = vmatprep.subr.mxu0 0.0
      %2319 = vmatpush1.msra.mxu0 0.0
      %2320 = vmatprep.subr.mxu0 0.0
      %2321 = vmatpush1.msra.mxu0 0.0
      %2322 = vmatprep.subr.mxu0 0.0
      %2323 = vmatpush1.msra.mxu0 0.0
      %2324 = vmatprep.subr.mxu0 0.0
      %2325 = vmatpush1.msra.mxu0 0.0
      %2326 = vmatprep.subr.mxu0 0.0
      %2327 = vmatpush1.msra.mxu0 0.0
      %2328 = vmatprep.subr.mxu0 0.0
      %2329 = vmatpush1.msra.mxu0 0.0
      %2330 = vmatprep.subr.mxu0 0.0
      %2331 = vmatpush1.msra.mxu0 0.0
      %2332 = vmatprep.subr.mxu0 0.0
      %2333 = vmatpush1.msra.mxu0 0.0
      %2334 = vmatprep.subr.mxu0 0.0
      %2335 = vmatpush1.msra.mxu0 0.0
      %2336 = vmatprep.subr.mxu0 0.0
      %2337 = vmatpush1.msra.mxu0 0.0
      %2338 = vmatprep.subr.mxu0 0.0
      %2339 = vmatpush1.msra.mxu0 0.0
      %2340 = vmatprep.subr.mxu0 0.0
      %2341 = vmatpush1.msra.mxu0 0.0
      %2342 = vmatprep.subr.mxu0 0.0
      %2343 = vmatpush1.msra.mxu0 0.0
      %2344 = vmatprep.subr.mxu0 0.0
      %2345 = vmatpush1.msra.mxu0 0.0
      %2346 = vmatprep.subr.mxu0 0.0
      %2347 = vmatpush1.msra.mxu0 0.0
      %2348 = vmatprep.subr.mxu0 0.0
      %2349 = vmatpush1.msra.mxu0 0.0
      %2350 = vmatprep.mubr.f32.mxu0 0.0
      %2351 = vmatmul.mubr.f32.gmra.mrb[0].mxu0 %v2280
      %v2352 = vpop.f32.mrb[0].mxu0
      %v2353 = vadd.f32 %v2277, %v2352
      %v2354 = vpop.f32.mrb[0].mxu0
      %2355 = vdwg.mxu0
      %v2356 = vxor.u32 %v2353, 2147483648
      %v2357 = vmul.f32 %v2356, 1.442695
      %v2358 = vpow.pop %v2357
      %v2359 = vadd.f32 %v2358, 1.0
      %v2360 = vrcp.pop %v2359
      %v2361 = vmul.f32 1.0, %v2360
      %s2362 = smul.u32 0, 16
      %s2363 = scalar_lea.vmem [#allocation3], %s2362
      %v2364 = vld [vmem:[%s2363] sm:$0xff]
      %v2365 = vld [vmem:[%s2363 + $0x8] sm:$0xff]
      %v2366 = vld [vmem:[%s2363 + $0x10] sm:$0xff]
      %v2367 = vld [vmem:[%s2363 + $0x18] sm:$0xff]
      %v2368 = vld [vmem:[%s2363 + $0x20] sm:$0xff]
      %v2369 = vld [vmem:[%s2363 + $0x28] sm:$0xff]
      %v2370 = vld [vmem:[%s2363 + $0x30] sm:$0xff]
      %v2371 = vld [vmem:[%s2363 + $0x38] sm:$0xff]
      %v2372 = vld [vmem:[%s2363 + $0x40] sm:$0xff]
      %v2373 = vld [vmem:[%s2363 + $0x48] sm:$0xff]
      %v2374 = vld [vmem:[%s2363 + $0x50] sm:$0xff]
      %v2375 = vld [vmem:[%s2363 + $0x58] sm:$0xff]
      %v2376 = vld [vmem:[%s2363 + $0x60] sm:$0xff]
      %v2377 = vld [vmem:[%s2363 + $0x68] sm:$0xff]
      %v2378 = vld [vmem:[%s2363 + $0x70] sm:$0xff]
      %v2379 = vld [vmem:[%s2363 + $0x78] sm:$0xff]
      %v2380 = vlaneseq
      %v2381 = vshrl.u32 %v2380, 7
      %v2382 = vsub.s32 0, %v2381
      %v2383 = vrot.slane %v2361, %v2382
      %v2384 = vmul.f32 %v2364, %v2383
      %v2385 = vmul.f32 %v2365, %v2383
      %v2386 = vmul.f32 %v2366, %v2383
      %v2387 = vmul.f32 %v2367, %v2383
      %v2388 = vmul.f32 %v2368, %v2383
      %v2389 = vmul.f32 %v2369, %v2383
      %v2390 = vmul.f32 %v2370, %v2383
      %v2391 = vmul.f32 %v2371, %v2383
      %v2392 = vmul.f32 %v2372, %v2383
      %v2393 = vmul.f32 %v2373, %v2383
      %v2394 = vmul.f32 %v2374, %v2383
      %v2395 = vmul.f32 %v2375, %v2383
      %v2396 = vmul.f32 %v2376, %v2383
      %v2397 = vmul.f32 %v2377, %v2383
      %v2398 = vmul.f32 %v2378, %v2383
      %v2399 = vmul.f32 %v2379, %v2383
      %v2400 = vld [vmem:[%s8] sm:$0xf]
      %v2402 = vsel %vm387, %v2384, 0
      %v2405 = vsel %vm387, %v2385, 0
      %v2408 = vsel %vm387, %v2386, 0
      %v2411 = vsel %vm387, %v2387, 0
      %v2414 = vsel %vm387, %v2388, 0
      %v2417 = vsel %vm387, %v2389, 0
      %v2420 = vsel %vm387, %v2390, 0
      %v2423 = vsel %vm387, %v2391, 0
      %v2426 = vsel %vm387, %v2392, 0
      %v2429 = vsel %vm387, %v2393, 0
      %v2432 = vsel %vm387, %v2394, 0
      %v2435 = vsel %vm387, %v2395, 0
      %v2438 = vsel %vm387, %v2396, 0
      %v2441 = vsel %vm387, %v2397, 0
      %v2444 = vsel %vm387, %v2398, 0
      %v2447 = vsel %vm387, %v2399, 0
      %v2450 = vsel %vm2201, %v2400, 0
      %2452 = vmatprep.subr.mxu0 0.0
      %2453 = vmatpush1.msra.mxu0 %v2450
      %2454 = vmatprep.subr.mxu0 0.0
      %2455 = vmatpush1.msra.mxu0 0.0
      %2456 = vmatprep.subr.mxu0 0.0
      %2457 = vmatpush1.msra.mxu0 0.0
      %2458 = vmatprep.subr.mxu0 0.0
      %2459 = vmatpush1.msra.mxu0 0.0
      %2460 = vmatprep.subr.mxu0 0.0
      %2461 = vmatpush1.msra.mxu0 0.0
      %2462 = vmatprep.subr.mxu0 0.0
      %2463 = vmatpush1.msra.mxu0 0.0
      %2464 = vmatprep.subr.mxu0 0.0
      %2465 = vmatpush1.msra.mxu0 0.0
      %2466 = vmatprep.subr.mxu0 0.0
      %2467 = vmatpush1.msra.mxu0 0.0
      %2468 = vmatprep.subr.mxu0 0.0
      %2469 = vmatpush1.msra.mxu0 0.0
      %2470 = vmatprep.subr.mxu0 0.0
      %2471 = vmatpush1.msra.mxu0 0.0
      %2472 = vmatprep.subr.mxu0 0.0
      %2473 = vmatpush1.msra.mxu0 0.0
      %2474 = vmatprep.subr.mxu0 0.0
      %2475 = vmatpush1.msra.mxu0 0.0
      %2476 = vmatprep.subr.mxu0 0.0
      %2477 = vmatpush1.msra.mxu0 0.0
      %2478 = vmatprep.subr.mxu0 0.0
      %2479 = vmatpush1.msra.mxu0 0.0
      %2480 = vmatprep.subr.mxu0 0.0
      %2481 = vmatpush1.msra.mxu0 0.0
      %2482 = vmatprep.subr.mxu0 0.0
      %2483 = vmatpush1.msra.mxu0 0.0
      %2484 = vmatprep.subr.mxu0 0.0
      %2485 = vmatpush1.msra.mxu0 0.0
      %2486 = vmatprep.subr.mxu0 0.0
      %2487 = vmatpush1.msra.mxu0 0.0
      %2488 = vmatprep.subr.mxu0 0.0
      %2489 = vmatpush1.msra.mxu0 0.0
      %2490 = vmatprep.subr.mxu0 0.0
      %2491 = vmatpush1.msra.mxu0 0.0
      %2492 = vmatprep.subr.mxu0 0.0
      %2493 = vmatpush1.msra.mxu0 0.0
      %2494 = vmatprep.subr.mxu0 0.0
      %2495 = vmatpush1.msra.mxu0 0.0
      %2496 = vmatprep.subr.mxu0 0.0
      %2497 = vmatpush1.msra.mxu0 0.0
      %2498 = vmatprep.subr.mxu0 0.0
      %2499 = vmatpush1.msra.mxu0 0.0
      %2500 = vmatprep.subr.mxu0 0.0
      %2501 = vmatpush1.msra.mxu0 0.0
      %2502 = vmatprep.subr.mxu0 0.0
      %2503 = vmatpush1.msra.mxu0 0.0
      %2504 = vmatprep.subr.mxu0 0.0
      %2505 = vmatpush1.msra.mxu0 0.0
      %2506 = vmatprep.subr.mxu0 0.0
      %2507 = vmatpush1.msra.mxu0 0.0
      %2508 = vmatprep.subr.mxu0 0.0
      %2509 = vmatpush1.msra.mxu0 0.0
      %2510 = vmatprep.subr.mxu0 0.0
      %2511 = vmatpush1.msra.mxu0 0.0
      %2512 = vmatprep.subr.mxu0 0.0
      %2513 = vmatpush1.msra.mxu0 0.0
      %2514 = vmatprep.subr.mxu0 0.0
      %2515 = vmatpush1.msra.mxu0 0.0
      %2516 = vmatprep.mubr.f32.mxu0 0.0
      %2517 = vmatmul.mubr.f32.gmra.mrb[0].mxu0 %v2402
      %v2518 = vpop.f32.mrb[0].mxu0
      %v2519 = vadd.f32 0.0, %v2518
      %v2520 = vpop.f32.mrb[0].mxu0
      %2521 = vmatprep.mubr.f32.mxu0 0.0
      %2522 = vmatmul.mubr.f32.gmra.mrb[0].mxu0 %v2405
      %v2523 = vpop.f32.mrb[0].mxu0
      %v2524 = vadd.f32 0.0, %v2523
      %v2525 = vpop.f32.mrb[0].mxu0
      %2526 = vmatprep.mubr.f32.mxu0 0.0
      %2527 = vmatmul.mubr.f32.gmra.mrb[0].mxu0 %v2408
      %v2528 = vpop.f32.mrb[0].mxu0
      %v2529 = vadd.f32 0.0, %v2528
      %v2530 = vpop.f32.mrb[0].mxu0
      %2531 = vmatprep.mubr.f32.mxu0 0.0
      %2532 = vmatmul.mubr.f32.gmra.mrb[0].mxu0 %v2411
      %v2533 = vpop.f32.mrb[0].mxu0
      %v2534 = vadd.f32 0.0, %v2533
      %v2535 = vpop.f32.mrb[0].mxu0
      %2536 = vmatprep.mubr.f32.mxu0 0.0
      %2537 = vmatmul.mubr.f32.gmra.mrb[0].mxu0 %v2414
      %v2538 = vpop.f32.mrb[0].mxu0
      %v2539 = vadd.f32 0.0, %v2538
      %v2540 = vpop.f32.mrb[0].mxu0
      %2541 = vmatprep.mubr.f32.mxu0 0.0
      %2542 = vmatmul.mubr.f32.gmra.mrb[0].mxu0 %v2417
      %v2543 = vpop.f32.mrb[0].mxu0
      %v2544 = vadd.f32 0.0, %v2543
      %v2545 = vpop.f32.mrb[0].mxu0
      %2546 = vmatprep.mubr.f32.mxu0 0.0
      %2547 = vmatmul.mubr.f32.gmra.mrb[0].mxu0 %v2420
      %v2548 = vpop.f32.mrb[0].mxu0
      %v2549 = vadd.f32 0.0, %v2548
      %v2550 = vpop.f32.mrb[0].mxu0
      %2551 = vmatprep.mubr.f32.mxu0 0.0
      %2552 = vmatmul.mubr.f32.gmra.mrb[0].mxu0 %v2423
      %v2553 = vpop.f32.mrb[0].mxu0
      %v2554 = vadd.f32 0.0, %v2553
      %v2555 = vpop.f32.mrb[0].mxu0
      %2556 = vmatprep.mubr.f32.mxu0 0.0
      %2557 = vmatmul.mubr.f32.gmra.mrb[0].mxu0 %v2426
      %v2558 = vpop.f32.mrb[0].mxu0
      %v2559 = vadd.f32 0.0, %v2558
      %v2560 = vpop.f32.mrb[0].mxu0
      %2561 = vmatprep.mubr.f32.mxu0 0.0
      %2562 = vmatmul.mubr.f32.gmra.mrb[0].mxu0 %v2429
      %v2563 = vpop.f32.mrb[0].mxu0
      %v2564 = vadd.f32 0.0, %v2563
      %v2565 = vpop.f32.mrb[0].mxu0
      %2566 = vmatprep.mubr.f32.mxu0 0.0
      %2567 = vmatmul.mubr.f32.gmra.mrb[0].mxu0 %v2432
      %v2568 = vpop.f32.mrb[0].mxu0
      %v2569 = vadd.f32 0.0, %v2568
      %v2570 = vpop.f32.mrb[0].mxu0
      %2571 = vmatprep.mubr.f32.mxu0 0.0
      %2572 = vmatmul.mubr.f32.gmra.mrb[0].mxu0 %v2435
      %v2573 = vpop.f32.mrb[0].mxu0
      %v2574 = vadd.f32 0.0, %v2573
      %v2575 = vpop.f32.mrb[0].mxu0
      %2576 = vmatprep.mubr.f32.mxu0 0.0
      %2577 = vmatmul.mubr.f32.gmra.mrb[0].mxu0 %v2438
      %v2578 = vpop.f32.mrb[0].mxu0
      %v2579 = vadd.f32 0.0, %v2578
      %v2580 = vpop.f32.mrb[0].mxu0
      %2581 = vmatprep.mubr.f32.mxu0 0.0
      %2582 = vmatmul.mubr.f32.gmra.mrb[0].mxu0 %v2441
      %v2583 = vpop.f32.mrb[0].mxu0
      %v2584 = vadd.f32 0.0, %v2583
      %v2585 = vpop.f32.mrb[0].mxu0
      %2586 = vmatprep.mubr.f32.mxu0 0.0
      %2587 = vmatmul.mubr.f32.gmra.mrb[0].mxu0 %v2444
      %v2588 = vpop.f32.mrb[0].mxu0
      %v2589 = vadd.f32 0.0, %v2588
      %v2590 = vpop.f32.mrb[0].mxu0
      %2591 = vmatprep.mubr.f32.mxu0 0.0
      %2592 = vmatmul.mubr.f32.gmra.mrb[0].mxu0 %v2447
      %v2593 = vpop.f32.mrb[0].mxu0
      %v2594 = vadd.f32 0.0, %v2593
      %v2595 = vpop.f32.mrb[0].mxu0
      %2596 = vdwg.mxu0
      %v2597 = vld [vmem:[%s9] sm:$0x1]
      %v2599 = vlaneseq
      %v2600 = vshrl.u32 %v2599, 7
      %v2601 = vsub.s32 0, %v2600
      %v2602 = vrot.slane %v2597, %v2601
      %v2604 = vmul.f32 %v2519, %v2602
      %v2605 = vmul.f32 %v2524, %v2602
      %v2606 = vmul.f32 %v2529, %v2602
      %v2607 = vmul.f32 %v2534, %v2602
      %v2608 = vmul.f32 %v2539, %v2602
      %v2609 = vmul.f32 %v2544, %v2602
      %v2610 = vmul.f32 %v2549, %v2602
      %v2611 = vmul.f32 %v2554, %v2602
      %v2612 = vmul.f32 %v2559, %v2602
      %v2613 = vmul.f32 %v2564, %v2602
      %v2614 = vmul.f32 %v2569, %v2602
      %v2615 = vmul.f32 %v2574, %v2602
      %v2616 = vmul.f32 %v2579, %v2602
      %v2617 = vmul.f32 %v2584, %v2602
      %v2618 = vmul.f32 %v2589, %v2602
      %v2619 = vmul.f32 %v2594, %v2602
      %v2620 = vld [vmem:[%s10] sm:$0x1]
      %v2622 = vlaneseq
      %v2623 = vshrl.u32 %v2622, 7
      %v2624 = vsub.s32 0, %v2623
      %v2625 = vrot.slane %v2620, %v2624
      %v2627 = vadd.f32 %v2604, %v2625
      %v2628 = vadd.f32 %v2605, %v2625
      %v2629 = vadd.f32 %v2606, %v2625
      %v2630 = vadd.f32 %v2607, %v2625
      %v2631 = vadd.f32 %v2608, %v2625
      %v2632 = vadd.f32 %v2609, %v2625
      %v2633 = vadd.f32 %v2610, %v2625
      %v2634 = vadd.f32 %v2611, %v2625
      %v2635 = vadd.f32 %v2612, %v2625
      %v2636 = vadd.f32 %v2613, %v2625
      %v2637 = vadd.f32 %v2614, %v2625
      %v2638 = vadd.f32 %v2615, %v2625
      %v2639 = vadd.f32 %v2616, %v2625
      %v2640 = vadd.f32 %v2617, %v2625
      %v2641 = vadd.f32 %v2618, %v2625
      %v2642 = vadd.f32 %v2619, %v2625
      %v2643 = vmax.f32 %v2627, 0.0
      %v2644 = vmax.f32 %v2628, 0.0
      %v2645 = vmax.f32 %v2629, 0.0
      %v2646 = vmax.f32 %v2630, 0.0
      %v2647 = vmax.f32 %v2631, 0.0
      %v2648 = vmax.f32 %v2632, 0.0
      %v2649 = vmax.f32 %v2633, 0.0
      %v2650 = vmax.f32 %v2634, 0.0
      %v2651 = vmax.f32 %v2635, 0.0
      %v2652 = vmax.f32 %v2636, 0.0
      %v2653 = vmax.f32 %v2637, 0.0
      %v2654 = vmax.f32 %v2638, 0.0
      %v2655 = vmax.f32 %v2639, 0.0
      %v2656 = vmax.f32 %v2640, 0.0
      %v2657 = vmax.f32 %v2641, 0.0
      %v2658 = vmax.f32 %v2642, 0.0
      %s2659 = scalar_lea.vmem %s381, %s2362
      %v2660 = vld [vmem:[%s2659] sm:$0xff]
      %v2661 = vld [vmem:[%s2659 + $0x8] sm:$0xff]
      %v2662 = vld [vmem:[%s2659 + $0x10] sm:$0xff]
      %v2663 = vld [vmem:[%s2659 + $0x18] sm:$0xff]
      %v2664 = vld [vmem:[%s2659 + $0x20] sm:$0xff]
      %v2665 = vld [vmem:[%s2659 + $0x28] sm:$0xff]
      %v2666 = vld [vmem:[%s2659 + $0x30] sm:$0xff]
      %v2667 = vld [vmem:[%s2659 + $0x38] sm:$0xff]
      %v2668 = vld [vmem:[%s2659 + $0x40] sm:$0xff]
      %v2669 = vld [vmem:[%s2659 + $0x48] sm:$0xff]
      %v2670 = vld [vmem:[%s2659 + $0x50] sm:$0xff]
      %v2671 = vld [vmem:[%s2659 + $0x58] sm:$0xff]
      %v2672 = vld [vmem:[%s2659 + $0x60] sm:$0xff]
      %v2673 = vld [vmem:[%s2659 + $0x68] sm:$0xff]
      %v2674 = vld [vmem:[%s2659 + $0x70] sm:$0xff]
      %v2675 = vld [vmem:[%s2659 + $0x78] sm:$0xff]
      %v2676 = vadd.f32 %v2643, %v2660
      %v2677 = vadd.f32 %v2644, %v2661
      %v2678 = vadd.f32 %v2645, %v2662
      %v2679 = vadd.f32 %v2646, %v2663
      %v2680 = vadd.f32 %v2647, %v2664
      %v2681 = vadd.f32 %v2648, %v2665
      %v2682 = vadd.f32 %v2649, %v2666
      %v2683 = vadd.f32 %v2650, %v2667
      %v2684 = vadd.f32 %v2651, %v2668
      %v2685 = vadd.f32 %v2652, %v2669
      %v2686 = vadd.f32 %v2653, %v2670
      %v2687 = vadd.f32 %v2654, %v2671
      %v2688 = vadd.f32 %v2655, %v2672
      %v2689 = vadd.f32 %v2656, %v2673
      %v2690 = vadd.f32 %v2657, %v2674
      %v2691 = vadd.f32 %v2658, %v2675
      %s2692 = scalar_lea.vmem %s386, %s2362
      %2693 = vst.msk [vmem:[%s2692] sm:$0xff] %vm387, %v2676
      %2694 = vst.msk [vmem:[%s2692 + $0x8] sm:$0xff] %vm387, %v2677
      %2695 = vst.msk [vmem:[%s2692 + $0x10] sm:$0xff] %vm387, %v2678
      %2696 = vst.msk [vmem:[%s2692 + $0x18] sm:$0xff] %vm387, %v2679
      %2697 = vst.msk [vmem:[%s2692 + $0x20] sm:$0xff] %vm387, %v2680
      %2698 = vst.msk [vmem:[%s2692 + $0x28] sm:$0xff] %vm387, %v2681
      %2699 = vst.msk [vmem:[%s2692 + $0x30] sm:$0xff] %vm387, %v2682
      %2700 = vst.msk [vmem:[%s2692 + $0x38] sm:$0xff] %vm387, %v2683
      %2701 = vst.msk [vmem:[%s2692 + $0x40] sm:$0xff] %vm387, %v2684
      %2702 = vst.msk [vmem:[%s2692 + $0x48] sm:$0xff] %vm387, %v2685
      %2703 = vst.msk [vmem:[%s2692 + $0x50] sm:$0xff] %vm387, %v2686
      %2704 = vst.msk [vmem:[%s2692 + $0x58] sm:$0xff] %vm387, %v2687
      %2705 = vst.msk [vmem:[%s2692 + $0x60] sm:$0xff] %vm387, %v2688
      %2706 = vst.msk [vmem:[%s2692 + $0x68] sm:$0xff] %vm387, %v2689
      %2707 = vst.msk [vmem:[%s2692 + $0x70] sm:$0xff] %vm387, %v2690
      %2708 = vst.msk [vmem:[%s2692 + $0x78] sm:$0xff] %vm387, %v2691
      %s2709 = smul.u32 8, 16
      %s2710 = scalar_lea.vmem [#allocation3], %s2709
      %v2711 = vld [vmem:[%s2710] sm:$0xff]
      %v2712 = vld [vmem:[%s2710 + $0x8] sm:$0xff]
      %v2713 = vld [vmem:[%s2710 + $0x10] sm:$0xff]
      %v2714 = vld [vmem:[%s2710 + $0x18] sm:$0xff]
      %v2715 = vld [vmem:[%s2710 + $0x20] sm:$0xff]
      %v2716 = vld [vmem:[%s2710 + $0x28] sm:$0xff]
      %v2717 = vld [vmem:[%s2710 + $0x30] sm:$0xff]
      %v2718 = vld [vmem:[%s2710 + $0x38] sm:$0xff]
      %v2719 = vld [vmem:[%s2710 + $0x40] sm:$0xff]
      %v2720 = vld [vmem:[%s2710 + $0x48] sm:$0xff]
      %v2721 = vld [vmem:[%s2710 + $0x50] sm:$0xff]
      %v2722 = vld [vmem:[%s2710 + $0x58] sm:$0xff]
      %v2723 = vld [vmem:[%s2710 + $0x60] sm:$0xff]
      %v2724 = vld [vmem:[%s2710 + $0x68] sm:$0xff]
      %v2725 = vld [vmem:[%s2710 + $0x70] sm:$0xff]
      %v2726 = vld [vmem:[%s2710 + $0x78] sm:$0xff]
      %v2727 = vmul.f32 %v2711, %v2383
      %v2728 = vmul.f32 %v2712, %v2383
      %v2729 = vmul.f32 %v2713, %v2383
      %v2730 = vmul.f32 %v2714, %v2383
      %v2731 = vmul.f32 %v2715, %v2383
      %v2732 = vmul.f32 %v2716, %v2383
      %v2733 = vmul.f32 %v2717, %v2383
      %v2734 = vmul.f32 %v2718, %v2383
      %v2735 = vmul.f32 %v2719, %v2383
      %v2736 = vmul.f32 %v2720, %v2383
      %v2737 = vmul.f32 %v2721, %v2383
      %v2738 = vmul.f32 %v2722, %v2383
      %v2739 = vmul.f32 %v2723, %v2383
      %v2740 = vmul.f32 %v2724, %v2383
      %v2741 = vmul.f32 %v2725, %v2383
      %v2742 = vmul.f32 %v2726, %v2383
      %v2743 = vld [vmem:[%s8] sm:$0xf]
      %v2745 = vsel %vm387, %v2727, 0
      %v2748 = vsel %vm387, %v2728, 0
      %v2751 = vsel %vm387, %v2729, 0
      %v2754 = vsel %vm387, %v2730, 0
      %v2757 = vsel %vm387, %v2731, 0
      %v2760 = vsel %vm387, %v2732, 0
      %v2763 = vsel %vm387, %v2733, 0
      %v2766 = vsel %vm387, %v2734, 0
      %v2769 = vsel %vm387, %v2735, 0
      %v2772 = vsel %vm387, %v2736, 0
      %v2775 = vsel %vm387, %v2737, 0
      %v2778 = vsel %vm387, %v2738, 0
      %v2781 = vsel %vm387, %v2739, 0
      %v2784 = vsel %vm387, %v2740, 0
      %v2787 = vsel %vm387, %v2741, 0
      %v2790 = vsel %vm387, %v2742, 0
      %v2793 = vsel %vm2201, %v2743, 0
      %2795 = vmatprep.subr.mxu0 0.0
      %2796 = vmatpush1.msra.mxu0 %v2793
      %2797 = vmatprep.subr.mxu0 0.0
      %2798 = vmatpush1.msra.mxu0 0.0
      %2799 = vmatprep.subr.mxu0 0.0
      %2800 = vmatpush1.msra.mxu0 0.0
      %2801 = vmatprep.subr.mxu0 0.0
      %2802 = vmatpush1.msra.mxu0 0.0
      %2803 = vmatprep.subr.mxu0 0.0
      %2804 = vmatpush1.msra.mxu0 0.0
      %2805 = vmatprep.subr.mxu0 0.0
      %2806 = vmatpush1.msra.mxu0 0.0
      %2807 = vmatprep.subr.mxu0 0.0
      %2808 = vmatpush1.msra.mxu0 0.0
      %2809 = vmatprep.subr.mxu0 0.0
      %2810 = vmatpush1.msra.mxu0 0.0
      %2811 = vmatprep.subr.mxu0 0.0
      %2812 = vmatpush1.msra.mxu0 0.0
      %2813 = vmatprep.subr.mxu0 0.0
      %2814 = vmatpush1.msra.mxu0 0.0
      %2815 = vmatprep.subr.mxu0 0.0
      %2816 = vmatpush1.msra.mxu0 0.0
      %2817 = vmatprep.subr.mxu0 0.0
      %2818 = vmatpush1.msra.mxu0 0.0
      %2819 = vmatprep.subr.mxu0 0.0
      %2820 = vmatpush1.msra.mxu0 0.0
      %2821 = vmatprep.subr.mxu0 0.0
      %2822 = vmatpush1.msra.mxu0 0.0
      %2823 = vmatprep.subr.mxu0 0.0
      %2824 = vmatpush1.msra.mxu0 0.0
      %2825 = vmatprep.subr.mxu0 0.0
      %2826 = vmatpush1.msra.mxu0 0.0
      %2827 = vmatprep.subr.mxu0 0.0
      %2828 = vmatpush1.msra.mxu0 0.0
      %2829 = vmatprep.subr.mxu0 0.0
      %2830 = vmatpush1.msra.mxu0 0.0
      %2831 = vmatprep.subr.mxu0 0.0
      %2832 = vmatpush1.msra.mxu0 0.0
      %2833 = vmatprep.subr.mxu0 0.0
      %2834 = vmatpush1.msra.mxu0 0.0
      %2835 = vmatprep.subr.mxu0 0.0
      %2836 = vmatpush1.msra.mxu0 0.0
      %2837 = vmatprep.subr.mxu0 0.0
      %2838 = vmatpush1.msra.mxu0 0.0
      %2839 = vmatprep.subr.mxu0 0.0
      %2840 = vmatpush1.msra.mxu0 0.0
      %2841 = vmatprep.subr.mxu0 0.0
      %2842 = vmatpush1.msra.mxu0 0.0
      %2843 = vmatprep.subr.mxu0 0.0
      %2844 = vmatpush1.msra.mxu0 0.0
      %2845 = vmatprep.subr.mxu0 0.0
      %2846 = vmatpush1.msra.mxu0 0.0
      %2847 = vmatprep.subr.mxu0 0.0
      %2848 = vmatpush1.msra.mxu0 0.0
      %2849 = vmatprep.subr.mxu0 0.0
      %2850 = vmatpush1.msra.mxu0 0.0
      %2851 = vmatprep.subr.mxu0 0.0
      %2852 = vmatpush1.msra.mxu0 0.0
      %2853 = vmatprep.subr.mxu0 0.0
      %2854 = vmatpush1.msra.mxu0 0.0
      %2855 = vmatprep.subr.mxu0 0.0
      %2856 = vmatpush1.msra.mxu0 0.0
      %2857 = vmatprep.subr.mxu0 0.0
      %2858 = vmatpush1.msra.mxu0 0.0
      %2859 = vmatprep.mubr.f32.mxu0 0.0
      %2860 = vmatmul.mubr.f32.gmra.mrb[0].mxu0 %v2745
      %v2861 = vpop.f32.mrb[0].mxu0
      %v2862 = vadd.f32 0.0, %v2861
      %v2863 = vpop.f32.mrb[0].mxu0
      %2864 = vmatprep.mubr.f32.mxu0 0.0
      %2865 = vmatmul.mubr.f32.gmra.mrb[0].mxu0 %v2748
      %v2866 = vpop.f32.mrb[0].mxu0
      %v2867 = vadd.f32 0.0, %v2866
      %v2868 = vpop.f32.mrb[0].mxu0
      %2869 = vmatprep.mubr.f32.mxu0 0.0
      %2870 = vmatmul.mubr.f32.gmra.mrb[0].mxu0 %v2751
      %v2871 = vpop.f32.mrb[0].mxu0
      %v2872 = vadd.f32 0.0, %v2871
      %v2873 = vpop.f32.mrb[0].mxu0
      %2874 = vmatprep.mubr.f32.mxu0 0.0
      %2875 = vmatmul.mubr.f32.gmra.mrb[0].mxu0 %v2754
      %v2876 = vpop.f32.mrb[0].mxu0
      %v2877 = vadd.f32 0.0, %v2876
      %v2878 = vpop.f32.mrb[0].mxu0
      %2879 = vmatprep.mubr.f32.mxu0 0.0
      %2880 = vmatmul.mubr.f32.gmra.mrb[0].mxu0 %v2757
      %v2881 = vpop.f32.mrb[0].mxu0
      %v2882 = vadd.f32 0.0, %v2881
      %v2883 = vpop.f32.mrb[0].mxu0
      %2884 = vmatprep.mubr.f32.mxu0 0.0
      %2885 = vmatmul.mubr.f32.gmra.mrb[0].mxu0 %v2760
      %v2886 = vpop.f32.mrb[0].mxu0
      %v2887 = vadd.f32 0.0, %v2886
      %v2888 = vpop.f32.mrb[0].mxu0
      %2889 = vmatprep.mubr.f32.mxu0 0.0
      %2890 = vmatmul.mubr.f32.gmra.mrb[0].mxu0 %v2763
      %v2891 = vpop.f32.mrb[0].mxu0
      %v2892 = vadd.f32 0.0, %v2891
      %v2893 = vpop.f32.mrb[0].mxu0
      %2894 = vmatprep.mubr.f32.mxu0 0.0
      %2895 = vmatmul.mubr.f32.gmra.mrb[0].mxu0 %v2766
      %v2896 = vpop.f32.mrb[0].mxu0
      %v2897 = vadd.f32 0.0, %v2896
      %v2898 = vpop.f32.mrb[0].mxu0
      %2899 = vmatprep.mubr.f32.mxu0 0.0
      %2900 = vmatmul.mubr.f32.gmra.mrb[0].mxu0 %v2769
      %v2901 = vpop.f32.mrb[0].mxu0
      %v2902 = vadd.f32 0.0, %v2901
      %v2903 = vpop.f32.mrb[0].mxu0
      %2904 = vmatprep.mubr.f32.mxu0 0.0
      %2905 = vmatmul.mubr.f32.gmra.mrb[0].mxu0 %v2772
      %v2906 = vpop.f32.mrb[0].mxu0
      %v2907 = vadd.f32 0.0, %v2906
      %v2908 = vpop.f32.mrb[0].mxu0
      %2909 = vmatprep.mubr.f32.mxu0 0.0
      %2910 = vmatmul.mubr.f32.gmra.mrb[0].mxu0 %v2775
      %v2911 = vpop.f32.mrb[0].mxu0
      %v2912 = vadd.f32 0.0, %v2911
      %v2913 = vpop.f32.mrb[0].mxu0
      %2914 = vmatprep.mubr.f32.mxu0 0.0
      %2915 = vmatmul.mubr.f32.gmra.mrb[0].mxu0 %v2778
      %v2916 = vpop.f32.mrb[0].mxu0
      %v2917 = vadd.f32 0.0, %v2916
      %v2918 = vpop.f32.mrb[0].mxu0
      %2919 = vmatprep.mubr.f32.mxu0 0.0
      %2920 = vmatmul.mubr.f32.gmra.mrb[0].mxu0 %v2781
      %v2921 = vpop.f32.mrb[0].mxu0
      %v2922 = vadd.f32 0.0, %v2921
      %v2923 = vpop.f32.mrb[0].mxu0
      %2924 = vmatprep.mubr.f32.mxu0 0.0
      %2925 = vmatmul.mubr.f32.gmra.mrb[0].mxu0 %v2784
      %v2926 = vpop.f32.mrb[0].mxu0
      %v2927 = vadd.f32 0.0, %v2926
      %v2928 = vpop.f32.mrb[0].mxu0
      %2929 = vmatprep.mubr.f32.mxu0 0.0
      %2930 = vmatmul.mubr.f32.gmra.mrb[0].mxu0 %v2787
      %v2931 = vpop.f32.mrb[0].mxu0
      %v2932 = vadd.f32 0.0, %v2931
      %v2933 = vpop.f32.mrb[0].mxu0
      %2934 = vmatprep.mubr.f32.mxu0 0.0
      %2935 = vmatmul.mubr.f32.gmra.mrb[0].mxu0 %v2790
      %v2936 = vpop.f32.mrb[0].mxu0
      %v2937 = vadd.f32 0.0, %v2936
      %v2938 = vpop.f32.mrb[0].mxu0
      %2939 = vdwg.mxu0
      %v2940 = vld [vmem:[%s9] sm:$0x1]
      %v2942 = vlaneseq
      %v2943 = vshrl.u32 %v2942, 7
      %v2944 = vsub.s32 0, %v2943
      %v2945 = vrot.slane %v2940, %v2944
      %v2947 = vmul.f32 %v2862, %v2945
      %v2948 = vmul.f32 %v2867, %v2945
      %v2949 = vmul.f32 %v2872, %v2945
      %v2950 = vmul.f32 %v2877, %v2945
      %v2951 = vmul.f32 %v2882, %v2945
      %v2952 = vmul.f32 %v2887, %v2945
      %v2953 = vmul.f32 %v2892, %v2945
      %v2954 = vmul.f32 %v2897, %v2945
      %v2955 = vmul.f32 %v2902, %v2945
      %v2956 = vmul.f32 %v2907, %v2945
      %v2957 = vmul.f32 %v2912, %v2945
      %v2958 = vmul.f32 %v2917, %v2945
      %v2959 = vmul.f32 %v2922, %v2945
      %v2960 = vmul.f32 %v2927, %v2945
      %v2961 = vmul.f32 %v2932, %v2945
      %v2962 = vmul.f32 %v2937, %v2945
      %v2963 = vld [vmem:[%s10] sm:$0x1]
      %v2965 = vlaneseq
      %v2966 = vshrl.u32 %v2965, 7
      %v2967 = vsub.s32 0, %v2966
      %v2968 = vrot.slane %v2963, %v2967
      %v2970 = vadd.f32 %v2947, %v2968
      %v2971 = vadd.f32 %v2948, %v2968
      %v2972 = vadd.f32 %v2949, %v2968
      %v2973 = vadd.f32 %v2950, %v2968
      %v2974 = vadd.f32 %v2951, %v2968
      %v2975 = vadd.f32 %v2952, %v2968
      %v2976 = vadd.f32 %v2953, %v2968
      %v2977 = vadd.f32 %v2954, %v2968
      %v2978 = vadd.f32 %v2955, %v2968
      %v2979 = vadd.f32 %v2956, %v2968
      %v2980 = vadd.f32 %v2957, %v2968
      %v2981 = vadd.f32 %v2958, %v2968
      %v2982 = vadd.f32 %v2959, %v2968
      %v2983 = vadd.f32 %v2960, %v2968
      %v2984 = vadd.f32 %v2961, %v2968
      %v2985 = vadd.f32 %v2962, %v2968
      %v2986 = vmax.f32 %v2970, 0.0
      %v2987 = vmax.f32 %v2971, 0.0
      %v2988 = vmax.f32 %v2972, 0.0
      %v2989 = vmax.f32 %v2973, 0.0
      %v2990 = vmax.f32 %v2974, 0.0
      %v2991 = vmax.f32 %v2975, 0.0
      %v2992 = vmax.f32 %v2976, 0.0
      %v2993 = vmax.f32 %v2977, 0.0
      %v2994 = vmax.f32 %v2978, 0.0
      %v2995 = vmax.f32 %v2979, 0.0
      %v2996 = vmax.f32 %v2980, 0.0
      %v2997 = vmax.f32 %v2981, 0.0
      %v2998 = vmax.f32 %v2982, 0.0
      %v2999 = vmax.f32 %v2983, 0.0
      %v3000 = vmax.f32 %v2984, 0.0
      %v3001 = vmax.f32 %v2985, 0.0
      %s3002 = scalar_lea.vmem %s381, %s2709
      %v3003 = vld [vmem:[%s3002] sm:$0xff]
      %v3004 = vld [vmem:[%s3002 + $0x8] sm:$0xff]
      %v3005 = vld [vmem:[%s3002 + $0x10] sm:$0xff]
      %v3006 = vld [vmem:[%s3002 + $0x18] sm:$0xff]
      %v3007 = vld [vmem:[%s3002 + $0x20] sm:$0xff]
      %v3008 = vld [vmem:[%s3002 + $0x28] sm:$0xff]
      %v3009 = vld [vmem:[%s3002 + $0x30] sm:$0xff]
      %v3010 = vld [vmem:[%s3002 + $0x38] sm:$0xff]
      %v3011 = vld [vmem:[%s3002 + $0x40] sm:$0xff]
      %v3012 = vld [vmem:[%s3002 + $0x48] sm:$0xff]
      %v3013 = vld [vmem:[%s3002 + $0x50] sm:$0xff]
      %v3014 = vld [vmem:[%s3002 + $0x58] sm:$0xff]
      %v3015 = vld [vmem:[%s3002 + $0x60] sm:$0xff]
      %v3016 = vld [vmem:[%s3002 + $0x68] sm:$0xff]
      %v3017 = vld [vmem:[%s3002 + $0x70] sm:$0xff]
      %v3018 = vld [vmem:[%s3002 + $0x78] sm:$0xff]
      %v3019 = vadd.f32 %v2986, %v3003
      %v3020 = vadd.f32 %v2987, %v3004
      %v3021 = vadd.f32 %v2988, %v3005
      %v3022 = vadd.f32 %v2989, %v3006
      %v3023 = vadd.f32 %v2990, %v3007
      %v3024 = vadd.f32 %v2991, %v3008
      %v3025 = vadd.f32 %v2992, %v3009
      %v3026 = vadd.f32 %v2993, %v3010
      %v3027 = vadd.f32 %v2994, %v3011
      %v3028 = vadd.f32 %v2995, %v3012
      %v3029 = vadd.f32 %v2996, %v3013
      %v3030 = vadd.f32 %v2997, %v3014
      %v3031 = vadd.f32 %v2998, %v3015
      %v3032 = vadd.f32 %v2999, %v3016
      %v3033 = vadd.f32 %v3000, %v3017
      %v3034 = vadd.f32 %v3001, %v3018
      %s3035 = scalar_lea.vmem %s386, %s2709
      %3036 = vst.msk [vmem:[%s3035] sm:$0xff] %vm387, %v3019
      %3037 = vst.msk [vmem:[%s3035 + $0x8] sm:$0xff] %vm387, %v3020
      %3038 = vst.msk [vmem:[%s3035 + $0x10] sm:$0xff] %vm387, %v3021
      %3039 = vst.msk [vmem:[%s3035 + $0x18] sm:$0xff] %vm387, %v3022
      %3040 = vst.msk [vmem:[%s3035 + $0x20] sm:$0xff] %vm387, %v3023
      %3041 = vst.msk [vmem:[%s3035 + $0x28] sm:$0xff] %vm387, %v3024
      %3042 = vst.msk [vmem:[%s3035 + $0x30] sm:$0xff] %vm387, %v3025
      %3043 = vst.msk [vmem:[%s3035 + $0x38] sm:$0xff] %vm387, %v3026
      %3044 = vst.msk [vmem:[%s3035 + $0x40] sm:$0xff] %vm387, %v3027
      %3045 = vst.msk [vmem:[%s3035 + $0x48] sm:$0xff] %vm387, %v3028
      %3046 = vst.msk [vmem:[%s3035 + $0x50] sm:$0xff] %vm387, %v3029
      %3047 = vst.msk [vmem:[%s3035 + $0x58] sm:$0xff] %vm387, %v3030
      %3048 = vst.msk [vmem:[%s3035 + $0x60] sm:$0xff] %vm387, %v3031
      %3049 = vst.msk [vmem:[%s3035 + $0x68] sm:$0xff] %vm387, %v3032
      %3050 = vst.msk [vmem:[%s3035 + $0x70] sm:$0xff] %vm387, %v3033
      %3051 = vst.msk [vmem:[%s3035 + $0x78] sm:$0xff] %vm387, %v3034
      %p3052 = scmp.lt.s32.totalorder %s22, 1
      %s3053 = scalar_select %p3052, %s22, 1
      %s3054 = smul.addr %s3053, 32
      %s3055 = smul.addr %s3054, 8
      %s3056 = scalar_lea.vmem %s11, %s3055
      // Predicated region
      $region65: #{tpu_custom_call.1} parent=63 // pred_check
        %p3057 = pneg %p276
      $region66: #{tpu_custom_call.1} parent=63 // pred_check_branch
        %3059 = sbr.rel (%p3057) target = $region68
      $region67: #{tpu_custom_call.1} parent=63 // pred_region
        _
      $region68: #{tpu_custom_call.1} parent=63 // pred_fallthru
        _
    $region64: #{tpu_custom_call.1} parent=5 // pred_fallthru
      _
    %p3060 = scmp.le.s32.totalorder 2, %s17
    // Predicated region
    $region69: #{tpu_custom_call.1} parent=5 // pred_check
      %p3061 = pneg %p3060
    $region70: #{tpu_custom_call.1} parent=5 // pred_check_branch
      %3063 = sbr.rel (%p3061) target = $region72
    $region71: #{tpu_custom_call.1} parent=5 // pred_region
      %s3064 = ssub.s32 %s17, 2
      // Predicated region
      $region73: #{tpu_custom_call.1} parent=71 // pred_check
        %p3065 = pneg %p282
      $region74: #{tpu_custom_call.1} parent=71 // pred_check_branch
        %3067 = sbr.rel (%p3065) target = $region76
      $region75: #{tpu_custom_call.1} parent=71 // pred_region
        %p3068 = scmp.lt.s32.totalorder %s23, 1
        %s3069 = scalar_select %p3068, %s23, 1
        %s3070 = smul.addr %s3069, 32
        %s3071 = smul.addr %s3070, 8
        %s3072 = scalar_lea.vmem %s11, %s3071
      $region76: #{tpu_custom_call.1} parent=71 // pred_fallthru
        _
    $region72: #{tpu_custom_call.1} parent=5 // pred_fallthru
      _
  $region6: #{tpu_custom_call.1} parent=0 // loop_footer
    %s21 = sadd.s32 1, %s17
  $region7: #{tpu_custom_call.1} parent=0 // loop_footer_branch
    %16 = sbr.rel target = $region3
  $region8: #{tpu_custom_call.1} parent=0 // loop_exit
    _

</llo_original>
